<compile_context>
chip_gen: v5e
topology: v5e:2x2
jax: 0.10.0
libtpu: 0.0.40
codegen_flags: <defaults>
</compile_context>

<pallas_src>
import functools

import jax
import jax.numpy as jnp
from jax import lax
from jax.experimental import pallas as pl
from jax.experimental.pallas import tpu as pltpu  # noqa: F401  (kept for clarity)


# -----------------------------------------------------------------------------
# Shared LSTM cell math (used inside the Pallas kernel AND in the pure-JAX
# reference).  Gate order along the 4H axis is [i | f | o | g].
# Matmul operands are cast to whh.dtype (bf16 in the kernel, f32 in the
# reference); activations / elementwise math stay f32.
# -----------------------------------------------------------------------------
def _lstm_cell(x_proj, h, c, whh):
    H = h.shape[-1]
    gates = x_proj + jnp.dot(h.astype(whh.dtype), whh,
                             preferred_element_type=jnp.float32)
    s = jax.nn.sigmoid(gates[:, : 3 * H])    # i, f, o in one activation call
    g = jnp.tanh(gates[:, 3 * H:])
    c_new = s[:, H:2 * H] * c + s[:, :H] * g
    h_new = s[:, 2 * H:3 * H] * jnp.tanh(c_new)
    return h_new, c_new


# -----------------------------------------------------------------------------
# Fused RAVEN kernel (no grid: everything resident in VMEM).
# Sequence inputs are time-major flattened: (T*B, D), B padded to 8 sublanes.
# -----------------------------------------------------------------------------
def _raven_kernel(T, B,
                  text_ref, av_ref,
                  wih_av_ref, whh_av_ref, b_av_ref,
                  w_gate_ref, wt_ref, bt_ref, bh_ref,
                  wih_l_ref, whh_l_ref, b_l_ref,
                  w1_ref, b1_ref, w2_ref, b2_ref, w3_ref, b3_ref,
                  out_ref):
    f32 = jnp.float32
    bf16 = jnp.bfloat16
    Dt = text_ref.shape[1]

    text = text_ref[...]

    # ---- hoisted prologue (single batched matmuls, off the serial path) -----
    # combined audio|video input projection into the fused-LSTM gate layout
    xp_av = jnp.dot(av_ref[...], wih_av_ref[...],
                    preferred_element_type=f32) + b_av_ref[...]
    # text half of both gating pre-activations: [text@wa_t + ba | text@wv_t + bv]
    txt_g = jnp.dot(text.astype(bf16), wt_ref[...],
                    preferred_element_type=f32) + bt_ref[...]
    # text L2 norm, once for all T*B rows
    txt_norm = jnp.sqrt(jnp.sum(text * text, axis=-1, keepdims=True))

    whh_av = whh_av_ref[...]
    w_gate = w_gate_ref[...]
    bh = bh_ref[...]
    wih_l = wih_l_ref[...]
    whh_l = whh_l_ref[...]
    b_l = b_l_ref[...]

    Hc = whh_av.shape[0]        # fused audio+video hidden (Ha + Hv)
    Hl = whh_l.shape[0]         # padded main-LSTM hidden (multiple of 128)

    h_av = jnp.zeros((B, Hc), f32)
    c_av = jnp.zeros((B, Hc), f32)
    h_l = jnp.zeros((B, Hl), f32)
    c_l = jnp.zeros((B, Hl), f32)

    # ---- single unrolled time loop: fused av-LSTM + gating + main LSTM ------
    for t in range(T):
        rows = slice(t * B, (t + 1) * B)      # 8-sublane aligned (B padded)

        # one block-diagonal LSTM step advances both audio and video states
        h_av, c_av = _lstm_cell(xp_av[rows], h_av, c_av, whh_av)

        # one fused gating matmul: [h_a@wa_a | h_v@wv_v | h_a@wa2 | h_v@wv2]
        g_all = jnp.dot(h_av.astype(bf16), w_gate, preferred_element_type=f32)
        w_gates = jax.nn.sigmoid(g_all[:, :2 * Dt] + txt_g[rows])   # [wa | wv]
        hm = (w_gates[:, :Dt] * g_all[:, 2 * Dt:3 * Dt] + bh
              + w_gates[:, Dt:2 * Dt] * g_all[:, 3 * Dt:])
        aa = jnp.minimum(
            txt_norm[rows] * lax.rsqrt(jnp.sum(hm * hm, axis=-1, keepdims=True)),
            1.0)
        em_t = text[rows] + aa * hm

        # interleaved main-LSTM step (consumes em_t immediately; no em scratch)
        xp_l = jnp.dot(em_t.astype(bf16), wih_l,
                       preferred_element_type=f32) + b_l
        h_l, c_l = _lstm_cell(xp_l, h_l, c_l, whh_l)

    # ---- post-fusion MLP -----------------------------------------------------
    # TODO(synk): nn.Dropout is treated as identity (eval-mode forward).
    y1 = jax.nn.relu(jnp.dot(h_l, w1_ref[...], preferred_element_type=jnp.float32)
                     + b1_ref[...])
    y2 = jax.nn.relu(jnp.dot(y1, w2_ref[...], preferred_element_type=jnp.float32)
                     + b2_ref[...])
    out_ref[...] = (jnp.dot(y2, w3_ref[...], preferred_element_type=jnp.float32)
                    + b3_ref[...]).astype(out_ref.dtype)


# -----------------------------------------------------------------------------
# Wrapper: builds the fused block weights, pads, flattens, launches the kernel.
# -----------------------------------------------------------------------------
def _round_up(x, m):
    return (x + m - 1) // m * m


def _place_gates(w, h, h_cat, off):
    """Embed a [i|f|o|g] gate matrix (..., 4h) into (..., 4*h_cat), placing each
    gate block at column offset `off`; remaining columns are zero."""
    lead = w.shape[:-1]
    w4 = w.reshape(lead + (4, h))
    out = jnp.zeros(lead + (4, h_cat), w.dtype)
    out = out.at[..., off:off + h].set(w4)
    return out.reshape(lead + (4 * h_cat,))


@jax.jit
def raven_forward(text, audio, video, params):
    """text/audio/video: (B, T, D) batch-first f32. Returns (B, label_dim)."""
    B, T, Dt = text.shape
    label_dim = params["w3"].shape[1]
    bf16 = jnp.bfloat16

    wih_a, whh_a, b_a = params["lstm_a"]
    wih_v, whh_v, b_v = params["lstm_v"]
    Ha = whh_a.shape[0]
    Hv = whh_v.shape[0]
    Hc = Ha + Hv

    # ---- fused audio+video LSTM weights (combined gate layout) --------------
    wih_av = jnp.concatenate(
        [_place_gates(wih_a, Ha, Hc, 0), _place_gates(wih_v, Hv, Hc, Ha)], axis=0)
    whh_av = jnp.concatenate(
        [_place_gates(whh_a, Ha, Hc, 0), _place_gates(whh_v, Hv, Hc, Ha)], axis=0)
    b_av = _place_gates(b_a, Ha, Hc, 0) + _place_gates(b_v, Hv, Hc, Ha)

    # ---- fused gating block weight: h_cat @ w_gate = [wa_pre|wv_pre|a2|v2] --
    w_gate = jnp.zeros((Hc, 4 * Dt), jnp.float32)
    w_gate = w_gate.at[:Ha, 0:Dt].set(params["wa_a"])
    w_gate = w_gate.at[Ha:, Dt:2 * Dt].set(params["wv_v"])
    w_gate = w_gate.at[:Ha, 2 * Dt:3 * Dt].set(params["wa2"])
    w_gate = w_gate.at[Ha:, 3 * Dt:].set(params["wv2"])
    wt_cat = jnp.concatenate([params["wa_t"], params["wv_t"]], axis=1)
    bt_cat = jnp.concatenate([params["ba"], params["bv"]], axis=1)

    # ---- main LSTM: pad hidden 100 -> 128 for lane-aligned gate slices ------
    wih_l, whh_l, b_l = params["lstm_l"]
    Hl = whh_l.shape[0]
    Hlp = _round_up(Hl, 128)
    wih_l_p = _place_gates(wih_l, Hl, Hlp, 0)
    whh_l_p = jnp.pad(_place_gates(whh_l, Hl, Hlp, 0), ((0, Hlp - Hl), (0, 0)))
    b_l_p = _place_gates(b_l, Hl, Hlp, 0)
    w1_p = jnp.pad(params["w1"], ((0, Hlp - Hl), (0, 0)))

    # ---- pad batch to an 8-sublane multiple, flatten time-major -------------
    Bp = _round_up(B, 8)

    def pad_b(x):
        return jnp.pad(x, ((0, Bp - B), (0, 0), (0, 0)))

    def tm_flat(x):  # (Bp, T, D) -> time-major flattened (T*Bp, D)
        return jnp.swapaxes(x, 0, 1).reshape(T * Bp, x.shape[-1])

    text_p = tm_flat(pad_b(text))
    av_p = tm_flat(pad_b(jnp.concatenate([audio, video], axis=-1))).astype(bf16)

    operands = (
        text_p, av_p,
        wih_av.astype(bf16), whh_av.astype(bf16), b_av,
        w_gate.astype(bf16), wt_cat.astype(bf16), bt_cat, params["bh"],
        wih_l_p.astype(bf16), whh_l_p.astype(bf16), b_l_p,
        w1_p, params["b1"], params["w2"], params["b2"],
        params["w3"], params["b3"],
    )

    out = pl.pallas_call(
        functools.partial(_raven_kernel, T, Bp),
        out_shape=jax.ShapeDtypeStruct((Bp, label_dim), jnp.float32),
    )(*operands)
    return out[:B]


# -----------------------------------------------------------------------------
# Pure-JAX reference (correctness check, all f32).
# -----------------------------------------------------------------------------
def _lstm_ref(x, wih, whh, b):
    B = x.shape[0]
    H = whh.shape[0]
    h0 = jnp.zeros((B, H), jnp.float32)
    c0 = jnp.zeros((B, H), jnp.float32)

    def step(carry, xt):
        h, c = carry
        h, c = _lstm_cell(xt @ wih + b, h, c, whh)
        return (h, c), h

    (h, _), hs = jax.lax.scan(step, (h0, c0), jnp.swapaxes(x, 0, 1))
    return jnp.swapaxes(hs, 0, 1), h      # (B, T, H) sequence, final hidden


def raven_reference(text, audio, video, params):
    ac_seq, _ = _lstm_ref(audio, *params["lstm_a"])
    vi_seq, _ = _lstm_ref(video, *params["lstm_v"])
    w_a = jax.nn.sigmoid(ac_seq @ params["wa_a"] + text @ params["wa_t"] + params["ba"])
    w_v = jax.nn.sigmoid(vi_seq @ params["wv_v"] + text @ params["wv_t"] + params["bv"])
    hm = (w_a * (ac_seq @ params["wa2"]) + params["bh"]
          + w_v * (vi_seq @ params["wv2"]))
    aa = (jnp.sqrt(jnp.sum(text * text, axis=-1, keepdims=True))
          / jnp.sqrt(jnp.sum(hm * hm, axis=-1, keepdims=True)))
    aa = jnp.minimum(aa, 1.0)
    em = text + aa * hm
    _, h_l = _lstm_ref(em, *params["lstm_l"])
    y1 = jax.nn.relu(h_l @ params["w1"] + params["b1"])
    y2 = jax.nn.relu(y1 @ params["w2"] + params["b2"])
    return y2 @ params["w3"] + params["b3"]


# -----------------------------------------------------------------------------
# Deterministic parameter init (PyTorch-style uniform for LSTMs, xavier-ish for
# the fusion weights).  LSTM weights are stored transposed: (D_in, 4H), (H, 4H),
# combined bias (1, 4H); gate order [i | f | o | g].
# -----------------------------------------------------------------------------
def init_params(key, *, t_in, a_in, v_in, hidden_a, hidden_v, hidden_l,
                post_fusion_dim, label_dim):
    keys = iter(jax.random.split(key, 32))

    def uniform(shape, k):
        return jax.random.uniform(next(keys), shape, jnp.float32, -k, k)

    def lstm(d_in, h):
        k = 1.0 / float(h) ** 0.5
        return (uniform((d_in, 4 * h), k),
                uniform((h, 4 * h), k),
                uniform((1, 4 * h), k))

    def xavier(shape):
        k = (2.0 / (shape[0] + shape[1])) ** 0.5
        return k * jax.random.normal(next(keys), shape, jnp.float32)

    pfd = post_fusion_dim
    return {
        "lstm_a": lstm(a_in, hidden_a),
        "lstm_v": lstm(v_in, hidden_v),
        "lstm_l": lstm(t_in, hidden_l),
        "wa_a": xavier((hidden_a, t_in)),  # rows of Wa for the acoustic half
        "wa_t": xavier((t_in, t_in)),      # rows of Wa for the text half
        "ba": uniform((1, t_in), 0.1),
        "wv_v": xavier((hidden_v, t_in)),
        "wv_t": xavier((t_in, t_in)),
        "bv": uniform((1, t_in), 0.1),
        "wa2": xavier((hidden_a, t_in)),
        "wv2": xavier((hidden_v, t_in)),
        "bh": uniform((1, t_in), 0.1),
        "w1": xavier((hidden_l, pfd)), "b1": uniform((1, pfd), 0.1),
        "w2": xavier((pfd, pfd)),      "b2": uniform((1, pfd), 0.1),
        "w3": xavier((pfd, label_dim)), "b3": uniform((1, label_dim), 0.1),
    }


if __name__ == "__main__":
    B, T = 2, 8
    t_in, a_in, v_in = 16, 8, 12
    hidden_a, hidden_v = 16, 16
    hidden_l = 100          # fixed by the PyTorch module (nn.LSTM hidden_size=100)
    post_fusion_dim = 32
    label_dim = 4

    key = jax.random.PRNGKey(0)
    k_t, k_a, k_v, k_p = jax.random.split(key, 4)
    text = jax.random.normal(k_t, (B, T, t_in), jnp.float32)
    audio = jax.random.normal(k_a, (B, T, a_in), jnp.float32)
    video = jax.random.normal(k_v, (B, T, v_in), jnp.float32)
    params = init_params(k_p, t_in=t_in, a_in=a_in, v_in=v_in,
                         hidden_a=hidden_a, hidden_v=hidden_v, hidden_l=hidden_l,
                         post_fusion_dim=post_fusion_dim, label_dim=label_dim)

    out = raven_forward(text, audio, video, params)
    out = jax.block_until_ready(out)

    ref = raven_reference(text, audio, video, params)
    assert out.shape == (B, label_dim)
    err = float(jnp.max(jnp.abs(out - ref)))
    # bf16 matmul operands in the kernel -> relaxed tolerance vs the f32 reference.
    assert jnp.allclose(out, ref, atol=3e-2, rtol=3e-2), f"mismatch: max abs err {err}"

    print("KERNEL_OK")
</pallas_src>

<mosaic_0001>
module attributes {stable_mosaic.version = 11 : i64} {
  func.func @_raven_kernel(%arg0: memref<64x16xf32, #tpu.memory_space<vmem>>, %arg1: memref<64x20xbf16, #tpu.memory_space<vmem>>, %arg2: memref<20x128xbf16, #tpu.memory_space<vmem>>, %arg3: memref<32x128xbf16, #tpu.memory_space<vmem>>, %arg4: memref<1x128xf32, #tpu.memory_space<vmem>>, %arg5: memref<32x64xbf16, #tpu.memory_space<vmem>>, %arg6: memref<16x32xbf16, #tpu.memory_space<vmem>>, %arg7: memref<1x32xf32, #tpu.memory_space<vmem>>, %arg8: memref<1x16xf32, #tpu.memory_space<vmem>>, %arg9: memref<16x512xbf16, #tpu.memory_space<vmem>>, %arg10: memref<128x512xbf16, #tpu.memory_space<vmem>>, %arg11: memref<1x512xf32, #tpu.memory_space<vmem>>, %arg12: memref<128x32xf32, #tpu.memory_space<vmem>>, %arg13: memref<1x32xf32, #tpu.memory_space<vmem>>, %arg14: memref<32x32xf32, #tpu.memory_space<vmem>>, %arg15: memref<1x32xf32, #tpu.memory_space<vmem>>, %arg16: memref<32x4xf32, #tpu.memory_space<vmem>>, %arg17: memref<1x4xf32, #tpu.memory_space<vmem>>, %arg18: memref<8x4xf32, #tpu.memory_space<vmem>>) attributes {dimension_semantics = [], scalar_prefetch = 0 : i64, scratch_operands = 0 : i64, tpu.core_type = #tpu.core_type<tc>} {
    %c0 = arith.constant 0 : index
    %c0_0 = arith.constant 0 : index
    %0 = vector.load %arg0[%c0, %c0_0] : memref<64x16xf32, #tpu.memory_space<vmem>>, vector<64x16xf32>
    %c0_1 = arith.constant 0 : index
    %c0_2 = arith.constant 0 : index
    %1 = vector.load %arg1[%c0_1, %c0_2] : memref<64x20xbf16, #tpu.memory_space<vmem>>, vector<64x20xbf16>
    %c0_3 = arith.constant 0 : index
    %c0_4 = arith.constant 0 : index
    %2 = vector.load %arg2[%c0_3, %c0_4] : memref<20x128xbf16, #tpu.memory_space<vmem>>, vector<20x128xbf16>
    %cst = arith.constant dense<0.000000e+00> : vector<64x128xf32>
    %3 = tpu.matmul %1, %2, %cst {dimension_numbers = #tpu.dot_dimension_numbers<[1], [0], [0], [1], [0, 0, 1, 1], [], []>} : vector<64x20xbf16>, vector<20x128xbf16>, vector<64x128xf32> -> vector<64x128xf32>
    %c0_5 = arith.constant 0 : index
    %c0_6 = arith.constant 0 : index
    %4 = vector.load %arg4[%c0_5, %c0_6] : memref<1x128xf32, #tpu.memory_space<vmem>>, vector<1x128xf32>
    %5 = vector.broadcast %4 : vector<1x128xf32> to vector<64x128xf32>
    %6 = arith.addf %3, %5 : vector<64x128xf32>
    %7 = arith.truncf %0 : vector<64x16xf32> to vector<64x16xbf16>
    %c0_7 = arith.constant 0 : index
    %c0_8 = arith.constant 0 : index
    %8 = vector.load %arg6[%c0_7, %c0_8] : memref<16x32xbf16, #tpu.memory_space<vmem>>, vector<16x32xbf16>
    %cst_9 = arith.constant dense<0.000000e+00> : vector<64x32xf32>
    %9 = tpu.matmul %7, %8, %cst_9 {dimension_numbers = #tpu.dot_dimension_numbers<[1], [0], [0], [1], [0, 0, 1, 1], [], []>} : vector<64x16xbf16>, vector<16x32xbf16>, vector<64x32xf32> -> vector<64x32xf32>
    %c0_10 = arith.constant 0 : index
    %c0_11 = arith.constant 0 : index
    %10 = vector.load %arg7[%c0_10, %c0_11] : memref<1x32xf32, #tpu.memory_space<vmem>>, vector<1x32xf32>
    %11 = vector.broadcast %10 : vector<1x32xf32> to vector<64x32xf32>
    %12 = arith.addf %9, %11 : vector<64x32xf32>
    %13 = arith.mulf %0, %0 : vector<64x16xf32>
    %cst_12 = arith.constant dense<0.000000e+00> : vector<64xf32>
    %14 = vector.multi_reduction <add>, %13, %cst_12 [1] : vector<64x16xf32> to vector<64xf32>
    %15 = vector.shape_cast %14 : vector<64xf32> to vector<64x1xf32>
    %16 = math.sqrt %15 : vector<64x1xf32>
    %c0_13 = arith.constant 0 : index
    %c0_14 = arith.constant 0 : index
    %17 = vector.load %arg3[%c0_13, %c0_14] : memref<32x128xbf16, #tpu.memory_space<vmem>>, vector<32x128xbf16>
    %c0_15 = arith.constant 0 : index
    %c0_16 = arith.constant 0 : index
    %18 = vector.load %arg5[%c0_15, %c0_16] : memref<32x64xbf16, #tpu.memory_space<vmem>>, vector<32x64xbf16>
    %c0_17 = arith.constant 0 : index
    %c0_18 = arith.constant 0 : index
    %19 = vector.load %arg8[%c0_17, %c0_18] : memref<1x16xf32, #tpu.memory_space<vmem>>, vector<1x16xf32>
    %c0_19 = arith.constant 0 : index
    %c0_20 = arith.constant 0 : index
    %20 = vector.load %arg9[%c0_19, %c0_20] : memref<16x512xbf16, #tpu.memory_space<vmem>>, vector<16x512xbf16>
    %c0_21 = arith.constant 0 : index
    %c0_22 = arith.constant 0 : index
    %21 = vector.load %arg10[%c0_21, %c0_22] : memref<128x512xbf16, #tpu.memory_space<vmem>>, vector<128x512xbf16>
    %c0_23 = arith.constant 0 : index
    %c0_24 = arith.constant 0 : index
    %22 = vector.load %arg11[%c0_23, %c0_24] : memref<1x512xf32, #tpu.memory_space<vmem>>, vector<1x512xf32>
    %cst_25 = arith.constant 0.000000e+00 : f32
    %23 = vector.broadcast %cst_25 : f32 to vector<8x32xf32>
    %cst_26 = arith.constant 0.000000e+00 : f32
    %24 = vector.broadcast %cst_26 : f32 to vector<8x32xf32>
    %cst_27 = arith.constant 0.000000e+00 : f32
    %25 = vector.broadcast %cst_27 : f32 to vector<8x128xf32>
    %cst_28 = arith.constant 0.000000e+00 : f32
    %26 = vector.broadcast %cst_28 : f32 to vector<8x128xf32>
    %27 = vector.extract_strided_slice %6 {offsets = [0, 0], sizes = [8, 128], strides = [1, 1]} : vector<64x128xf32> to vector<8x128xf32>
    %28 = arith.truncf %23 : vector<8x32xf32> to vector<8x32xbf16>
    %cst_29 = arith.constant dense<0.000000e+00> : vector<8x128xf32>
    %29 = tpu.matmul %28, %17, %cst_29 {dimension_numbers = #tpu.dot_dimension_numbers<[1], [0], [0], [1], [0, 0, 1, 1], [], []>} : vector<8x32xbf16>, vector<32x128xbf16>, vector<8x128xf32> -> vector<8x128xf32>
    %30 = arith.addf %27, %29 : vector<8x128xf32>
    %31 = vector.extract_strided_slice %30 {offsets = [0, 0], sizes = [8, 96], strides = [1, 1]} : vector<8x128xf32> to vector<8x96xf32>
    %32 = arith.negf %31 : vector<8x96xf32>
    %33 = math.exp %32 : vector<8x96xf32>
    %cst_30 = arith.constant 1.000000e+00 : f32
    %34 = vector.broadcast %cst_30 : f32 to vector<8x96xf32>
    %35 = arith.addf %34, %33 : vector<8x96xf32>
    %36 = arith.divf %34, %35 : vector<8x96xf32>
    %37 = vector.extract_strided_slice %30 {offsets = [0, 96], sizes = [8, 32], strides = [1, 1]} : vector<8x128xf32> to vector<8x32xf32>
    %38 = math.tanh %37 : vector<8x32xf32>
    %39 = vector.extract_strided_slice %36 {offsets = [0, 32], sizes = [8, 32], strides = [1, 1]} : vector<8x96xf32> to vector<8x32xf32>
    %40 = arith.mulf %39, %24 : vector<8x32xf32>
    %41 = vector.extract_strided_slice %36 {offsets = [0, 0], sizes = [8, 32], strides = [1, 1]} : vector<8x96xf32> to vector<8x32xf32>
    %42 = arith.mulf %41, %38 : vector<8x32xf32>
    %43 = arith.addf %40, %42 : vector<8x32xf32>
    %44 = vector.extract_strided_slice %36 {offsets = [0, 64], sizes = [8, 32], strides = [1, 1]} : vector<8x96xf32> to vector<8x32xf32>
    %45 = math.tanh %43 : vector<8x32xf32>
    %46 = arith.mulf %44, %45 : vector<8x32xf32>
    %47 = arith.truncf %46 : vector<8x32xf32> to vector<8x32xbf16>
    %cst_31 = arith.constant dense<0.000000e+00> : vector<8x64xf32>
    %48 = tpu.matmul %47, %18, %cst_31 {dimension_numbers = #tpu.dot_dimension_numbers<[1], [0], [0], [1], [0, 0, 1, 1], [], []>} : vector<8x32xbf16>, vector<32x64xbf16>, vector<8x64xf32> -> vector<8x64xf32>
    %49 = vector.extract_strided_slice %48 {offsets = [0, 0], sizes = [8, 32], strides = [1, 1]} : vector<8x64xf32> to vector<8x32xf32>
    %50 = vector.extract_strided_slice %12 {offsets = [0, 0], sizes = [8, 32], strides = [1, 1]} : vector<64x32xf32> to vector<8x32xf32>
    %51 = arith.addf %49, %50 : vector<8x32xf32>
    %52 = arith.negf %51 : vector<8x32xf32>
    %53 = math.exp %52 : vector<8x32xf32>
    %cst_32 = arith.constant 1.000000e+00 : f32
    %54 = vector.broadcast %cst_32 : f32 to vector<8x32xf32>
    %55 = arith.addf %54, %53 : vector<8x32xf32>
    %56 = arith.divf %54, %55 : vector<8x32xf32>
    %57 = vector.extract_strided_slice %56 {offsets = [0, 0], sizes = [8, 16], strides = [1, 1]} : vector<8x32xf32> to vector<8x16xf32>
    %58 = vector.extract_strided_slice %48 {offsets = [0, 32], sizes = [8, 16], strides = [1, 1]} : vector<8x64xf32> to vector<8x16xf32>
    %59 = arith.mulf %57, %58 : vector<8x16xf32>
    %60 = vector.broadcast %19 : vector<1x16xf32> to vector<8x16xf32>
    %61 = arith.addf %59, %60 : vector<8x16xf32>
    %62 = vector.extract_strided_slice %56 {offsets = [0, 16], sizes = [8, 16], strides = [1, 1]} : vector<8x32xf32> to vector<8x16xf32>
    %63 = vector.extract_strided_slice %48 {offsets = [0, 48], sizes = [8, 16], strides = [1, 1]} : vector<8x64xf32> to vector<8x16xf32>
    %64 = arith.mulf %62, %63 : vector<8x16xf32>
    %65 = arith.addf %61, %64 : vector<8x16xf32>
    %66 = vector.extract_strided_slice %16 {offsets = [0, 0], sizes = [8, 1], strides = [1, 1]} : vector<64x1xf32> to vector<8x1xf32>
    %67 = arith.mulf %65, %65 : vector<8x16xf32>
    %cst_33 = arith.constant dense<0.000000e+00> : vector<8xf32>
    %68 = vector.multi_reduction <add>, %67, %cst_33 [1] : vector<8x16xf32> to vector<8xf32>
    %69 = vector.shape_cast %68 : vector<8xf32> to vector<8x1xf32>
    %70 = math.rsqrt %69 : vector<8x1xf32>
    %71 = arith.mulf %66, %70 : vector<8x1xf32>
    %cst_34 = arith.constant 1.000000e+00 : f32
    %72 = vector.broadcast %cst_34 : f32 to vector<8x1xf32>
    %73 = arith.minimumf %71, %72 : vector<8x1xf32>
    %74 = vector.extract_strided_slice %0 {offsets = [0, 0], sizes = [8, 16], strides = [1, 1]} : vector<64x16xf32> to vector<8x16xf32>
    %75 = vector.broadcast %73 : vector<8x1xf32> to vector<8x16xf32>
    %76 = arith.mulf %75, %65 : vector<8x16xf32>
    %77 = arith.addf %74, %76 : vector<8x16xf32>
    %78 = arith.truncf %77 : vector<8x16xf32> to vector<8x16xbf16>
    %cst_35 = arith.constant dense<0.000000e+00> : vector<8x512xf32>
    %79 = tpu.matmul %78, %20, %cst_35 {dimension_numbers = #tpu.dot_dimension_numbers<[1], [0], [0], [1], [0, 0, 1, 1], [], []>} : vector<8x16xbf16>, vector<16x512xbf16>, vector<8x512xf32> -> vector<8x512xf32>
    %80 = vector.broadcast %22 : vector<1x512xf32> to vector<8x512xf32>
    %81 = arith.addf %79, %80 : vector<8x512xf32>
    %82 = arith.truncf %25 : vector<8x128xf32> to vector<8x128xbf16>
    %cst_36 = arith.constant dense<0.000000e+00> : vector<8x512xf32>
    %83 = tpu.matmul %82, %21, %cst_36 {dimension_numbers = #tpu.dot_dimension_numbers<[1], [0], [0], [1], [0, 0, 1, 1], [], []>} : vector<8x128xbf16>, vector<128x512xbf16>, vector<8x512xf32> -> vector<8x512xf32>
    %84 = arith.addf %81, %83 : vector<8x512xf32>
    %85 = vector.extract_strided_slice %84 {offsets = [0, 0], sizes = [8, 384], strides = [1, 1]} : vector<8x512xf32> to vector<8x384xf32>
    %86 = arith.negf %85 : vector<8x384xf32>
    %87 = math.exp %86 : vector<8x384xf32>
    %cst_37 = arith.constant 1.000000e+00 : f32
    %88 = vector.broadcast %cst_37 : f32 to vector<8x384xf32>
    %89 = arith.addf %88, %87 : vector<8x384xf32>
    %90 = arith.divf %88, %89 : vector<8x384xf32>
    %91 = vector.extract_strided_slice %84 {offsets = [0, 384], sizes = [8, 128], strides = [1, 1]} : vector<8x512xf32> to vector<8x128xf32>
    %92 = math.tanh %91 : vector<8x128xf32>
    %93 = vector.extract_strided_slice %90 {offsets = [0, 128], sizes = [8, 128], strides = [1, 1]} : vector<8x384xf32> to vector<8x128xf32>
    %94 = arith.mulf %93, %26 : vector<8x128xf32>
    %95 = vector.extract_strided_slice %90 {offsets = [0, 0], sizes = [8, 128], strides = [1, 1]} : vector<8x384xf32> to vector<8x128xf32>
    %96 = arith.mulf %95, %92 : vector<8x128xf32>
    %97 = arith.addf %94, %96 : vector<8x128xf32>
    %98 = vector.extract_strided_slice %90 {offsets = [0, 256], sizes = [8, 128], strides = [1, 1]} : vector<8x384xf32> to vector<8x128xf32>
    %99 = math.tanh %97 : vector<8x128xf32>
    %100 = arith.mulf %98, %99 : vector<8x128xf32>
    %101 = vector.extract_strided_slice %6 {offsets = [8, 0], sizes = [8, 128], strides = [1, 1]} : vector<64x128xf32> to vector<8x128xf32>
    %102 = arith.truncf %46 : vector<8x32xf32> to vector<8x32xbf16>
    %cst_38 = arith.constant dense<0.000000e+00> : vector<8x128xf32>
    %103 = tpu.matmul %102, %17, %cst_38 {dimension_numbers = #tpu.dot_dimension_numbers<[1], [0], [0], [1], [0, 0, 1, 1], [], []>} : vector<8x32xbf16>, vector<32x128xbf16>, vector<8x128xf32> -> vector<8x128xf32>
    %104 = arith.addf %101, %103 : vector<8x128xf32>
    %105 = vector.extract_strided_slice %104 {offsets = [0, 0], sizes = [8, 96], strides = [1, 1]} : vector<8x128xf32> to vector<8x96xf32>
    %106 = arith.negf %105 : vector<8x96xf32>
    %107 = math.exp %106 : vector<8x96xf32>
    %cst_39 = arith.constant 1.000000e+00 : f32
    %108 = vector.broadcast %cst_39 : f32 to vector<8x96xf32>
    %109 = arith.addf %108, %107 : vector<8x96xf32>
    %110 = arith.divf %108, %109 : vector<8x96xf32>
    %111 = vector.extract_strided_slice %104 {offsets = [0, 96], sizes = [8, 32], strides = [1, 1]} : vector<8x128xf32> to vector<8x32xf32>
    %112 = math.tanh %111 : vector<8x32xf32>
    %113 = vector.extract_strided_slice %110 {offsets = [0, 32], sizes = [8, 32], strides = [1, 1]} : vector<8x96xf32> to vector<8x32xf32>
    %114 = arith.mulf %113, %43 : vector<8x32xf32>
    %115 = vector.extract_strided_slice %110 {offsets = [0, 0], sizes = [8, 32], strides = [1, 1]} : vector<8x96xf32> to vector<8x32xf32>
    %116 = arith.mulf %115, %112 : vector<8x32xf32>
    %117 = arith.addf %114, %116 : vector<8x32xf32>
    %118 = vector.extract_strided_slice %110 {offsets = [0, 64], sizes = [8, 32], strides = [1, 1]} : vector<8x96xf32> to vector<8x32xf32>
    %119 = math.tanh %117 : vector<8x32xf32>
    %120 = arith.mulf %118, %119 : vector<8x32xf32>
    %121 = arith.truncf %120 : vector<8x32xf32> to vector<8x32xbf16>
    %cst_40 = arith.constant dense<0.000000e+00> : vector<8x64xf32>
    %122 = tpu.matmul %121, %18, %cst_40 {dimension_numbers = #tpu.dot_dimension_numbers<[1], [0], [0], [1], [0, 0, 1, 1], [], []>} : vector<8x32xbf16>, vector<32x64xbf16>, vector<8x64xf32> -> vector<8x64xf32>
    %123 = vector.extract_strided_slice %122 {offsets = [0, 0], sizes = [8, 32], strides = [1, 1]} : vector<8x64xf32> to vector<8x32xf32>
    %124 = vector.extract_strided_slice %12 {offsets = [8, 0], sizes = [8, 32], strides = [1, 1]} : vector<64x32xf32> to vector<8x32xf32>
    %125 = arith.addf %123, %124 : vector<8x32xf32>
    %126 = arith.negf %125 : vector<8x32xf32>
    %127 = math.exp %126 : vector<8x32xf32>
    %cst_41 = arith.constant 1.000000e+00 : f32
    %128 = vector.broadcast %cst_41 : f32 to vector<8x32xf32>
    %129 = arith.addf %128, %127 : vector<8x32xf32>
    %130 = arith.divf %128, %129 : vector<8x32xf32>
    %131 = vector.extract_strided_slice %130 {offsets = [0, 0], sizes = [8, 16], strides = [1, 1]} : vector<8x32xf32> to vector<8x16xf32>
    %132 = vector.extract_strided_slice %122 {offsets = [0, 32], sizes = [8, 16], strides = [1, 1]} : vector<8x64xf32> to vector<8x16xf32>
    %133 = arith.mulf %131, %132 : vector<8x16xf32>
    %134 = vector.broadcast %19 : vector<1x16xf32> to vector<8x16xf32>
    %135 = arith.addf %133, %134 : vector<8x16xf32>
    %136 = vector.extract_strided_slice %130 {offsets = [0, 16], sizes = [8, 16], strides = [1, 1]} : vector<8x32xf32> to vector<8x16xf32>
    %137 = vector.extract_strided_slice %122 {offsets = [0, 48], sizes = [8, 16], strides = [1, 1]} : vector<8x64xf32> to vector<8x16xf32>
    %138 = arith.mulf %136, %137 : vector<8x16xf32>
    %139 = arith.addf %135, %138 : vector<8x16xf32>
    %140 = vector.extract_strided_slice %16 {offsets = [8, 0], sizes = [8, 1], strides = [1, 1]} : vector<64x1xf32> to vector<8x1xf32>
    %141 = arith.mulf %139, %139 : vector<8x16xf32>
    %cst_42 = arith.constant dense<0.000000e+00> : vector<8xf32>
    %142 = vector.multi_reduction <add>, %141, %cst_42 [1] : vector<8x16xf32> to vector<8xf32>
    %143 = vector.shape_cast %142 : vector<8xf32> to vector<8x1xf32>
    %144 = math.rsqrt %143 : vector<8x1xf32>
    %145 = arith.mulf %140, %144 : vector<8x1xf32>
    %cst_43 = arith.constant 1.000000e+00 : f32
    %146 = vector.broadcast %cst_43 : f32 to vector<8x1xf32>
    %147 = arith.minimumf %145, %146 : vector<8x1xf32>
    %148 = vector.extract_strided_slice %0 {offsets = [8, 0], sizes = [8, 16], strides = [1, 1]} : vector<64x16xf32> to vector<8x16xf32>
    %149 = vector.broadcast %147 : vector<8x1xf32> to vector<8x16xf32>
    %150 = arith.mulf %149, %139 : vector<8x16xf32>
    %151 = arith.addf %148, %150 : vector<8x16xf32>
    %152 = arith.truncf %151 : vector<8x16xf32> to vector<8x16xbf16>
    %cst_44 = arith.constant dense<0.000000e+00> : vector<8x512xf32>
    %153 = tpu.matmul %152, %20, %cst_44 {dimension_numbers = #tpu.dot_dimension_numbers<[1], [0], [0], [1], [0, 0, 1, 1], [], []>} : vector<8x16xbf16>, vector<16x512xbf16>, vector<8x512xf32> -> vector<8x512xf32>
    %154 = vector.broadcast %22 : vector<1x512xf32> to vector<8x512xf32>
    %155 = arith.addf %153, %154 : vector<8x512xf32>
    %156 = arith.truncf %100 : vector<8x128xf32> to vector<8x128xbf16>
    %cst_45 = arith.constant dense<0.000000e+00> : vector<8x512xf32>
    %157 = tpu.matmul %156, %21, %cst_45 {dimension_numbers = #tpu.dot_dimension_numbers<[1], [0], [0], [1], [0, 0, 1, 1], [], []>} : vector<8x128xbf16>, vector<128x512xbf16>, vector<8x512xf32> -> vector<8x512xf32>
    %158 = arith.addf %155, %157 : vector<8x512xf32>
    %159 = vector.extract_strided_slice %158 {offsets = [0, 0], sizes = [8, 384], strides = [1, 1]} : vector<8x512xf32> to vector<8x384xf32>
    %160 = arith.negf %159 : vector<8x384xf32>
    %161 = math.exp %160 : vector<8x384xf32>
    %cst_46 = arith.constant 1.000000e+00 : f32
    %162 = vector.broadcast %cst_46 : f32 to vector<8x384xf32>
    %163 = arith.addf %162, %161 : vector<8x384xf32>
    %164 = arith.divf %162, %163 : vector<8x384xf32>
    %165 = vector.extract_strided_slice %158 {offsets = [0, 384], sizes = [8, 128], strides = [1, 1]} : vector<8x512xf32> to vector<8x128xf32>
    %166 = math.tanh %165 : vector<8x128xf32>
    %167 = vector.extract_strided_slice %164 {offsets = [0, 128], sizes = [8, 128], strides = [1, 1]} : vector<8x384xf32> to vector<8x128xf32>
    %168 = arith.mulf %167, %97 : vector<8x128xf32>
    %169 = vector.extract_strided_slice %164 {offsets = [0, 0], sizes = [8, 128], strides = [1, 1]} : vector<8x384xf32> to vector<8x128xf32>
    %170 = arith.mulf %169, %166 : vector<8x128xf32>
    %171 = arith.addf %168, %170 : vector<8x128xf32>
    %172 = vector.extract_strided_slice %164 {offsets = [0, 256], sizes = [8, 128], strides = [1, 1]} : vector<8x384xf32> to vector<8x128xf32>
    %173 = math.tanh %171 : vector<8x128xf32>
    %174 = arith.mulf %172, %173 : vector<8x128xf32>
    %175 = vector.extract_strided_slice %6 {offsets = [16, 0], sizes = [8, 128], strides = [1, 1]} : vector<64x128xf32> to vector<8x128xf32>
    %176 = arith.truncf %120 : vector<8x32xf32> to vector<8x32xbf16>
    %cst_47 = arith.constant dense<0.000000e+00> : vector<8x128xf32>
    %177 = tpu.matmul %176, %17, %cst_47 {dimension_numbers = #tpu.dot_dimension_numbers<[1], [0], [0], [1], [0, 0, 1, 1], [], []>} : vector<8x32xbf16>, vector<32x128xbf16>, vector<8x128xf32> -> vector<8x128xf32>
    %178 = arith.addf %175, %177 : vector<8x128xf32>
    %179 = vector.extract_strided_slice %178 {offsets = [0, 0], sizes = [8, 96], strides = [1, 1]} : vector<8x128xf32> to vector<8x96xf32>
    %180 = arith.negf %179 : vector<8x96xf32>
    %181 = math.exp %180 : vector<8x96xf32>
    %cst_48 = arith.constant 1.000000e+00 : f32
    %182 = vector.broadcast %cst_48 : f32 to vector<8x96xf32>
    %183 = arith.addf %182, %181 : vector<8x96xf32>
    %184 = arith.divf %182, %183 : vector<8x96xf32>
    %185 = vector.extract_strided_slice %178 {offsets = [0, 96], sizes = [8, 32], strides = [1, 1]} : vector<8x128xf32> to vector<8x32xf32>
    %186 = math.tanh %185 : vector<8x32xf32>
    %187 = vector.extract_strided_slice %184 {offsets = [0, 32], sizes = [8, 32], strides = [1, 1]} : vector<8x96xf32> to vector<8x32xf32>
    %188 = arith.mulf %187, %117 : vector<8x32xf32>
    %189 = vector.extract_strided_slice %184 {offsets = [0, 0], sizes = [8, 32], strides = [1, 1]} : vector<8x96xf32> to vector<8x32xf32>
    %190 = arith.mulf %189, %186 : vector<8x32xf32>
    %191 = arith.addf %188, %190 : vector<8x32xf32>
    %192 = vector.extract_strided_slice %184 {offsets = [0, 64], sizes = [8, 32], strides = [1, 1]} : vector<8x96xf32> to vector<8x32xf32>
    %193 = math.tanh %191 : vector<8x32xf32>
    %194 = arith.mulf %192, %193 : vector<8x32xf32>
    %195 = arith.truncf %194 : vector<8x32xf32> to vector<8x32xbf16>
    %cst_49 = arith.constant dense<0.000000e+00> : vector<8x64xf32>
    %196 = tpu.matmul %195, %18, %cst_49 {dimension_numbers = #tpu.dot_dimension_numbers<[1], [0], [0], [1], [0, 0, 1, 1], [], []>} : vector<8x32xbf16>, vector<32x64xbf16>, vector<8x64xf32> -> vector<8x64xf32>
    %197 = vector.extract_strided_slice %196 {offsets = [0, 0], sizes = [8, 32], strides = [1, 1]} : vector<8x64xf32> to vector<8x32xf32>
    %198 = vector.extract_strided_slice %12 {offsets = [16, 0], sizes = [8, 32], strides = [1, 1]} : vector<64x32xf32> to vector<8x32xf32>
    %199 = arith.addf %197, %198 : vector<8x32xf32>
    %200 = arith.negf %199 : vector<8x32xf32>
    %201 = math.exp %200 : vector<8x32xf32>
    %cst_50 = arith.constant 1.000000e+00 : f32
    %202 = vector.broadcast %cst_50 : f32 to vector<8x32xf32>
    %203 = arith.addf %202, %201 : vector<8x32xf32>
    %204 = arith.divf %202, %203 : vector<8x32xf32>
    %205 = vector.extract_strided_slice %204 {offsets = [0, 0], sizes = [8, 16], strides = [1, 1]} : vector<8x32xf32> to vector<8x16xf32>
    %206 = vector.extract_strided_slice %196 {offsets = [0, 32], sizes = [8, 16], strides = [1, 1]} : vector<8x64xf32> to vector<8x16xf32>
    %207 = arith.mulf %205, %206 : vector<8x16xf32>
    %208 = vector.broadcast %19 : vector<1x16xf32> to vector<8x16xf32>
    %209 = arith.addf %207, %208 : vector<8x16xf32>
    %210 = vector.extract_strided_slice %204 {offsets = [0, 16], sizes = [8, 16], strides = [1, 1]} : vector<8x32xf32> to vector<8x16xf32>
    %211 = vector.extract_strided_slice %196 {offsets = [0, 48], sizes = [8, 16], strides = [1, 1]} : vector<8x64xf32> to vector<8x16xf32>
    %212 = arith.mulf %210, %211 : vector<8x16xf32>
    %213 = arith.addf %209, %212 : vector<8x16xf32>
    %214 = vector.extract_strided_slice %16 {offsets = [16, 0], sizes = [8, 1], strides = [1, 1]} : vector<64x1xf32> to vector<8x1xf32>
    %215 = arith.mulf %213, %213 : vector<8x16xf32>
    %cst_51 = arith.constant dense<0.000000e+00> : vector<8xf32>
    %216 = vector.multi_reduction <add>, %215, %cst_51 [1] : vector<8x16xf32> to vector<8xf32>
    %217 = vector.shape_cast %216 : vector<8xf32> to vector<8x1xf32>
    %218 = math.rsqrt %217 : vector<8x1xf32>
    %219 = arith.mulf %214, %218 : vector<8x1xf32>
    %cst_52 = arith.constant 1.000000e+00 : f32
    %220 = vector.broadcast %cst_52 : f32 to vector<8x1xf32>
    %221 = arith.minimumf %219, %220 : vector<8x1xf32>
    %222 = vector.extract_strided_slice %0 {offsets = [16, 0], sizes = [8, 16], strides = [1, 1]} : vector<64x16xf32> to vector<8x16xf32>
    %223 = vector.broadcast %221 : vector<8x1xf32> to vector<8x16xf32>
    %224 = arith.mulf %223, %213 : vector<8x16xf32>
    %225 = arith.addf %222, %224 : vector<8x16xf32>
    %226 = arith.truncf %225 : vector<8x16xf32> to vector<8x16xbf16>
    %cst_53 = arith.constant dense<0.000000e+00> : vector<8x512xf32>
    %227 = tpu.matmul %226, %20, %cst_53 {dimension_numbers = #tpu.dot_dimension_numbers<[1], [0], [0], [1], [0, 0, 1, 1], [], []>} : vector<8x16xbf16>, vector<16x512xbf16>, vector<8x512xf32> -> vector<8x512xf32>
    %228 = vector.broadcast %22 : vector<1x512xf32> to vector<8x512xf32>
    %229 = arith.addf %227, %228 : vector<8x512xf32>
    %230 = arith.truncf %174 : vector<8x128xf32> to vector<8x128xbf16>
    %cst_54 = arith.constant dense<0.000000e+00> : vector<8x512xf32>
    %231 = tpu.matmul %230, %21, %cst_54 {dimension_numbers = #tpu.dot_dimension_numbers<[1], [0], [0], [1], [0, 0, 1, 1], [], []>} : vector<8x128xbf16>, vector<128x512xbf16>, vector<8x512xf32> -> vector<8x512xf32>
    %232 = arith.addf %229, %231 : vector<8x512xf32>
    %233 = vector.extract_strided_slice %232 {offsets = [0, 0], sizes = [8, 384], strides = [1, 1]} : vector<8x512xf32> to vector<8x384xf32>
    %234 = arith.negf %233 : vector<8x384xf32>
    %235 = math.exp %234 : vector<8x384xf32>
    %cst_55 = arith.constant 1.000000e+00 : f32
    %236 = vector.broadcast %cst_55 : f32 to vector<8x384xf32>
    %237 = arith.addf %236, %235 : vector<8x384xf32>
    %238 = arith.divf %236, %237 : vector<8x384xf32>
    %239 = vector.extract_strided_slice %232 {offsets = [0, 384], sizes = [8, 128], strides = [1, 1]} : vector<8x512xf32> to vector<8x128xf32>
    %240 = math.tanh %239 : vector<8x128xf32>
    %241 = vector.extract_strided_slice %238 {offsets = [0, 128], sizes = [8, 128], strides = [1, 1]} : vector<8x384xf32> to vector<8x128xf32>
    %242 = arith.mulf %241, %171 : vector<8x128xf32>
    %243 = vector.extract_strided_slice %238 {offsets = [0, 0], sizes = [8, 128], strides = [1, 1]} : vector<8x384xf32> to vector<8x128xf32>
    %244 = arith.mulf %243, %240 : vector<8x128xf32>
    %245 = arith.addf %242, %244 : vector<8x128xf32>
    %246 = vector.extract_strided_slice %238 {offsets = [0, 256], sizes = [8, 128], strides = [1, 1]} : vector<8x384xf32> to vector<8x128xf32>
    %247 = math.tanh %245 : vector<8x128xf32>
    %248 = arith.mulf %246, %247 : vector<8x128xf32>
    %249 = vector.extract_strided_slice %6 {offsets = [24, 0], sizes = [8, 128], strides = [1, 1]} : vector<64x128xf32> to vector<8x128xf32>
    %250 = arith.truncf %194 : vector<8x32xf32> to vector<8x32xbf16>
    %cst_56 = arith.constant dense<0.000000e+00> : vector<8x128xf32>
    %251 = tpu.matmul %250, %17, %cst_56 {dimension_numbers = #tpu.dot_dimension_numbers<[1], [0], [0], [1], [0, 0, 1, 1], [], []>} : vector<8x32xbf16>, vector<32x128xbf16>, vector<8x128xf32> -> vector<8x128xf32>
    %252 = arith.addf %249, %251 : vector<8x128xf32>
    %253 = vector.extract_strided_slice %252 {offsets = [0, 0], sizes = [8, 96], strides = [1, 1]} : vector<8x128xf32> to vector<8x96xf32>
    %254 = arith.negf %253 : vector<8x96xf32>
    %255 = math.exp %254 : vector<8x96xf32>
    %cst_57 = arith.constant 1.000000e+00 : f32
    %256 = vector.broadcast %cst_57 : f32 to vector<8x96xf32>
    %257 = arith.addf %256, %255 : vector<8x96xf32>
    %258 = arith.divf %256, %257 : vector<8x96xf32>
    %259 = vector.extract_strided_slice %252 {offsets = [0, 96], sizes = [8, 32], strides = [1, 1]} : vector<8x128xf32> to vector<8x32xf32>
    %260 = math.tanh %259 : vector<8x32xf32>
    %261 = vector.extract_strided_slice %258 {offsets = [0, 32], sizes = [8, 32], strides = [1, 1]} : vector<8x96xf32> to vector<8x32xf32>
    %262 = arith.mulf %261, %191 : vector<8x32xf32>
    %263 = vector.extract_strided_slice %258 {offsets = [0, 0], sizes = [8, 32], strides = [1, 1]} : vector<8x96xf32> to vector<8x32xf32>
    %264 = arith.mulf %263, %260 : vector<8x32xf32>
    %265 = arith.addf %262, %264 : vector<8x32xf32>
    %266 = vector.extract_strided_slice %258 {offsets = [0, 64], sizes = [8, 32], strides = [1, 1]} : vector<8x96xf32> to vector<8x32xf32>
    %267 = math.tanh %265 : vector<8x32xf32>
    %268 = arith.mulf %266, %267 : vector<8x32xf32>
    %269 = arith.truncf %268 : vector<8x32xf32> to vector<8x32xbf16>
    %cst_58 = arith.constant dense<0.000000e+00> : vector<8x64xf32>
    %270 = tpu.matmul %269, %18, %cst_58 {dimension_numbers = #tpu.dot_dimension_numbers<[1], [0], [0], [1], [0, 0, 1, 1], [], []>} : vector<8x32xbf16>, vector<32x64xbf16>, vector<8x64xf32> -> vector<8x64xf32>
    %271 = vector.extract_strided_slice %270 {offsets = [0, 0], sizes = [8, 32], strides = [1, 1]} : vector<8x64xf32> to vector<8x32xf32>
    %272 = vector.extract_strided_slice %12 {offsets = [24, 0], sizes = [8, 32], strides = [1, 1]} : vector<64x32xf32> to vector<8x32xf32>
    %273 = arith.addf %271, %272 : vector<8x32xf32>
    %274 = arith.negf %273 : vector<8x32xf32>
    %275 = math.exp %274 : vector<8x32xf32>
    %cst_59 = arith.constant 1.000000e+00 : f32
    %276 = vector.broadcast %cst_59 : f32 to vector<8x32xf32>
    %277 = arith.addf %276, %275 : vector<8x32xf32>
    %278 = arith.divf %276, %277 : vector<8x32xf32>
    %279 = vector.extract_strided_slice %278 {offsets = [0, 0], sizes = [8, 16], strides = [1, 1]} : vector<8x32xf32> to vector<8x16xf32>
    %280 = vector.extract_strided_slice %270 {offsets = [0, 32], sizes = [8, 16], strides = [1, 1]} : vector<8x64xf32> to vector<8x16xf32>
    %281 = arith.mulf %279, %280 : vector<8x16xf32>
    %282 = vector.broadcast %19 : vector<1x16xf32> to vector<8x16xf32>
    %283 = arith.addf %281, %282 : vector<8x16xf32>
    %284 = vector.extract_strided_slice %278 {offsets = [0, 16], sizes = [8, 16], strides = [1, 1]} : vector<8x32xf32> to vector<8x16xf32>
    %285 = vector.extract_strided_slice %270 {offsets = [0, 48], sizes = [8, 16], strides = [1, 1]} : vector<8x64xf32> to vector<8x16xf32>
    %286 = arith.mulf %284, %285 : vector<8x16xf32>
    %287 = arith.addf %283, %286 : vector<8x16xf32>
    %288 = vector.extract_strided_slice %16 {offsets = [24, 0], sizes = [8, 1], strides = [1, 1]} : vector<64x1xf32> to vector<8x1xf32>
    %289 = arith.mulf %287, %287 : vector<8x16xf32>
    %cst_60 = arith.constant dense<0.000000e+00> : vector<8xf32>
    %290 = vector.multi_reduction <add>, %289, %cst_60 [1] : vector<8x16xf32> to vector<8xf32>
    %291 = vector.shape_cast %290 : vector<8xf32> to vector<8x1xf32>
    %292 = math.rsqrt %291 : vector<8x1xf32>
    %293 = arith.mulf %288, %292 : vector<8x1xf32>
    %cst_61 = arith.constant 1.000000e+00 : f32
    %294 = vector.broadcast %cst_61 : f32 to vector<8x1xf32>
    %295 = arith.minimumf %293, %294 : vector<8x1xf32>
    %296 = vector.extract_strided_slice %0 {offsets = [24, 0], sizes = [8, 16], strides = [1, 1]} : vector<64x16xf32> to vector<8x16xf32>
    %297 = vector.broadcast %295 : vector<8x1xf32> to vector<8x16xf32>
    %298 = arith.mulf %297, %287 : vector<8x16xf32>
    %299 = arith.addf %296, %298 : vector<8x16xf32>
    %300 = arith.truncf %299 : vector<8x16xf32> to vector<8x16xbf16>
    %cst_62 = arith.constant dense<0.000000e+00> : vector<8x512xf32>
    %301 = tpu.matmul %300, %20, %cst_62 {dimension_numbers = #tpu.dot_dimension_numbers<[1], [0], [0], [1], [0, 0, 1, 1], [], []>} : vector<8x16xbf16>, vector<16x512xbf16>, vector<8x512xf32> -> vector<8x512xf32>
    %302 = vector.broadcast %22 : vector<1x512xf32> to vector<8x512xf32>
    %303 = arith.addf %301, %302 : vector<8x512xf32>
    %304 = arith.truncf %248 : vector<8x128xf32> to vector<8x128xbf16>
    %cst_63 = arith.constant dense<0.000000e+00> : vector<8x512xf32>
    %305 = tpu.matmul %304, %21, %cst_63 {dimension_numbers = #tpu.dot_dimension_numbers<[1], [0], [0], [1], [0, 0, 1, 1], [], []>} : vector<8x128xbf16>, vector<128x512xbf16>, vector<8x512xf32> -> vector<8x512xf32>
    %306 = arith.addf %303, %305 : vector<8x512xf32>
    %307 = vector.extract_strided_slice %306 {offsets = [0, 0], sizes = [8, 384], strides = [1, 1]} : vector<8x512xf32> to vector<8x384xf32>
    %308 = arith.negf %307 : vector<8x384xf32>
    %309 = math.exp %308 : vector<8x384xf32>
    %cst_64 = arith.constant 1.000000e+00 : f32
    %310 = vector.broadcast %cst_64 : f32 to vector<8x384xf32>
    %311 = arith.addf %310, %309 : vector<8x384xf32>
    %312 = arith.divf %310, %311 : vector<8x384xf32>
    %313 = vector.extract_strided_slice %306 {offsets = [0, 384], sizes = [8, 128], strides = [1, 1]} : vector<8x512xf32> to vector<8x128xf32>
    %314 = math.tanh %313 : vector<8x128xf32>
    %315 = vector.extract_strided_slice %312 {offsets = [0, 128], sizes = [8, 128], strides = [1, 1]} : vector<8x384xf32> to vector<8x128xf32>
    %316 = arith.mulf %315, %245 : vector<8x128xf32>
    %317 = vector.extract_strided_slice %312 {offsets = [0, 0], sizes = [8, 128], strides = [1, 1]} : vector<8x384xf32> to vector<8x128xf32>
    %318 = arith.mulf %317, %314 : vector<8x128xf32>
    %319 = arith.addf %316, %318 : vector<8x128xf32>
    %320 = vector.extract_strided_slice %312 {offsets = [0, 256], sizes = [8, 128], strides = [1, 1]} : vector<8x384xf32> to vector<8x128xf32>
    %321 = math.tanh %319 : vector<8x128xf32>
    %322 = arith.mulf %320, %321 : vector<8x128xf32>
    %323 = vector.extract_strided_slice %6 {offsets = [32, 0], sizes = [8, 128], strides = [1, 1]} : vector<64x128xf32> to vector<8x128xf32>
    %324 = arith.truncf %268 : vector<8x32xf32> to vector<8x32xbf16>
    %cst_65 = arith.constant dense<0.000000e+00> : vector<8x128xf32>
    %325 = tpu.matmul %324, %17, %cst_65 {dimension_numbers = #tpu.dot_dimension_numbers<[1], [0], [0], [1], [0, 0, 1, 1], [], []>} : vector<8x32xbf16>, vector<32x128xbf16>, vector<8x128xf32> -> vector<8x128xf32>
    %326 = arith.addf %323, %325 : vector<8x128xf32>
    %327 = vector.extract_strided_slice %326 {offsets = [0, 0], sizes = [8, 96], strides = [1, 1]} : vector<8x128xf32> to vector<8x96xf32>
    %328 = arith.negf %327 : vector<8x96xf32>
    %329 = math.exp %328 : vector<8x96xf32>
    %cst_66 = arith.constant 1.000000e+00 : f32
    %330 = vector.broadcast %cst_66 : f32 to vector<8x96xf32>
    %331 = arith.addf %330, %329 : vector<8x96xf32>
    %332 = arith.divf %330, %331 : vector<8x96xf32>
    %333 = vector.extract_strided_slice %326 {offsets = [0, 96], sizes = [8, 32], strides = [1, 1]} : vector<8x128xf32> to vector<8x32xf32>
    %334 = math.tanh %333 : vector<8x32xf32>
    %335 = vector.extract_strided_slice %332 {offsets = [0, 32], sizes = [8, 32], strides = [1, 1]} : vector<8x96xf32> to vector<8x32xf32>
    %336 = arith.mulf %335, %265 : vector<8x32xf32>
    %337 = vector.extract_strided_slice %332 {offsets = [0, 0], sizes = [8, 32], strides = [1, 1]} : vector<8x96xf32> to vector<8x32xf32>
    %338 = arith.mulf %337, %334 : vector<8x32xf32>
    %339 = arith.addf %336, %338 : vector<8x32xf32>
    %340 = vector.extract_strided_slice %332 {offsets = [0, 64], sizes = [8, 32], strides = [1, 1]} : vector<8x96xf32> to vector<8x32xf32>
    %341 = math.tanh %339 : vector<8x32xf32>
    %342 = arith.mulf %340, %341 : vector<8x32xf32>
    %343 = arith.truncf %342 : vector<8x32xf32> to vector<8x32xbf16>
    %cst_67 = arith.constant dense<0.000000e+00> : vector<8x64xf32>
    %344 = tpu.matmul %343, %18, %cst_67 {dimension_numbers = #tpu.dot_dimension_numbers<[1], [0], [0], [1], [0, 0, 1, 1], [], []>} : vector<8x32xbf16>, vector<32x64xbf16>, vector<8x64xf32> -> vector<8x64xf32>
    %345 = vector.extract_strided_slice %344 {offsets = [0, 0], sizes = [8, 32], strides = [1, 1]} : vector<8x64xf32> to vector<8x32xf32>
    %346 = vector.extract_strided_slice %12 {offsets = [32, 0], sizes = [8, 32], strides = [1, 1]} : vector<64x32xf32> to vector<8x32xf32>
    %347 = arith.addf %345, %346 : vector<8x32xf32>
    %348 = arith.negf %347 : vector<8x32xf32>
    %349 = math.exp %348 : vector<8x32xf32>
    %cst_68 = arith.constant 1.000000e+00 : f32
    %350 = vector.broadcast %cst_68 : f32 to vector<8x32xf32>
    %351 = arith.addf %350, %349 : vector<8x32xf32>
    %352 = arith.divf %350, %351 : vector<8x32xf32>
    %353 = vector.extract_strided_slice %352 {offsets = [0, 0], sizes = [8, 16], strides = [1, 1]} : vector<8x32xf32> to vector<8x16xf32>
    %354 = vector.extract_strided_slice %344 {offsets = [0, 32], sizes = [8, 16], strides = [1, 1]} : vector<8x64xf32> to vector<8x16xf32>
    %355 = arith.mulf %353, %354 : vector<8x16xf32>
    %356 = vector.broadcast %19 : vector<1x16xf32> to vector<8x16xf32>
    %357 = arith.addf %355, %356 : vector<8x16xf32>
    %358 = vector.extract_strided_slice %352 {offsets = [0, 16], sizes = [8, 16], strides = [1, 1]} : vector<8x32xf32> to vector<8x16xf32>
    %359 = vector.extract_strided_slice %344 {offsets = [0, 48], sizes = [8, 16], strides = [1, 1]} : vector<8x64xf32> to vector<8x16xf32>
    %360 = arith.mulf %358, %359 : vector<8x16xf32>
    %361 = arith.addf %357, %360 : vector<8x16xf32>
    %362 = vector.extract_strided_slice %16 {offsets = [32, 0], sizes = [8, 1], strides = [1, 1]} : vector<64x1xf32> to vector<8x1xf32>
    %363 = arith.mulf %361, %361 : vector<8x16xf32>
    %cst_69 = arith.constant dense<0.000000e+00> : vector<8xf32>
    %364 = vector.multi_reduction <add>, %363, %cst_69 [1] : vector<8x16xf32> to vector<8xf32>
    %365 = vector.shape_cast %364 : vector<8xf32> to vector<8x1xf32>
    %366 = math.rsqrt %365 : vector<8x1xf32>
    %367 = arith.mulf %362, %366 : vector<8x1xf32>
    %cst_70 = arith.constant 1.000000e+00 : f32
    %368 = vector.broadcast %cst_70 : f32 to vector<8x1xf32>
    %369 = arith.minimumf %367, %368 : vector<8x1xf32>
    %370 = vector.extract_strided_slice %0 {offsets = [32, 0], sizes = [8, 16], strides = [1, 1]} : vector<64x16xf32> to vector<8x16xf32>
    %371 = vector.broadcast %369 : vector<8x1xf32> to vector<8x16xf32>
    %372 = arith.mulf %371, %361 : vector<8x16xf32>
    %373 = arith.addf %370, %372 : vector<8x16xf32>
    %374 = arith.truncf %373 : vector<8x16xf32> to vector<8x16xbf16>
    %cst_71 = arith.constant dense<0.000000e+00> : vector<8x512xf32>
    %375 = tpu.matmul %374, %20, %cst_71 {dimension_numbers = #tpu.dot_dimension_numbers<[1], [0], [0], [1], [0, 0, 1, 1], [], []>} : vector<8x16xbf16>, vector<16x512xbf16>, vector<8x512xf32> -> vector<8x512xf32>
    %376 = vector.broadcast %22 : vector<1x512xf32> to vector<8x512xf32>
    %377 = arith.addf %375, %376 : vector<8x512xf32>
    %378 = arith.truncf %322 : vector<8x128xf32> to vector<8x128xbf16>
    %cst_72 = arith.constant dense<0.000000e+00> : vector<8x512xf32>
    %379 = tpu.matmul %378, %21, %cst_72 {dimension_numbers = #tpu.dot_dimension_numbers<[1], [0], [0], [1], [0, 0, 1, 1], [], []>} : vector<8x128xbf16>, vector<128x512xbf16>, vector<8x512xf32> -> vector<8x512xf32>
    %380 = arith.addf %377, %379 : vector<8x512xf32>
    %381 = vector.extract_strided_slice %380 {offsets = [0, 0], sizes = [8, 384], strides = [1, 1]} : vector<8x512xf32> to vector<8x384xf32>
    %382 = arith.negf %381 : vector<8x384xf32>
    %383 = math.exp %382 : vector<8x384xf32>
    %cst_73 = arith.constant 1.000000e+00 : f32
    %384 = vector.broadcast %cst_73 : f32 to vector<8x384xf32>
    %385 = arith.addf %384, %383 : vector<8x384xf32>
    %386 = arith.divf %384, %385 : vector<8x384xf32>
    %387 = vector.extract_strided_slice %380 {offsets = [0, 384], sizes = [8, 128], strides = [1, 1]} : vector<8x512xf32> to vector<8x128xf32>
    %388 = math.tanh %387 : vector<8x128xf32>
    %389 = vector.extract_strided_slice %386 {offsets = [0, 128], sizes = [8, 128], strides = [1, 1]} : vector<8x384xf32> to vector<8x128xf32>
    %390 = arith.mulf %389, %319 : vector<8x128xf32>
    %391 = vector.extract_strided_slice %386 {offsets = [0, 0], sizes = [8, 128], strides = [1, 1]} : vector<8x384xf32> to vector<8x128xf32>
    %392 = arith.mulf %391, %388 : vector<8x128xf32>
    %393 = arith.addf %390, %392 : vector<8x128xf32>
    %394 = vector.extract_strided_slice %386 {offsets = [0, 256], sizes = [8, 128], strides = [1, 1]} : vector<8x384xf32> to vector<8x128xf32>
    %395 = math.tanh %393 : vector<8x128xf32>
    %396 = arith.mulf %394, %395 : vector<8x128xf32>
    %397 = vector.extract_strided_slice %6 {offsets = [40, 0], sizes = [8, 128], strides = [1, 1]} : vector<64x128xf32> to vector<8x128xf32>
    %398 = arith.truncf %342 : vector<8x32xf32> to vector<8x32xbf16>
    %cst_74 = arith.constant dense<0.000000e+00> : vector<8x128xf32>
    %399 = tpu.matmul %398, %17, %cst_74 {dimension_numbers = #tpu.dot_dimension_numbers<[1], [0], [0], [1], [0, 0, 1, 1], [], []>} : vector<8x32xbf16>, vector<32x128xbf16>, vector<8x128xf32> -> vector<8x128xf32>
    %400 = arith.addf %397, %399 : vector<8x128xf32>
    %401 = vector.extract_strided_slice %400 {offsets = [0, 0], sizes = [8, 96], strides = [1, 1]} : vector<8x128xf32> to vector<8x96xf32>
    %402 = arith.negf %401 : vector<8x96xf32>
    %403 = math.exp %402 : vector<8x96xf32>
    %cst_75 = arith.constant 1.000000e+00 : f32
    %404 = vector.broadcast %cst_75 : f32 to vector<8x96xf32>
    %405 = arith.addf %404, %403 : vector<8x96xf32>
    %406 = arith.divf %404, %405 : vector<8x96xf32>
    %407 = vector.extract_strided_slice %400 {offsets = [0, 96], sizes = [8, 32], strides = [1, 1]} : vector<8x128xf32> to vector<8x32xf32>
    %408 = math.tanh %407 : vector<8x32xf32>
    %409 = vector.extract_strided_slice %406 {offsets = [0, 32], sizes = [8, 32], strides = [1, 1]} : vector<8x96xf32> to vector<8x32xf32>
    %410 = arith.mulf %409, %339 : vector<8x32xf32>
    %411 = vector.extract_strided_slice %406 {offsets = [0, 0], sizes = [8, 32], strides = [1, 1]} : vector<8x96xf32> to vector<8x32xf32>
    %412 = arith.mulf %411, %408 : vector<8x32xf32>
    %413 = arith.addf %410, %412 : vector<8x32xf32>
    %414 = vector.extract_strided_slice %406 {offsets = [0, 64], sizes = [8, 32], strides = [1, 1]} : vector<8x96xf32> to vector<8x32xf32>
    %415 = math.tanh %413 : vector<8x32xf32>
    %416 = arith.mulf %414, %415 : vector<8x32xf32>
    %417 = arith.truncf %416 : vector<8x32xf32> to vector<8x32xbf16>
    %cst_76 = arith.constant dense<0.000000e+00> : vector<8x64xf32>
    %418 = tpu.matmul %417, %18, %cst_76 {dimension_numbers = #tpu.dot_dimension_numbers<[1], [0], [0], [1], [0, 0, 1, 1], [], []>} : vector<8x32xbf16>, vector<32x64xbf16>, vector<8x64xf32> -> vector<8x64xf32>
    %419 = vector.extract_strided_slice %418 {offsets = [0, 0], sizes = [8, 32], strides = [1, 1]} : vector<8x64xf32> to vector<8x32xf32>
    %420 = vector.extract_strided_slice %12 {offsets = [40, 0], sizes = [8, 32], strides = [1, 1]} : vector<64x32xf32> to vector<8x32xf32>
    %421 = arith.addf %419, %420 : vector<8x32xf32>
    %422 = arith.negf %421 : vector<8x32xf32>
    %423 = math.exp %422 : vector<8x32xf32>
    %cst_77 = arith.constant 1.000000e+00 : f32
    %424 = vector.broadcast %cst_77 : f32 to vector<8x32xf32>
    %425 = arith.addf %424, %423 : vector<8x32xf32>
    %426 = arith.divf %424, %425 : vector<8x32xf32>
    %427 = vector.extract_strided_slice %426 {offsets = [0, 0], sizes = [8, 16], strides = [1, 1]} : vector<8x32xf32> to vector<8x16xf32>
    %428 = vector.extract_strided_slice %418 {offsets = [0, 32], sizes = [8, 16], strides = [1, 1]} : vector<8x64xf32> to vector<8x16xf32>
    %429 = arith.mulf %427, %428 : vector<8x16xf32>
    %430 = vector.broadcast %19 : vector<1x16xf32> to vector<8x16xf32>
    %431 = arith.addf %429, %430 : vector<8x16xf32>
    %432 = vector.extract_strided_slice %426 {offsets = [0, 16], sizes = [8, 16], strides = [1, 1]} : vector<8x32xf32> to vector<8x16xf32>
    %433 = vector.extract_strided_slice %418 {offsets = [0, 48], sizes = [8, 16], strides = [1, 1]} : vector<8x64xf32> to vector<8x16xf32>
    %434 = arith.mulf %432, %433 : vector<8x16xf32>
    %435 = arith.addf %431, %434 : vector<8x16xf32>
    %436 = vector.extract_strided_slice %16 {offsets = [40, 0], sizes = [8, 1], strides = [1, 1]} : vector<64x1xf32> to vector<8x1xf32>
    %437 = arith.mulf %435, %435 : vector<8x16xf32>
    %cst_78 = arith.constant dense<0.000000e+00> : vector<8xf32>
    %438 = vector.multi_reduction <add>, %437, %cst_78 [1] : vector<8x16xf32> to vector<8xf32>
    %439 = vector.shape_cast %438 : vector<8xf32> to vector<8x1xf32>
    %440 = math.rsqrt %439 : vector<8x1xf32>
    %441 = arith.mulf %436, %440 : vector<8x1xf32>
    %cst_79 = arith.constant 1.000000e+00 : f32
    %442 = vector.broadcast %cst_79 : f32 to vector<8x1xf32>
    %443 = arith.minimumf %441, %442 : vector<8x1xf32>
    %444 = vector.extract_strided_slice %0 {offsets = [40, 0], sizes = [8, 16], strides = [1, 1]} : vector<64x16xf32> to vector<8x16xf32>
    %445 = vector.broadcast %443 : vector<8x1xf32> to vector<8x16xf32>
    %446 = arith.mulf %445, %435 : vector<8x16xf32>
    %447 = arith.addf %444, %446 : vector<8x16xf32>
    %448 = arith.truncf %447 : vector<8x16xf32> to vector<8x16xbf16>
    %cst_80 = arith.constant dense<0.000000e+00> : vector<8x512xf32>
    %449 = tpu.matmul %448, %20, %cst_80 {dimension_numbers = #tpu.dot_dimension_numbers<[1], [0], [0], [1], [0, 0, 1, 1], [], []>} : vector<8x16xbf16>, vector<16x512xbf16>, vector<8x512xf32> -> vector<8x512xf32>
    %450 = vector.broadcast %22 : vector<1x512xf32> to vector<8x512xf32>
    %451 = arith.addf %449, %450 : vector<8x512xf32>
    %452 = arith.truncf %396 : vector<8x128xf32> to vector<8x128xbf16>
    %cst_81 = arith.constant dense<0.000000e+00> : vector<8x512xf32>
    %453 = tpu.matmul %452, %21, %cst_81 {dimension_numbers = #tpu.dot_dimension_numbers<[1], [0], [0], [1], [0, 0, 1, 1], [], []>} : vector<8x128xbf16>, vector<128x512xbf16>, vector<8x512xf32> -> vector<8x512xf32>
    %454 = arith.addf %451, %453 : vector<8x512xf32>
    %455 = vector.extract_strided_slice %454 {offsets = [0, 0], sizes = [8, 384], strides = [1, 1]} : vector<8x512xf32> to vector<8x384xf32>
    %456 = arith.negf %455 : vector<8x384xf32>
    %457 = math.exp %456 : vector<8x384xf32>
    %cst_82 = arith.constant 1.000000e+00 : f32
    %458 = vector.broadcast %cst_82 : f32 to vector<8x384xf32>
    %459 = arith.addf %458, %457 : vector<8x384xf32>
    %460 = arith.divf %458, %459 : vector<8x384xf32>
    %461 = vector.extract_strided_slice %454 {offsets = [0, 384], sizes = [8, 128], strides = [1, 1]} : vector<8x512xf32> to vector<8x128xf32>
    %462 = math.tanh %461 : vector<8x128xf32>
    %463 = vector.extract_strided_slice %460 {offsets = [0, 128], sizes = [8, 128], strides = [1, 1]} : vector<8x384xf32> to vector<8x128xf32>
    %464 = arith.mulf %463, %393 : vector<8x128xf32>
    %465 = vector.extract_strided_slice %460 {offsets = [0, 0], sizes = [8, 128], strides = [1, 1]} : vector<8x384xf32> to vector<8x128xf32>
    %466 = arith.mulf %465, %462 : vector<8x128xf32>
    %467 = arith.addf %464, %466 : vector<8x128xf32>
    %468 = vector.extract_strided_slice %460 {offsets = [0, 256], sizes = [8, 128], strides = [1, 1]} : vector<8x384xf32> to vector<8x128xf32>
    %469 = math.tanh %467 : vector<8x128xf32>
    %470 = arith.mulf %468, %469 : vector<8x128xf32>
    %471 = vector.extract_strided_slice %6 {offsets = [48, 0], sizes = [8, 128], strides = [1, 1]} : vector<64x128xf32> to vector<8x128xf32>
    %472 = arith.truncf %416 : vector<8x32xf32> to vector<8x32xbf16>
    %cst_83 = arith.constant dense<0.000000e+00> : vector<8x128xf32>
    %473 = tpu.matmul %472, %17, %cst_83 {dimension_numbers = #tpu.dot_dimension_numbers<[1], [0], [0], [1], [0, 0, 1, 1], [], []>} : vector<8x32xbf16>, vector<32x128xbf16>, vector<8x128xf32> -> vector<8x128xf32>
    %474 = arith.addf %471, %473 : vector<8x128xf32>
    %475 = vector.extract_strided_slice %474 {offsets = [0, 0], sizes = [8, 96], strides = [1, 1]} : vector<8x128xf32> to vector<8x96xf32>
    %476 = arith.negf %475 : vector<8x96xf32>
    %477 = math.exp %476 : vector<8x96xf32>
    %cst_84 = arith.constant 1.000000e+00 : f32
    %478 = vector.broadcast %cst_84 : f32 to vector<8x96xf32>
    %479 = arith.addf %478, %477 : vector<8x96xf32>
    %480 = arith.divf %478, %479 : vector<8x96xf32>
    %481 = vector.extract_strided_slice %474 {offsets = [0, 96], sizes = [8, 32], strides = [1, 1]} : vector<8x128xf32> to vector<8x32xf32>
    %482 = math.tanh %481 : vector<8x32xf32>
    %483 = vector.extract_strided_slice %480 {offsets = [0, 32], sizes = [8, 32], strides = [1, 1]} : vector<8x96xf32> to vector<8x32xf32>
    %484 = arith.mulf %483, %413 : vector<8x32xf32>
    %485 = vector.extract_strided_slice %480 {offsets = [0, 0], sizes = [8, 32], strides = [1, 1]} : vector<8x96xf32> to vector<8x32xf32>
    %486 = arith.mulf %485, %482 : vector<8x32xf32>
    %487 = arith.addf %484, %486 : vector<8x32xf32>
    %488 = vector.extract_strided_slice %480 {offsets = [0, 64], sizes = [8, 32], strides = [1, 1]} : vector<8x96xf32> to vector<8x32xf32>
    %489 = math.tanh %487 : vector<8x32xf32>
    %490 = arith.mulf %488, %489 : vector<8x32xf32>
    %491 = arith.truncf %490 : vector<8x32xf32> to vector<8x32xbf16>
    %cst_85 = arith.constant dense<0.000000e+00> : vector<8x64xf32>
    %492 = tpu.matmul %491, %18, %cst_85 {dimension_numbers = #tpu.dot_dimension_numbers<[1], [0], [0], [1], [0, 0, 1, 1], [], []>} : vector<8x32xbf16>, vector<32x64xbf16>, vector<8x64xf32> -> vector<8x64xf32>
    %493 = vector.extract_strided_slice %492 {offsets = [0, 0], sizes = [8, 32], strides = [1, 1]} : vector<8x64xf32> to vector<8x32xf32>
    %494 = vector.extract_strided_slice %12 {offsets = [48, 0], sizes = [8, 32], strides = [1, 1]} : vector<64x32xf32> to vector<8x32xf32>
    %495 = arith.addf %493, %494 : vector<8x32xf32>
    %496 = arith.negf %495 : vector<8x32xf32>
    %497 = math.exp %496 : vector<8x32xf32>
    %cst_86 = arith.constant 1.000000e+00 : f32
    %498 = vector.broadcast %cst_86 : f32 to vector<8x32xf32>
    %499 = arith.addf %498, %497 : vector<8x32xf32>
    %500 = arith.divf %498, %499 : vector<8x32xf32>
    %501 = vector.extract_strided_slice %500 {offsets = [0, 0], sizes = [8, 16], strides = [1, 1]} : vector<8x32xf32> to vector<8x16xf32>
    %502 = vector.extract_strided_slice %492 {offsets = [0, 32], sizes = [8, 16], strides = [1, 1]} : vector<8x64xf32> to vector<8x16xf32>
    %503 = arith.mulf %501, %502 : vector<8x16xf32>
    %504 = vector.broadcast %19 : vector<1x16xf32> to vector<8x16xf32>
    %505 = arith.addf %503, %504 : vector<8x16xf32>
    %506 = vector.extract_strided_slice %500 {offsets = [0, 16], sizes = [8, 16], strides = [1, 1]} : vector<8x32xf32> to vector<8x16xf32>
    %507 = vector.extract_strided_slice %492 {offsets = [0, 48], sizes = [8, 16], strides = [1, 1]} : vector<8x64xf32> to vector<8x16xf32>
    %508 = arith.mulf %506, %507 : vector<8x16xf32>
    %509 = arith.addf %505, %508 : vector<8x16xf32>
    %510 = vector.extract_strided_slice %16 {offsets = [48, 0], sizes = [8, 1], strides = [1, 1]} : vector<64x1xf32> to vector<8x1xf32>
    %511 = arith.mulf %509, %509 : vector<8x16xf32>
    %cst_87 = arith.constant dense<0.000000e+00> : vector<8xf32>
    %512 = vector.multi_reduction <add>, %511, %cst_87 [1] : vector<8x16xf32> to vector<8xf32>
    %513 = vector.shape_cast %512 : vector<8xf32> to vector<8x1xf32>
    %514 = math.rsqrt %513 : vector<8x1xf32>
    %515 = arith.mulf %510, %514 : vector<8x1xf32>
    %cst_88 = arith.constant 1.000000e+00 : f32
    %516 = vector.broadcast %cst_88 : f32 to vector<8x1xf32>
    %517 = arith.minimumf %515, %516 : vector<8x1xf32>
    %518 = vector.extract_strided_slice %0 {offsets = [48, 0], sizes = [8, 16], strides = [1, 1]} : vector<64x16xf32> to vector<8x16xf32>
    %519 = vector.broadcast %517 : vector<8x1xf32> to vector<8x16xf32>
    %520 = arith.mulf %519, %509 : vector<8x16xf32>
    %521 = arith.addf %518, %520 : vector<8x16xf32>
    %522 = arith.truncf %521 : vector<8x16xf32> to vector<8x16xbf16>
    %cst_89 = arith.constant dense<0.000000e+00> : vector<8x512xf32>
    %523 = tpu.matmul %522, %20, %cst_89 {dimension_numbers = #tpu.dot_dimension_numbers<[1], [0], [0], [1], [0, 0, 1, 1], [], []>} : vector<8x16xbf16>, vector<16x512xbf16>, vector<8x512xf32> -> vector<8x512xf32>
    %524 = vector.broadcast %22 : vector<1x512xf32> to vector<8x512xf32>
    %525 = arith.addf %523, %524 : vector<8x512xf32>
    %526 = arith.truncf %470 : vector<8x128xf32> to vector<8x128xbf16>
    %cst_90 = arith.constant dense<0.000000e+00> : vector<8x512xf32>
    %527 = tpu.matmul %526, %21, %cst_90 {dimension_numbers = #tpu.dot_dimension_numbers<[1], [0], [0], [1], [0, 0, 1, 1], [], []>} : vector<8x128xbf16>, vector<128x512xbf16>, vector<8x512xf32> -> vector<8x512xf32>
    %528 = arith.addf %525, %527 : vector<8x512xf32>
    %529 = vector.extract_strided_slice %528 {offsets = [0, 0], sizes = [8, 384], strides = [1, 1]} : vector<8x512xf32> to vector<8x384xf32>
    %530 = arith.negf %529 : vector<8x384xf32>
    %531 = math.exp %530 : vector<8x384xf32>
    %cst_91 = arith.constant 1.000000e+00 : f32
    %532 = vector.broadcast %cst_91 : f32 to vector<8x384xf32>
    %533 = arith.addf %532, %531 : vector<8x384xf32>
    %534 = arith.divf %532, %533 : vector<8x384xf32>
    %535 = vector.extract_strided_slice %528 {offsets = [0, 384], sizes = [8, 128], strides = [1, 1]} : vector<8x512xf32> to vector<8x128xf32>
    %536 = math.tanh %535 : vector<8x128xf32>
    %537 = vector.extract_strided_slice %534 {offsets = [0, 128], sizes = [8, 128], strides = [1, 1]} : vector<8x384xf32> to vector<8x128xf32>
    %538 = arith.mulf %537, %467 : vector<8x128xf32>
    %539 = vector.extract_strided_slice %534 {offsets = [0, 0], sizes = [8, 128], strides = [1, 1]} : vector<8x384xf32> to vector<8x128xf32>
    %540 = arith.mulf %539, %536 : vector<8x128xf32>
    %541 = arith.addf %538, %540 : vector<8x128xf32>
    %542 = vector.extract_strided_slice %534 {offsets = [0, 256], sizes = [8, 128], strides = [1, 1]} : vector<8x384xf32> to vector<8x128xf32>
    %543 = math.tanh %541 : vector<8x128xf32>
    %544 = arith.mulf %542, %543 : vector<8x128xf32>
    %545 = vector.extract_strided_slice %6 {offsets = [56, 0], sizes = [8, 128], strides = [1, 1]} : vector<64x128xf32> to vector<8x128xf32>
    %546 = arith.truncf %490 : vector<8x32xf32> to vector<8x32xbf16>
    %cst_92 = arith.constant dense<0.000000e+00> : vector<8x128xf32>
    %547 = tpu.matmul %546, %17, %cst_92 {dimension_numbers = #tpu.dot_dimension_numbers<[1], [0], [0], [1], [0, 0, 1, 1], [], []>} : vector<8x32xbf16>, vector<32x128xbf16>, vector<8x128xf32> -> vector<8x128xf32>
    %548 = arith.addf %545, %547 : vector<8x128xf32>
    %549 = vector.extract_strided_slice %548 {offsets = [0, 0], sizes = [8, 96], strides = [1, 1]} : vector<8x128xf32> to vector<8x96xf32>
    %550 = arith.negf %549 : vector<8x96xf32>
    %551 = math.exp %550 : vector<8x96xf32>
    %cst_93 = arith.constant 1.000000e+00 : f32
    %552 = vector.broadcast %cst_93 : f32 to vector<8x96xf32>
    %553 = arith.addf %552, %551 : vector<8x96xf32>
    %554 = arith.divf %552, %553 : vector<8x96xf32>
    %555 = vector.extract_strided_slice %548 {offsets = [0, 96], sizes = [8, 32], strides = [1, 1]} : vector<8x128xf32> to vector<8x32xf32>
    %556 = math.tanh %555 : vector<8x32xf32>
    %557 = vector.extract_strided_slice %554 {offsets = [0, 32], sizes = [8, 32], strides = [1, 1]} : vector<8x96xf32> to vector<8x32xf32>
    %558 = arith.mulf %557, %487 : vector<8x32xf32>
    %559 = vector.extract_strided_slice %554 {offsets = [0, 0], sizes = [8, 32], strides = [1, 1]} : vector<8x96xf32> to vector<8x32xf32>
    %560 = arith.mulf %559, %556 : vector<8x32xf32>
    %561 = arith.addf %558, %560 : vector<8x32xf32>
    %562 = vector.extract_strided_slice %554 {offsets = [0, 64], sizes = [8, 32], strides = [1, 1]} : vector<8x96xf32> to vector<8x32xf32>
    %563 = math.tanh %561 : vector<8x32xf32>
    %564 = arith.mulf %562, %563 : vector<8x32xf32>
    %565 = arith.truncf %564 : vector<8x32xf32> to vector<8x32xbf16>
    %cst_94 = arith.constant dense<0.000000e+00> : vector<8x64xf32>
    %566 = tpu.matmul %565, %18, %cst_94 {dimension_numbers = #tpu.dot_dimension_numbers<[1], [0], [0], [1], [0, 0, 1, 1], [], []>} : vector<8x32xbf16>, vector<32x64xbf16>, vector<8x64xf32> -> vector<8x64xf32>
    %567 = vector.extract_strided_slice %566 {offsets = [0, 0], sizes = [8, 32], strides = [1, 1]} : vector<8x64xf32> to vector<8x32xf32>
    %568 = vector.extract_strided_slice %12 {offsets = [56, 0], sizes = [8, 32], strides = [1, 1]} : vector<64x32xf32> to vector<8x32xf32>
    %569 = arith.addf %567, %568 : vector<8x32xf32>
    %570 = arith.negf %569 : vector<8x32xf32>
    %571 = math.exp %570 : vector<8x32xf32>
    %cst_95 = arith.constant 1.000000e+00 : f32
    %572 = vector.broadcast %cst_95 : f32 to vector<8x32xf32>
    %573 = arith.addf %572, %571 : vector<8x32xf32>
    %574 = arith.divf %572, %573 : vector<8x32xf32>
    %575 = vector.extract_strided_slice %574 {offsets = [0, 0], sizes = [8, 16], strides = [1, 1]} : vector<8x32xf32> to vector<8x16xf32>
    %576 = vector.extract_strided_slice %566 {offsets = [0, 32], sizes = [8, 16], strides = [1, 1]} : vector<8x64xf32> to vector<8x16xf32>
    %577 = arith.mulf %575, %576 : vector<8x16xf32>
    %578 = vector.broadcast %19 : vector<1x16xf32> to vector<8x16xf32>
    %579 = arith.addf %577, %578 : vector<8x16xf32>
    %580 = vector.extract_strided_slice %574 {offsets = [0, 16], sizes = [8, 16], strides = [1, 1]} : vector<8x32xf32> to vector<8x16xf32>
    %581 = vector.extract_strided_slice %566 {offsets = [0, 48], sizes = [8, 16], strides = [1, 1]} : vector<8x64xf32> to vector<8x16xf32>
    %582 = arith.mulf %580, %581 : vector<8x16xf32>
    %583 = arith.addf %579, %582 : vector<8x16xf32>
    %584 = vector.extract_strided_slice %16 {offsets = [56, 0], sizes = [8, 1], strides = [1, 1]} : vector<64x1xf32> to vector<8x1xf32>
    %585 = arith.mulf %583, %583 : vector<8x16xf32>
    %cst_96 = arith.constant dense<0.000000e+00> : vector<8xf32>
    %586 = vector.multi_reduction <add>, %585, %cst_96 [1] : vector<8x16xf32> to vector<8xf32>
    %587 = vector.shape_cast %586 : vector<8xf32> to vector<8x1xf32>
    %588 = math.rsqrt %587 : vector<8x1xf32>
    %589 = arith.mulf %584, %588 : vector<8x1xf32>
    %cst_97 = arith.constant 1.000000e+00 : f32
    %590 = vector.broadcast %cst_97 : f32 to vector<8x1xf32>
    %591 = arith.minimumf %589, %590 : vector<8x1xf32>
    %592 = vector.extract_strided_slice %0 {offsets = [56, 0], sizes = [8, 16], strides = [1, 1]} : vector<64x16xf32> to vector<8x16xf32>
    %593 = vector.broadcast %591 : vector<8x1xf32> to vector<8x16xf32>
    %594 = arith.mulf %593, %583 : vector<8x16xf32>
    %595 = arith.addf %592, %594 : vector<8x16xf32>
    %596 = arith.truncf %595 : vector<8x16xf32> to vector<8x16xbf16>
    %cst_98 = arith.constant dense<0.000000e+00> : vector<8x512xf32>
    %597 = tpu.matmul %596, %20, %cst_98 {dimension_numbers = #tpu.dot_dimension_numbers<[1], [0], [0], [1], [0, 0, 1, 1], [], []>} : vector<8x16xbf16>, vector<16x512xbf16>, vector<8x512xf32> -> vector<8x512xf32>
    %598 = vector.broadcast %22 : vector<1x512xf32> to vector<8x512xf32>
    %599 = arith.addf %597, %598 : vector<8x512xf32>
    %600 = arith.truncf %544 : vector<8x128xf32> to vector<8x128xbf16>
    %cst_99 = arith.constant dense<0.000000e+00> : vector<8x512xf32>
    %601 = tpu.matmul %600, %21, %cst_99 {dimension_numbers = #tpu.dot_dimension_numbers<[1], [0], [0], [1], [0, 0, 1, 1], [], []>} : vector<8x128xbf16>, vector<128x512xbf16>, vector<8x512xf32> -> vector<8x512xf32>
    %602 = arith.addf %599, %601 : vector<8x512xf32>
    %603 = vector.extract_strided_slice %602 {offsets = [0, 0], sizes = [8, 384], strides = [1, 1]} : vector<8x512xf32> to vector<8x384xf32>
    %604 = arith.negf %603 : vector<8x384xf32>
    %605 = math.exp %604 : vector<8x384xf32>
    %cst_100 = arith.constant 1.000000e+00 : f32
    %606 = vector.broadcast %cst_100 : f32 to vector<8x384xf32>
    %607 = arith.addf %606, %605 : vector<8x384xf32>
    %608 = arith.divf %606, %607 : vector<8x384xf32>
    %609 = vector.extract_strided_slice %602 {offsets = [0, 384], sizes = [8, 128], strides = [1, 1]} : vector<8x512xf32> to vector<8x128xf32>
    %610 = math.tanh %609 : vector<8x128xf32>
    %611 = vector.extract_strided_slice %608 {offsets = [0, 128], sizes = [8, 128], strides = [1, 1]} : vector<8x384xf32> to vector<8x128xf32>
    %612 = arith.mulf %611, %541 : vector<8x128xf32>
    %613 = vector.extract_strided_slice %608 {offsets = [0, 0], sizes = [8, 128], strides = [1, 1]} : vector<8x384xf32> to vector<8x128xf32>
    %614 = arith.mulf %613, %610 : vector<8x128xf32>
    %615 = arith.addf %612, %614 : vector<8x128xf32>
    %616 = vector.extract_strided_slice %608 {offsets = [0, 256], sizes = [8, 128], strides = [1, 1]} : vector<8x384xf32> to vector<8x128xf32>
    %617 = math.tanh %615 : vector<8x128xf32>
    %618 = arith.mulf %616, %617 : vector<8x128xf32>
    %c0_101 = arith.constant 0 : index
    %c0_102 = arith.constant 0 : index
    %619 = vector.load %arg12[%c0_101, %c0_102] : memref<128x32xf32, #tpu.memory_space<vmem>>, vector<128x32xf32>
    %cst_103 = arith.constant dense<0.000000e+00> : vector<8x32xf32>
    %620 = tpu.matmul %618, %619, %cst_103 {dimension_numbers = #tpu.dot_dimension_numbers<[1], [0], [0], [1], [0, 0, 1, 1], [], []>} : vector<8x128xf32>, vector<128x32xf32>, vector<8x32xf32> -> vector<8x32xf32>
    %c0_104 = arith.constant 0 : index
    %c0_105 = arith.constant 0 : index
    %621 = vector.load %arg13[%c0_104, %c0_105] : memref<1x32xf32, #tpu.memory_space<vmem>>, vector<1x32xf32>
    %622 = vector.broadcast %621 : vector<1x32xf32> to vector<8x32xf32>
    %623 = arith.addf %620, %622 : vector<8x32xf32>
    %cst_106 = arith.constant 0.000000e+00 : f32
    %624 = vector.broadcast %cst_106 : f32 to vector<8x32xf32>
    %625 = arith.maximumf %623, %624 : vector<8x32xf32>
    %c0_107 = arith.constant 0 : index
    %c0_108 = arith.constant 0 : index
    %626 = vector.load %arg14[%c0_107, %c0_108] : memref<32x32xf32, #tpu.memory_space<vmem>>, vector<32x32xf32>
    %cst_109 = arith.constant dense<0.000000e+00> : vector<8x32xf32>
    %627 = tpu.matmul %625, %626, %cst_109 {dimension_numbers = #tpu.dot_dimension_numbers<[1], [0], [0], [1], [0, 0, 1, 1], [], []>} : vector<8x32xf32>, vector<32x32xf32>, vector<8x32xf32> -> vector<8x32xf32>
    %c0_110 = arith.constant 0 : index
    %c0_111 = arith.constant 0 : index
    %628 = vector.load %arg15[%c0_110, %c0_111] : memref<1x32xf32, #tpu.memory_space<vmem>>, vector<1x32xf32>
    %629 = vector.broadcast %628 : vector<1x32xf32> to vector<8x32xf32>
    %630 = arith.addf %627, %629 : vector<8x32xf32>
    %cst_112 = arith.constant 0.000000e+00 : f32
    %631 = vector.broadcast %cst_112 : f32 to vector<8x32xf32>
    %632 = arith.maximumf %630, %631 : vector<8x32xf32>
    %c0_113 = arith.constant 0 : index
    %c0_114 = arith.constant 0 : index
    %633 = vector.load %arg16[%c0_113, %c0_114] : memref<32x4xf32, #tpu.memory_space<vmem>>, vector<32x4xf32>
    %cst_115 = arith.constant dense<0.000000e+00> : vector<8x4xf32>
    %634 = tpu.matmul %632, %633, %cst_115 {dimension_numbers = #tpu.dot_dimension_numbers<[1], [0], [0], [1], [0, 0, 1, 1], [], []>} : vector<8x32xf32>, vector<32x4xf32>, vector<8x4xf32> -> vector<8x4xf32>
    %c0_116 = arith.constant 0 : index
    %c0_117 = arith.constant 0 : index
    %635 = vector.load %arg17[%c0_116, %c0_117] : memref<1x4xf32, #tpu.memory_space<vmem>>, vector<1x4xf32>
    %636 = vector.broadcast %635 : vector<1x4xf32> to vector<8x4xf32>
    %637 = arith.addf %634, %636 : vector<8x4xf32>
    %c0_118 = arith.constant 0 : index
    %c0_119 = arith.constant 0 : index
    %638 = vector.load %arg18[%c0_118, %c0_119] : memref<8x4xf32, #tpu.memory_space<vmem>>, vector<8x4xf32>
    tpu.vector_store %arg18[%c0_118, %c0_119], %637 {strides = array<i32>} : memref<8x4xf32, #tpu.memory_space<vmem>>, vector<8x4xf32>,
    return
  }
}

</mosaic_0001>

<llo_original>
// kernel: raven_forward.1
$region0: #{raven_forward.1}
  #allocation0 [shape = 'u32[]', space=smem, size = 0x4, offset = 0x4, fixed_abs, tag = 'smem constant byte address 0x4 - core index']
  #allocation1 [shape = 'u32[72,128]{1,0:T(1,128)}', space=vmem, size = 0x9000, scoped, tag = 'internal scratch']
  %s0 = inlined_call_operand.vmem [shape: f32[64,16], index: 0, kind: input, shape index: {}]
  %s1 = inlined_call_operand.vmem [shape: bf16[64,20], index: 1, kind: input, shape index: {}]
  %s2 = inlined_call_operand.vmem [shape: bf16[20,128], index: 2, kind: input, shape index: {}]
  %s3 = inlined_call_operand.vmem [shape: bf16[32,128], index: 3, kind: input, shape index: {}]
  %s4 = inlined_call_operand.vmem [shape: f32[1,128], index: 4, kind: input, shape index: {}]
  %s5 = inlined_call_operand.vmem [shape: bf16[32,64], index: 5, kind: input, shape index: {}]
  %s6 = inlined_call_operand.vmem [shape: bf16[16,32], index: 6, kind: input, shape index: {}]
  %s7 = inlined_call_operand.vmem [shape: f32[1,32], index: 7, kind: input, shape index: {}]
  %s8 = inlined_call_operand.vmem [shape: f32[1,16], index: 8, kind: input, shape index: {}]
  %s9 = inlined_call_operand.vmem [shape: bf16[16,512], index: 9, kind: input, shape index: {}]
  %s10 = inlined_call_operand.vmem [shape: bf16[128,512], index: 10, kind: input, shape index: {}]
  %s11 = inlined_call_operand.vmem [shape: f32[1,512], index: 11, kind: input, shape index: {}]
  %s12 = inlined_call_operand.vmem [shape: f32[128,32], index: 12, kind: input, shape index: {}]
  %s13 = inlined_call_operand.vmem [shape: f32[1,32], index: 13, kind: input, shape index: {}]
  %s14 = inlined_call_operand.vmem [shape: f32[32,32], index: 14, kind: input, shape index: {}]
  %s15 = inlined_call_operand.vmem [shape: f32[1,32], index: 15, kind: input, shape index: {}]
  %s16 = inlined_call_operand.vmem [shape: f32[32,4], index: 16, kind: input, shape index: {}]
  %s17 = inlined_call_operand.vmem [shape: f32[1,4], index: 17, kind: input, shape index: {}]
  %s18 = inlined_call_operand.vmem [shape: f32[8,4], index: 18, kind: output, shape index: {}]
  %s19 = sld [smem:[#allocation0]]
  $region82: #{raven_forward.1} parent=0
    _
  %s21 = ssub.s32 1, %s19
  %s22 = scalar_select 0, %s21, %s19
  // Predicated region
  $region2: #{raven_forward.1} parent=0 // pred_check
    _
  $region3: #{raven_forward.1} parent=0 // pred_check_branch
    %24 = sbr.rel (0) target = $region5
  $region4: #{raven_forward.1} parent=0 // pred_region
    _
  $region5: #{raven_forward.1} parent=0 // pred_fallthru
    _
  // Predicated region
  $region6: #{raven_forward.1} parent=0 // pred_check
    _
  $region7: #{raven_forward.1} parent=0 // pred_check_branch
    %26 = sbr.rel (0) target = $region9
  $region8: #{raven_forward.1} parent=0 // pred_region
    _
  $region9: #{raven_forward.1} parent=0 // pred_fallthru
    _
  // Predicated region
  $region10: #{raven_forward.1} parent=0 // pred_check
    _
  $region11: #{raven_forward.1} parent=0 // pred_check_branch
    %28 = sbr.rel (0) target = $region13
  $region12: #{raven_forward.1} parent=0 // pred_region
    _
  $region13: #{raven_forward.1} parent=0 // pred_fallthru
    _
  // Predicated region
  $region14: #{raven_forward.1} parent=0 // pred_check
    _
  $region15: #{raven_forward.1} parent=0 // pred_check_branch
    %30 = sbr.rel (0) target = $region17
  $region16: #{raven_forward.1} parent=0 // pred_region
    _
  $region17: #{raven_forward.1} parent=0 // pred_fallthru
    _
  // Predicated region
  $region18: #{raven_forward.1} parent=0 // pred_check
    _
  $region19: #{raven_forward.1} parent=0 // pred_check_branch
    %32 = sbr.rel (0) target = $region21
  $region20: #{raven_forward.1} parent=0 // pred_region
    _
  $region21: #{raven_forward.1} parent=0 // pred_fallthru
    _
  // Predicated region
  $region22: #{raven_forward.1} parent=0 // pred_check
    _
  $region23: #{raven_forward.1} parent=0 // pred_check_branch
    %34 = sbr.rel (0) target = $region25
  $region24: #{raven_forward.1} parent=0 // pred_region
    _
  $region25: #{raven_forward.1} parent=0 // pred_fallthru
    _
  // Predicated region
  $region26: #{raven_forward.1} parent=0 // pred_check
    _
  $region27: #{raven_forward.1} parent=0 // pred_check_branch
    %36 = sbr.rel (0) target = $region29
  $region28: #{raven_forward.1} parent=0 // pred_region
    _
  $region29: #{raven_forward.1} parent=0 // pred_fallthru
    _
  // Predicated region
  $region30: #{raven_forward.1} parent=0 // pred_check
    _
  $region31: #{raven_forward.1} parent=0 // pred_check_branch
    %38 = sbr.rel (0) target = $region33
  $region32: #{raven_forward.1} parent=0 // pred_region
    _
  $region33: #{raven_forward.1} parent=0 // pred_fallthru
    _
  // Predicated region
  $region34: #{raven_forward.1} parent=0 // pred_check
    _
  $region35: #{raven_forward.1} parent=0 // pred_check_branch
    %40 = sbr.rel (0) target = $region37
  $region36: #{raven_forward.1} parent=0 // pred_region
    _
  $region37: #{raven_forward.1} parent=0 // pred_fallthru
    _
  // Predicated region
  $region38: #{raven_forward.1} parent=0 // pred_check
    _
  $region39: #{raven_forward.1} parent=0 // pred_check_branch
    %42 = sbr.rel (0) target = $region41
  $region40: #{raven_forward.1} parent=0 // pred_region
    _
  $region41: #{raven_forward.1} parent=0 // pred_fallthru
    _
  // Predicated region
  $region42: #{raven_forward.1} parent=0 // pred_check
    _
  $region43: #{raven_forward.1} parent=0 // pred_check_branch
    %44 = sbr.rel (0) target = $region45
  $region44: #{raven_forward.1} parent=0 // pred_region
    _
  $region45: #{raven_forward.1} parent=0 // pred_fallthru
    _
  // Predicated region
  $region46: #{raven_forward.1} parent=0 // pred_check
    _
  $region47: #{raven_forward.1} parent=0 // pred_check_branch
    %46 = sbr.rel (0) target = $region49
  $region48: #{raven_forward.1} parent=0 // pred_region
    _
  $region49: #{raven_forward.1} parent=0 // pred_fallthru
    _
  // Predicated region
  $region50: #{raven_forward.1} parent=0 // pred_check
    _
  $region51: #{raven_forward.1} parent=0 // pred_check_branch
    %48 = sbr.rel (0) target = $region53
  $region52: #{raven_forward.1} parent=0 // pred_region
    _
  $region53: #{raven_forward.1} parent=0 // pred_fallthru
    _
  // Predicated region
  $region54: #{raven_forward.1} parent=0 // pred_check
    _
  $region55: #{raven_forward.1} parent=0 // pred_check_branch
    %50 = sbr.rel (0) target = $region57
  $region56: #{raven_forward.1} parent=0 // pred_region
    _
  $region57: #{raven_forward.1} parent=0 // pred_fallthru
    _
  // Predicated region
  $region58: #{raven_forward.1} parent=0 // pred_check
    _
  $region59: #{raven_forward.1} parent=0 // pred_check_branch
    %52 = sbr.rel (0) target = $region61
  $region60: #{raven_forward.1} parent=0 // pred_region
    _
  $region61: #{raven_forward.1} parent=0 // pred_fallthru
    _
  // Predicated region
  $region62: #{raven_forward.1} parent=0 // pred_check
    _
  $region63: #{raven_forward.1} parent=0 // pred_check_branch
    %54 = sbr.rel (0) target = $region65
  $region64: #{raven_forward.1} parent=0 // pred_region
    _
  $region65: #{raven_forward.1} parent=0 // pred_fallthru
    _
  // Predicated region
  $region66: #{raven_forward.1} parent=0 // pred_check
    _
  $region67: #{raven_forward.1} parent=0 // pred_check_branch
    %56 = sbr.rel (0) target = $region69
  $region68: #{raven_forward.1} parent=0 // pred_region
    _
  $region69: #{raven_forward.1} parent=0 // pred_fallthru
    _
  // Predicated region
  $region70: #{raven_forward.1} parent=0 // pred_check
    _
  $region71: #{raven_forward.1} parent=0 // pred_check_branch
    %58 = sbr.rel (0) target = $region73
  $region72: #{raven_forward.1} parent=0 // pred_region
    _
  $region73: #{raven_forward.1} parent=0 // pred_fallthru
    _
  %v60 = vld [vmem:[%s0] sm:$0xff]
  %v61 = vld [vmem:[%s0 + $0x8] sm:$0xff]
  %v62 = vld [vmem:[%s0 + $0x10] sm:$0xff]
  %v63 = vld [vmem:[%s0 + $0x18] sm:$0xff]
  %v64 = vld [vmem:[%s0 + $0x20] sm:$0xff]
  %v65 = vld [vmem:[%s0 + $0x28] sm:$0xff]
  %v66 = vld [vmem:[%s0 + $0x30] sm:$0xff]
  %v67 = vld [vmem:[%s0 + $0x38] sm:$0xff]
  %v68 = vld [vmem:[%s1] sm:$0xf]
  %v69 = vld [vmem:[%s1 + $0x4] sm:$0xf]
  %v70 = vld [vmem:[%s1 + $0x8] sm:$0xf]
  %v71 = vld [vmem:[%s1 + $0xc] sm:$0xf]
  %v72 = vld [vmem:[%s1 + $0x10] sm:$0xf]
  %v73 = vld [vmem:[%s1 + $0x14] sm:$0xf]
  %v74 = vld [vmem:[%s1 + $0x18] sm:$0xf]
  %v75 = vld [vmem:[%s1 + $0x1c] sm:$0xf]
  %v76 = vld [vmem:[%s2] sm:$0xf]
  %v77 = vld [vmem:[%s2 + $0x4] sm:$0xf]
  %v78 = vld [vmem:[%s2 + $0x8] sm:$0x3]
  %v79 = vld [vmem:[%s4] sm:$0x1]
  %v81 = vperm.slane %v79, 0
  %v91 = vunpack.c.l.b16 %v68
  %v92 = vunpack.c.l.b16 %v69
  %v93 = vunpack.c.l.b16 %v70
  %v94 = vunpack.c.l.b16 %v71
  %v95 = vunpack.c.l.b16 %v72
  %v96 = vunpack.c.l.b16 %v73
  %v97 = vunpack.c.l.b16 %v74
  %v98 = vunpack.c.l.b16 %v75
  %v99 = vpack.c.b16 %v92, %v91
  %v100 = vpack.c.b16 %v94, %v93
  %v101 = vpack.c.b16 %v96, %v95
  %v102 = vpack.c.b16 %v98, %v97
  %v106 = vunpack.c.l.b16 %v76
  %v107 = vunpack.c.l.b16 %v77
  %v108 = vunpack.c.l.b16 %v78
  %v109 = vpack.c.b16 %v107, %v106
  %v110 = vpack.c.b16 %v108, %v108
  %vm112 = vcmask 162816
  %v114 = vsel %vm112, %v99, 0
  %v117 = vsel %vm112, %v100, 0
  %v120 = vsel %vm112, %v101, 0
  %v123 = vsel %vm112, %v102, 0
  %vm125 = vcmask 1041408
  %v127 = vsel %vm125, %v110, 0
  %129 = vmatpush.bf16.msra.mxu0 0
  %130 = vmatpush.bf16.msra.mxu0 0
  %131 = vmatpush.bf16.msra.mxu0 0
  %132 = vmatpush.bf16.msra.mxu0 0
  %133 = vmatpush.bf16.msra.mxu0 0
  %134 = vmatpush.bf16.msra.mxu0 0
  %135 = vmatpush.bf16.msra.mxu0 %v127
  %136 = vmatpush.bf16.msra.mxu0 %v109
  %137 = vmatmul.bf16.gmra.mxu0 %v114
  %v138 = vpop.f32.mrf.mxu0
  %v139 = vadd.f32 %v81, %v138
  %v140 = vpop.f32.mrf.mxu0
  %v141 = vadd.f32 %v81, %v140
  %142 = vmatmul.bf16.gmra.mxu0 %v117
  %v143 = vpop.f32.mrf.mxu0
  %v144 = vadd.f32 %v81, %v143
  %v145 = vpop.f32.mrf.mxu0
  %v146 = vadd.f32 %v81, %v145
  %147 = vmatmul.bf16.gmra.mxu0 %v120
  %v148 = vpop.f32.mrf.mxu0
  %v149 = vadd.f32 %v81, %v148
  %v150 = vpop.f32.mrf.mxu0
  %v151 = vadd.f32 %v81, %v150
  %152 = vmatmul.bf16.gmra.mxu0 %v123
  %v153 = vpop.f32.mrf.mxu0
  %v154 = vadd.f32 %v81, %v153
  %v155 = vpop.f32.mrf.mxu0
  %v156 = vadd.f32 %v81, %v155
  %157 = vdwg.mxu0
  %v158 = vpack.c.bf16 %v61, %v60
  %v159 = vpack.c.bf16 %v63, %v62
  %v160 = vpack.c.bf16 %v65, %v64
  %v161 = vpack.c.bf16 %v67, %v66
  %v162 = vld [vmem:[%s6] sm:$0xf]
  %v163 = vld [vmem:[%s6 + $0x4] sm:$0xf]
  %v164 = vld [vmem:[%s7] sm:$0x1]
  %v166 = vperm.slane %v164, 0
  %v170 = vunpack.c.l.b16 %v162
  %v171 = vunpack.c.l.b16 %v163
  %v172 = vpack.c.b16 %v171, %v170
  %vm174 = vcmask 130048
  %v176 = vsel %vm174, %v158, 0
  %v179 = vsel %vm174, %v159, 0
  %v182 = vsel %vm174, %v160, 0
  %v185 = vsel %vm174, %v161, 0
  %187 = vmatpush.bf16.msra.mxu0 0
  %188 = vmatpush.bf16.msra.mxu0 0
  %189 = vmatpush.bf16.msra.mxu0 0
  %190 = vmatpush.bf16.msra.mxu0 0
  %191 = vmatpush.bf16.msra.mxu0 0
  %192 = vmatpush.bf16.msra.mxu0 0
  %193 = vmatpush.bf16.msra.mxu0 0
  %194 = vmatpush.bf16.msra.mxu0 %v172
  %195 = vmatmul.bf16.gmra.mxu0 %v176
  %v196 = vpop.f32.mrf.mxu0
  %v197 = vadd.f32 %v166, %v196
  %v198 = vpop.f32.mrf.mxu0
  %v199 = vadd.f32 %v166, %v198
  %200 = vmatmul.bf16.gmra.mxu0 %v179
  %v201 = vpop.f32.mrf.mxu0
  %v202 = vadd.f32 %v166, %v201
  %v203 = vpop.f32.mrf.mxu0
  %v204 = vadd.f32 %v166, %v203
  %205 = vmatmul.bf16.gmra.mxu0 %v182
  %v206 = vpop.f32.mrf.mxu0
  %v207 = vadd.f32 %v166, %v206
  %v208 = vpop.f32.mrf.mxu0
  %v209 = vadd.f32 %v166, %v208
  %210 = vmatmul.bf16.gmra.mxu0 %v185
  %v211 = vpop.f32.mrf.mxu0
  %v212 = vadd.f32 %v166, %v211
  %v213 = vpop.f32.mrf.mxu0
  %v214 = vadd.f32 %v166, %v213
  %215 = vdwg.mxu0
  %v216 = vmul.f32 %v60, %v60
  %v217 = vmul.f32 %v61, %v61
  %v218 = vmul.f32 %v62, %v62
  %v219 = vmul.f32 %v63, %v63
  %v220 = vmul.f32 %v64, %v64
  %v221 = vmul.f32 %v65, %v65
  %v222 = vmul.f32 %v66, %v66
  %v223 = vmul.f32 %v67, %v67
  %v224 = vsel %vm174, %v216, 0.0
  %225 = vadd.xlane.f32.xlu0 %v224
  %v226 = vpop.xlane.xlu0 %225
  %v227 = vsel %vm174, %v217, 0.0
  %228 = vadd.xlane.f32.xlu0 %v227
  %v229 = vpop.xlane.xlu0 %228
  %v230 = vsel %vm174, %v218, 0.0
  %231 = vadd.xlane.f32.xlu0 %v230
  %v232 = vpop.xlane.xlu0 %231
  %v233 = vsel %vm174, %v219, 0.0
  %234 = vadd.xlane.f32.xlu0 %v233
  %v235 = vpop.xlane.xlu0 %234
  %v236 = vsel %vm174, %v220, 0.0
  %237 = vadd.xlane.f32.xlu0 %v236
  %v238 = vpop.xlane.xlu0 %237
  %v239 = vsel %vm174, %v221, 0.0
  %240 = vadd.xlane.f32.xlu0 %v239
  %v241 = vpop.xlane.xlu0 %240
  %v242 = vsel %vm174, %v222, 0.0
  %243 = vadd.xlane.f32.xlu0 %v242
  %v244 = vpop.xlane.xlu0 %243
  %v245 = vsel %vm174, %v223, 0.0
  %246 = vadd.xlane.f32.xlu0 %v245
  %v247 = vpop.xlane.xlu0 %246
  %v248 = vrsqrt.pop %v226
  %v249 = vmul.f32 %v248, %v226
  %v250 = vmul.f32 %v249, %v248
  %v251 = vmul.f32 0.5, %v250
  %v252 = vsub.f32 1.5, %v251
  %v253 = vmul.f32 %v248, %v252
  %v254 = vmul.f32 %v226, %v253
  %vm255 = vcmp.eq.f32.partialorder %v226, inf
  %v256 = vsel %vm255, %v226, %v254
  %vm257 = vcmp.eq.f32.partialorder %v226, 0.0
  %v258 = vand.u32 %v226, 2147483648
  %v259 = vsel %vm257, %v258, %v256
  %v260 = vrsqrt.pop %v229
  %v261 = vmul.f32 %v260, %v229
  %v262 = vmul.f32 %v261, %v260
  %v263 = vmul.f32 0.5, %v262
  %v264 = vsub.f32 1.5, %v263
  %v265 = vmul.f32 %v260, %v264
  %v266 = vmul.f32 %v229, %v265
  %vm267 = vcmp.eq.f32.partialorder %v229, inf
  %v268 = vsel %vm267, %v229, %v266
  %vm269 = vcmp.eq.f32.partialorder %v229, 0.0
  %v270 = vand.u32 %v229, 2147483648
  %v271 = vsel %vm269, %v270, %v268
  %v272 = vrsqrt.pop %v232
  %v273 = vmul.f32 %v272, %v232
  %v274 = vmul.f32 %v273, %v272
  %v275 = vmul.f32 0.5, %v274
  %v276 = vsub.f32 1.5, %v275
  %v277 = vmul.f32 %v272, %v276
  %v278 = vmul.f32 %v232, %v277
  %vm279 = vcmp.eq.f32.partialorder %v232, inf
  %v280 = vsel %vm279, %v232, %v278
  %vm281 = vcmp.eq.f32.partialorder %v232, 0.0
  %v282 = vand.u32 %v232, 2147483648
  %v283 = vsel %vm281, %v282, %v280
  %v284 = vrsqrt.pop %v235
  %v285 = vmul.f32 %v284, %v235
  %v286 = vmul.f32 %v285, %v284
  %v287 = vmul.f32 0.5, %v286
  %v288 = vsub.f32 1.5, %v287
  %v289 = vmul.f32 %v284, %v288
  %v290 = vmul.f32 %v235, %v289
  %vm291 = vcmp.eq.f32.partialorder %v235, inf
  %v292 = vsel %vm291, %v235, %v290
  %vm293 = vcmp.eq.f32.partialorder %v235, 0.0
  %v294 = vand.u32 %v235, 2147483648
  %v295 = vsel %vm293, %v294, %v292
  %v296 = vrsqrt.pop %v238
  %v297 = vmul.f32 %v296, %v238
  %v298 = vmul.f32 %v297, %v296
  %v299 = vmul.f32 0.5, %v298
  %v300 = vsub.f32 1.5, %v299
  %v301 = vmul.f32 %v296, %v300
  %v302 = vmul.f32 %v238, %v301
  %vm303 = vcmp.eq.f32.partialorder %v238, inf
  %v304 = vsel %vm303, %v238, %v302
  %vm305 = vcmp.eq.f32.partialorder %v238, 0.0
  %v306 = vand.u32 %v238, 2147483648
  %v307 = vsel %vm305, %v306, %v304
  %v308 = vrsqrt.pop %v241
  %v309 = vmul.f32 %v308, %v241
  %v310 = vmul.f32 %v309, %v308
  %v311 = vmul.f32 0.5, %v310
  %v312 = vsub.f32 1.5, %v311
  %v313 = vmul.f32 %v308, %v312
  %v314 = vmul.f32 %v241, %v313
  %vm315 = vcmp.eq.f32.partialorder %v241, inf
  %v316 = vsel %vm315, %v241, %v314
  %vm317 = vcmp.eq.f32.partialorder %v241, 0.0
  %v318 = vand.u32 %v241, 2147483648
  %v319 = vsel %vm317, %v318, %v316
  %v320 = vrsqrt.pop %v244
  %v321 = vmul.f32 %v320, %v244
  %v322 = vmul.f32 %v321, %v320
  %v323 = vmul.f32 0.5, %v322
  %v324 = vsub.f32 1.5, %v323
  %v325 = vmul.f32 %v320, %v324
  %v326 = vmul.f32 %v244, %v325
  %vm327 = vcmp.eq.f32.partialorder %v244, inf
  %v328 = vsel %vm327, %v244, %v326
  %vm329 = vcmp.eq.f32.partialorder %v244, 0.0
  %v330 = vand.u32 %v244, 2147483648
  %v331 = vsel %vm329, %v330, %v328
  %v332 = vrsqrt.pop %v247
  %v333 = vmul.f32 %v332, %v247
  %v334 = vmul.f32 %v333, %v332
  %v335 = vmul.f32 0.5, %v334
  %v336 = vsub.f32 1.5, %v335
  %v337 = vmul.f32 %v332, %v336
  %v338 = vmul.f32 %v247, %v337
  %vm339 = vcmp.eq.f32.partialorder %v247, inf
  %v340 = vsel %vm339, %v247, %v338
  %vm341 = vcmp.eq.f32.partialorder %v247, 0.0
  %v342 = vand.u32 %v247, 2147483648
  %v343 = vsel %vm341, %v342, %v340
  %v344 = vld [vmem:[%s3] sm:$0xf]
  %v345 = vld [vmem:[%s3 + $0x4] sm:$0xf]
  %v346 = vld [vmem:[%s3 + $0x8] sm:$0xf]
  %v347 = vld [vmem:[%s3 + $0xc] sm:$0xf]
  %v348 = vld [vmem:[%s5] sm:$0xf]
  %v349 = vld [vmem:[%s5 + $0x4] sm:$0xf]
  %v350 = vld [vmem:[%s5 + $0x8] sm:$0xf]
  %v351 = vld [vmem:[%s5 + $0xc] sm:$0xf]
  %v352 = vld [vmem:[%s8] sm:$0x1]
  %v353 = vld [vmem:[%s9] sm:$0xff]
  %v354 = vld [vmem:[%s9 + $0x8] sm:$0xff]
  %v355 = vld [vmem:[%s9 + $0x10] sm:$0xff]
  %v356 = vld [vmem:[%s9 + $0x18] sm:$0xff]
  %v357 = vld [vmem:[%s10] sm:$0xff]
  %v358 = vld [vmem:[%s10 + $0x8] sm:$0xff]
  %v359 = vld [vmem:[%s10 + $0x10] sm:$0xff]
  %v360 = vld [vmem:[%s10 + $0x18] sm:$0xff]
  %v361 = vld [vmem:[%s10 + $0x20] sm:$0xff]
  %v362 = vld [vmem:[%s10 + $0x28] sm:$0xff]
  %v363 = vld [vmem:[%s10 + $0x30] sm:$0xff]
  %v364 = vld [vmem:[%s10 + $0x38] sm:$0xff]
  %v365 = vld [vmem:[%s10 + $0x40] sm:$0xff]
  %v366 = vld [vmem:[%s10 + $0x48] sm:$0xff]
  %v367 = vld [vmem:[%s10 + $0x50] sm:$0xff]
  %v368 = vld [vmem:[%s10 + $0x58] sm:$0xff]
  %v369 = vld [vmem:[%s10 + $0x60] sm:$0xff]
  %v370 = vld [vmem:[%s10 + $0x68] sm:$0xff]
  %v371 = vld [vmem:[%s10 + $0x70] sm:$0xff]
  %v372 = vld [vmem:[%s10 + $0x78] sm:$0xff]
  %v373 = vld [vmem:[%s10 + $0x80] sm:$0xff]
  %v374 = vld [vmem:[%s10 + $0x88] sm:$0xff]
  %v375 = vld [vmem:[%s10 + $0x90] sm:$0xff]
  %v376 = vld [vmem:[%s10 + $0x98] sm:$0xff]
  %v377 = vld [vmem:[%s10 + $0xa0] sm:$0xff]
  %v378 = vld [vmem:[%s10 + $0xa8] sm:$0xff]
  %v379 = vld [vmem:[%s10 + $0xb0] sm:$0xff]
  %v380 = vld [vmem:[%s10 + $0xb8] sm:$0xff]
  %v381 = vld [vmem:[%s10 + $0xc0] sm:$0xff]
  %v382 = vld [vmem:[%s10 + $0xc8] sm:$0xff]
  %v383 = vld [vmem:[%s10 + $0xd0] sm:$0xff]
  %v384 = vld [vmem:[%s10 + $0xd8] sm:$0xff]
  %v385 = vld [vmem:[%s10 + $0xe0] sm:$0xff]
  %v386 = vld [vmem:[%s10 + $0xe8] sm:$0xff]
  %v387 = vld [vmem:[%s10 + $0xf0] sm:$0xff]
  %v388 = vld [vmem:[%s10 + $0xf8] sm:$0xff]
  %v389 = vld [vmem:[%s11] sm:$0xf]
  %v394 = vunpack.c.l.b16 %v344
  %v395 = vunpack.c.l.b16 %v345
  %v396 = vunpack.c.l.b16 %v346
  %v397 = vunpack.c.l.b16 %v347
  %v398 = vpack.c.b16 %v395, %v394
  %v399 = vpack.c.b16 %v397, %v396
  %vm402 = vcmask 261120
  %v404 = vsel %vm402, 0, 0
  %406 = vmatpush.bf16.msra.mxu0 0
  %407 = vmatpush.bf16.msra.mxu0 0
  %408 = vmatpush.bf16.msra.mxu0 0
  %409 = vmatpush.bf16.msra.mxu0 0
  %410 = vmatpush.bf16.msra.mxu0 0
  %411 = vmatpush.bf16.msra.mxu0 0
  %412 = vmatpush.bf16.msra.mxu0 %v399
  %413 = vmatpush.bf16.msra.mxu0 %v398
  %414 = vmatmul.bf16.gmra.mxu0 %v404
  %v415 = vpop.f32.mrf.mxu0
  %v416 = vadd.f32 0.0, %v415
  %v417 = vpop.f32.mrf.mxu0
  %418 = vdwg.mxu0
  %v419 = vadd.f32 %v139, %v416
  %v420 = vxor.u32 %v419, 2147483648
  %v421 = vmul.f32 %v420, 1.442695
  %v422 = vpow.pop %v421
  %v423 = vadd.f32 %v422, 1.0
  %v424 = vrcp.pop %v423
  %v425 = vmul.f32 %v423, %v424
  %v426 = vsub.f32 1.0, %v425
  %v427 = vmul.f32 %v424, %v426
  %v428 = vadd.f32 %v424, %v427
  %vm429 = vweird.f32 %v423
  %vm430 = vweird.f32 %v424
  %vm431 = vmor %vm429, %vm430
  %v432 = vsel %vm431, %v424, %v428
  %v433 = vand.u32 2147483647, %v423
  %vm434 = vcmp.eq.f32.partialorder %v433, 8.507059e+37
  %v435 = vand.u32 %v423, 2147483648
  %v436 = vor.u32 1.1754944e-38, %v435
  %v437 = vsel %vm434, %v436, %v432
  %v438 = vmul.f32 1.0, %v437
  %v439 = vtanh.pop %v419
  %v440 = vmul.f32 %v438, 0.0
  %442 = vrot.lane.b32.xlu0 %v439, 32
  %v443 = vpop.permute.xlu0 %442
  %v445 = vmul.f32 %v438, %v443
  %447 = vrot.lane.b32.xlu0 %v445, 32
  %v448 = vpop.permute.xlu0 %447
  %v450 = vadd.f32 %v440, %v448
  %v451 = vtanh.pop %v450
  %453 = vrot.lane.b32.xlu0 %v451, 32
  %v454 = vpop.permute.xlu0 %453
  %v456 = vmul.f32 %v438, %v454
  %v457 = vpack.c.bf16 %v456, %v456
  %459 = vrot.lane.b32.xlu0 %v457, 64
  %v460 = vpop.permute.xlu0 %459
  %v465 = vunpack.c.l.b16 %v348
  %v466 = vunpack.c.l.b16 %v349
  %v467 = vunpack.c.l.b16 %v350
  %v468 = vunpack.c.l.b16 %v351
  %v469 = vpack.c.b16 %v466, %v465
  %v470 = vpack.c.b16 %v468, %v467
  %v474 = vsel %vm402, %v460, 0
  %476 = vmatpush.bf16.msra.mxu0 0
  %477 = vmatpush.bf16.msra.mxu0 0
  %478 = vmatpush.bf16.msra.mxu0 0
  %479 = vmatpush.bf16.msra.mxu0 0
  %480 = vmatpush.bf16.msra.mxu0 0
  %481 = vmatpush.bf16.msra.mxu0 0
  %482 = vmatpush.bf16.msra.mxu0 %v470
  %483 = vmatpush.bf16.msra.mxu0 %v469
  %484 = vmatmul.bf16.gmra.mxu0 %v474
  %v485 = vpop.f32.mrf.mxu0
  %v486 = vadd.f32 0.0, %v485
  %v487 = vpop.f32.mrf.mxu0
  %488 = vdwg.mxu0
  %v489 = vadd.f32 %v486, %v197
  %v490 = vxor.u32 %v489, 2147483648
  %v491 = vmul.f32 %v490, 1.442695
  %v492 = vpow.pop %v491
  %v493 = vadd.f32 %v492, 1.0
  %v494 = vrcp.pop %v493
  %v495 = vmul.f32 %v493, %v494
  %v496 = vsub.f32 1.0, %v495
  %v497 = vmul.f32 %v494, %v496
  %v498 = vadd.f32 %v494, %v497
  %vm499 = vweird.f32 %v493
  %vm500 = vweird.f32 %v494
  %vm501 = vmor %vm499, %vm500
  %v502 = vsel %vm501, %v494, %v498
  %v503 = vand.u32 2147483647, %v493
  %vm504 = vcmp.eq.f32.partialorder %v503, 8.507059e+37
  %v505 = vand.u32 %v493, 2147483648
  %v506 = vor.u32 1.1754944e-38, %v505
  %v507 = vsel %vm504, %v506, %v502
  %v508 = vmul.f32 1.0, %v507
  %510 = vrot.lane.b32.xlu0 %v486, 96
  %v511 = vpop.permute.xlu0 %510
  %v513 = vmul.f32 %v508, %v511
  %v515 = vperm.slane %v352, 0
  %v517 = vadd.f32 %v513, %v515
  %519 = vrot.lane.b32.xlu0 %v513, 112
  %v520 = vpop.permute.xlu0 %519
  %v522 = vadd.f32 %v517, %v520
  %v523 = vmul.f32 %v522, %v522
  %v524 = vsel %vm174, %v523, 0.0
  %525 = vadd.xlane.f32.xlu0 %v524
  %v526 = vpop.xlane.xlu0 %525
  %v527 = vrsqrt.pop %v526
  %v528 = vmul.f32 %v527, %v526
  %v529 = vmul.f32 %v528, %v527
  %v530 = vmul.f32 0.5, %v529
  %v531 = vsub.f32 1.5, %v530
  %v532 = vmul.f32 %v527, %v531
  %vm533 = vweird.f32 %v526
  %vm534 = vweird.f32 %v527
  %vm535 = vmor %vm533, %vm534
  %v536 = vsel %vm535, %v527, %v532
  %v537 = vmul.f32 %v259, %v536
  %v538 = vmin.f32 %v537, 1.0
  %v539 = vmul.f32 %v538, %v522
  %v540 = vadd.f32 %v60, %v539
  %v541 = vpack.c.bf16 %v540, %v540
  %v543 = vperm.slane %v389, 0
  %v544 = vperm.slane %v389, 1
  %v545 = vperm.slane %v389, 2
  %v546 = vperm.slane %v389, 3
  %v555 = vunpack.c.l.b16 %v353
  %v556 = vunpack.c.h.b16 %v353
  %v557 = vunpack.c.l.b16 %v354
  %v558 = vunpack.c.h.b16 %v354
  %v559 = vunpack.c.l.b16 %v355
  %v560 = vunpack.c.h.b16 %v355
  %v561 = vunpack.c.l.b16 %v356
  %v562 = vunpack.c.h.b16 %v356
  %v563 = vpack.c.b16 %v559, %v555
  %v564 = vpack.c.b16 %v560, %v556
  %v565 = vpack.c.b16 %v561, %v557
  %v566 = vpack.c.b16 %v562, %v558
  %v572 = vsel %vm174, %v541, 0
  %574 = vmatpush.bf16.msra.mxu0 0
  %575 = vmatpush.bf16.msra.mxu0 0
  %576 = vmatpush.bf16.msra.mxu0 0
  %577 = vmatpush.bf16.msra.mxu0 0
  %578 = vmatpush.bf16.msra.mxu0 0
  %579 = vmatpush.bf16.msra.mxu0 0
  %580 = vmatpush.bf16.msra.mxu0 0
  %581 = vmatpush.bf16.msra.mxu0 %v563
  %582 = vmatmul.bf16.gmra.mxu0 %v572
  %v583 = vpop.f32.mrf.mxu0
  %v584 = vadd.f32 %v543, %v583
  %v585 = vpop.f32.mrf.mxu0
  %586 = vdwg.mxu0
  %587 = vmatpush.bf16.msra.mxu0 0
  %588 = vmatpush.bf16.msra.mxu0 0
  %589 = vmatpush.bf16.msra.mxu0 0
  %590 = vmatpush.bf16.msra.mxu0 0
  %591 = vmatpush.bf16.msra.mxu0 0
  %592 = vmatpush.bf16.msra.mxu0 0
  %593 = vmatpush.bf16.msra.mxu0 0
  %594 = vmatpush.bf16.msra.mxu0 %v564
  %595 = vmatmul.bf16.gmra.mxu0 %v572
  %v596 = vpop.f32.mrf.mxu0
  %v597 = vadd.f32 %v544, %v596
  %v598 = vpop.f32.mrf.mxu0
  %599 = vdwg.mxu0
  %600 = vmatpush.bf16.msra.mxu0 0
  %601 = vmatpush.bf16.msra.mxu0 0
  %602 = vmatpush.bf16.msra.mxu0 0
  %603 = vmatpush.bf16.msra.mxu0 0
  %604 = vmatpush.bf16.msra.mxu0 0
  %605 = vmatpush.bf16.msra.mxu0 0
  %606 = vmatpush.bf16.msra.mxu0 0
  %607 = vmatpush.bf16.msra.mxu0 %v565
  %608 = vmatmul.bf16.gmra.mxu0 %v572
  %v609 = vpop.f32.mrf.mxu0
  %v610 = vadd.f32 %v545, %v609
  %v611 = vpop.f32.mrf.mxu0
  %612 = vdwg.mxu0
  %613 = vmatpush.bf16.msra.mxu0 0
  %614 = vmatpush.bf16.msra.mxu0 0
  %615 = vmatpush.bf16.msra.mxu0 0
  %616 = vmatpush.bf16.msra.mxu0 0
  %617 = vmatpush.bf16.msra.mxu0 0
  %618 = vmatpush.bf16.msra.mxu0 0
  %619 = vmatpush.bf16.msra.mxu0 0
  %620 = vmatpush.bf16.msra.mxu0 %v566
  %621 = vmatmul.bf16.gmra.mxu0 %v572
  %v622 = vpop.f32.mrf.mxu0
  %v623 = vadd.f32 %v546, %v622
  %v624 = vpop.f32.mrf.mxu0
  %625 = vdwg.mxu0
  %v658 = vunpack.c.l.b16 %v357
  %v659 = vunpack.c.h.b16 %v357
  %v660 = vunpack.c.l.b16 %v358
  %v661 = vunpack.c.h.b16 %v358
  %v662 = vunpack.c.l.b16 %v359
  %v663 = vunpack.c.h.b16 %v359
  %v664 = vunpack.c.l.b16 %v360
  %v665 = vunpack.c.h.b16 %v360
  %v666 = vunpack.c.l.b16 %v361
  %v667 = vunpack.c.h.b16 %v361
  %v668 = vunpack.c.l.b16 %v362
  %v669 = vunpack.c.h.b16 %v362
  %v670 = vunpack.c.l.b16 %v363
  %v671 = vunpack.c.h.b16 %v363
  %v672 = vunpack.c.l.b16 %v364
  %v673 = vunpack.c.h.b16 %v364
  %v674 = vunpack.c.l.b16 %v365
  %v675 = vunpack.c.h.b16 %v365
  %v676 = vunpack.c.l.b16 %v366
  %v677 = vunpack.c.h.b16 %v366
  %v678 = vunpack.c.l.b16 %v367
  %v679 = vunpack.c.h.b16 %v367
  %v680 = vunpack.c.l.b16 %v368
  %v681 = vunpack.c.h.b16 %v368
  %v682 = vunpack.c.l.b16 %v369
  %v683 = vunpack.c.h.b16 %v369
  %v684 = vunpack.c.l.b16 %v370
  %v685 = vunpack.c.h.b16 %v370
  %v686 = vunpack.c.l.b16 %v371
  %v687 = vunpack.c.h.b16 %v371
  %v688 = vunpack.c.l.b16 %v372
  %v689 = vunpack.c.h.b16 %v372
  %v690 = vunpack.c.l.b16 %v373
  %v691 = vunpack.c.h.b16 %v373
  %v692 = vunpack.c.l.b16 %v374
  %v693 = vunpack.c.h.b16 %v374
  %v694 = vunpack.c.l.b16 %v375
  %v695 = vunpack.c.h.b16 %v375
  %v696 = vunpack.c.l.b16 %v376
  %v697 = vunpack.c.h.b16 %v376
  %v698 = vunpack.c.l.b16 %v377
  %v699 = vunpack.c.h.b16 %v377
  %v700 = vunpack.c.l.b16 %v378
  %v701 = vunpack.c.h.b16 %v378
  %v702 = vunpack.c.l.b16 %v379
  %v703 = vunpack.c.h.b16 %v379
  %v704 = vunpack.c.l.b16 %v380
  %v705 = vunpack.c.h.b16 %v380
  %v706 = vunpack.c.l.b16 %v381
  %v707 = vunpack.c.h.b16 %v381
  %v708 = vunpack.c.l.b16 %v382
  %v709 = vunpack.c.h.b16 %v382
  %v710 = vunpack.c.l.b16 %v383
  %v711 = vunpack.c.h.b16 %v383
  %v712 = vunpack.c.l.b16 %v384
  %v713 = vunpack.c.h.b16 %v384
  %v714 = vunpack.c.l.b16 %v385
  %v715 = vunpack.c.h.b16 %v385
  %v716 = vunpack.c.l.b16 %v386
  %v717 = vunpack.c.h.b16 %v386
  %v718 = vunpack.c.l.b16 %v387
  %v719 = vunpack.c.h.b16 %v387
  %v720 = vunpack.c.l.b16 %v388
  %v721 = vunpack.c.h.b16 %v388
  %v722 = vpack.c.b16 %v662, %v658
  %v723 = vpack.c.b16 %v663, %v659
  %v724 = vpack.c.b16 %v664, %v660
  %v725 = vpack.c.b16 %v665, %v661
  %v726 = vpack.c.b16 %v670, %v666
  %v727 = vpack.c.b16 %v671, %v667
  %v728 = vpack.c.b16 %v672, %v668
  %v729 = vpack.c.b16 %v673, %v669
  %v730 = vpack.c.b16 %v678, %v674
  %v731 = vpack.c.b16 %v679, %v675
  %v732 = vpack.c.b16 %v680, %v676
  %v733 = vpack.c.b16 %v681, %v677
  %v734 = vpack.c.b16 %v686, %v682
  %v735 = vpack.c.b16 %v687, %v683
  %v736 = vpack.c.b16 %v688, %v684
  %v737 = vpack.c.b16 %v689, %v685
  %v738 = vpack.c.b16 %v694, %v690
  %v739 = vpack.c.b16 %v695, %v691
  %v740 = vpack.c.b16 %v696, %v692
  %v741 = vpack.c.b16 %v697, %v693
  %v742 = vpack.c.b16 %v702, %v698
  %v743 = vpack.c.b16 %v703, %v699
  %v744 = vpack.c.b16 %v704, %v700
  %v745 = vpack.c.b16 %v705, %v701
  %v746 = vpack.c.b16 %v710, %v706
  %v747 = vpack.c.b16 %v711, %v707
  %v748 = vpack.c.b16 %v712, %v708
  %v749 = vpack.c.b16 %v713, %v709
  %v750 = vpack.c.b16 %v718, %v714
  %v751 = vpack.c.b16 %v719, %v715
  %v752 = vpack.c.b16 %v720, %v716
  %v753 = vpack.c.b16 %v721, %v717
  %786 = vmatpush.bf16.msra.mxu0 %v750
  %787 = vmatpush.bf16.msra.mxu0 %v746
  %788 = vmatpush.bf16.msra.mxu0 %v742
  %789 = vmatpush.bf16.msra.mxu0 %v738
  %790 = vmatpush.bf16.msra.mxu0 %v734
  %791 = vmatpush.bf16.msra.mxu0 %v730
  %792 = vmatpush.bf16.msra.mxu0 %v726
  %793 = vmatpush.bf16.msra.mxu0 %v722
  %794 = vmatmul.bf16.gmra.mxu0 0
  %v795 = vpop.f32.mrf.mxu0
  %v796 = vadd.f32 0.0, %v795
  %v797 = vpop.f32.mrf.mxu0
  %798 = vdwg.mxu0
  %799 = vmatpush.bf16.msra.mxu0 %v751
  %800 = vmatpush.bf16.msra.mxu0 %v747
  %801 = vmatpush.bf16.msra.mxu0 %v743
  %802 = vmatpush.bf16.msra.mxu0 %v739
  %803 = vmatpush.bf16.msra.mxu0 %v735
  %804 = vmatpush.bf16.msra.mxu0 %v731
  %805 = vmatpush.bf16.msra.mxu0 %v727
  %806 = vmatpush.bf16.msra.mxu0 %v723
  %807 = vmatmul.bf16.gmra.mxu0 0
  %v808 = vpop.f32.mrf.mxu0
  %v809 = vadd.f32 0.0, %v808
  %v810 = vpop.f32.mrf.mxu0
  %811 = vdwg.mxu0
  %812 = vmatpush.bf16.msra.mxu0 %v752
  %813 = vmatpush.bf16.msra.mxu0 %v748
  %814 = vmatpush.bf16.msra.mxu0 %v744
  %815 = vmatpush.bf16.msra.mxu0 %v740
  %816 = vmatpush.bf16.msra.mxu0 %v736
  %817 = vmatpush.bf16.msra.mxu0 %v732
  %818 = vmatpush.bf16.msra.mxu0 %v728
  %819 = vmatpush.bf16.msra.mxu0 %v724
  %820 = vmatmul.bf16.gmra.mxu0 0
  %v821 = vpop.f32.mrf.mxu0
  %v822 = vadd.f32 0.0, %v821
  %v823 = vpop.f32.mrf.mxu0
  %824 = vdwg.mxu0
  %825 = vmatpush.bf16.msra.mxu0 %v753
  %826 = vmatpush.bf16.msra.mxu0 %v749
  %827 = vmatpush.bf16.msra.mxu0 %v745
  %828 = vmatpush.bf16.msra.mxu0 %v741
  %829 = vmatpush.bf16.msra.mxu0 %v737
  %830 = vmatpush.bf16.msra.mxu0 %v733
  %831 = vmatpush.bf16.msra.mxu0 %v729
  %832 = vmatpush.bf16.msra.mxu0 %v725
  %833 = vmatmul.bf16.gmra.mxu0 0
  %v834 = vpop.f32.mrf.mxu0
  %v835 = vadd.f32 0.0, %v834
  %v836 = vpop.f32.mrf.mxu0
  %837 = vdwg.mxu0
  %v838 = vadd.f32 %v584, %v796
  %v839 = vadd.f32 %v597, %v809
  %v840 = vadd.f32 %v610, %v822
  %v841 = vadd.f32 %v623, %v835
  %v842 = vxor.u32 %v838, 2147483648
  %v843 = vxor.u32 %v839, 2147483648
  %v844 = vxor.u32 %v840, 2147483648
  %v845 = vmul.f32 %v842, 1.442695
  %v846 = vpow.pop %v845
  %v847 = vmul.f32 %v843, 1.442695
  %v848 = vpow.pop %v847
  %v849 = vmul.f32 %v844, 1.442695
  %v850 = vpow.pop %v849
  %v851 = vadd.f32 %v846, 1.0
  %v852 = vadd.f32 %v848, 1.0
  %v853 = vadd.f32 %v850, 1.0
  %v854 = vrcp.pop %v851
  %v855 = vmul.f32 %v851, %v854
  %v856 = vsub.f32 1.0, %v855
  %v857 = vmul.f32 %v854, %v856
  %v858 = vadd.f32 %v854, %v857
  %vm859 = vweird.f32 %v851
  %vm860 = vweird.f32 %v854
  %vm861 = vmor %vm859, %vm860
  %v862 = vsel %vm861, %v854, %v858
  %v863 = vand.u32 2147483647, %v851
  %vm864 = vcmp.eq.f32.partialorder %v863, 8.507059e+37
  %v865 = vand.u32 %v851, 2147483648
  %v866 = vor.u32 1.1754944e-38, %v865
  %v867 = vsel %vm864, %v866, %v862
  %v868 = vmul.f32 1.0, %v867
  %v869 = vrcp.pop %v852
  %v870 = vmul.f32 %v852, %v869
  %v871 = vsub.f32 1.0, %v870
  %v872 = vmul.f32 %v869, %v871
  %v873 = vadd.f32 %v869, %v872
  %vm874 = vweird.f32 %v852
  %vm875 = vweird.f32 %v869
  %vm876 = vmor %vm874, %vm875
  %v877 = vsel %vm876, %v869, %v873
  %v878 = vand.u32 2147483647, %v852
  %vm879 = vcmp.eq.f32.partialorder %v878, 8.507059e+37
  %v880 = vand.u32 %v852, 2147483648
  %v881 = vor.u32 1.1754944e-38, %v880
  %v882 = vsel %vm879, %v881, %v877
  %v883 = vmul.f32 1.0, %v882
  %v884 = vrcp.pop %v853
  %v885 = vmul.f32 %v853, %v884
  %v886 = vsub.f32 1.0, %v885
  %v887 = vmul.f32 %v884, %v886
  %v888 = vadd.f32 %v884, %v887
  %vm889 = vweird.f32 %v853
  %vm890 = vweird.f32 %v884
  %vm891 = vmor %vm889, %vm890
  %v892 = vsel %vm891, %v884, %v888
  %v893 = vand.u32 2147483647, %v853
  %vm894 = vcmp.eq.f32.partialorder %v893, 8.507059e+37
  %v895 = vand.u32 %v853, 2147483648
  %v896 = vor.u32 1.1754944e-38, %v895
  %v897 = vsel %vm894, %v896, %v892
  %v898 = vmul.f32 1.0, %v897
  %v899 = vtanh.pop %v841
  %v900 = vmul.f32 %v883, 0.0
  %v901 = vmul.f32 %v868, %v899
  %v902 = vadd.f32 %v900, %v901
  %v903 = vtanh.pop %v902
  %v904 = vmul.f32 %v898, %v903
  %905 = vmatpush.bf16.msra.mxu0 0
  %906 = vmatpush.bf16.msra.mxu0 0
  %907 = vmatpush.bf16.msra.mxu0 0
  %908 = vmatpush.bf16.msra.mxu0 0
  %909 = vmatpush.bf16.msra.mxu0 0
  %910 = vmatpush.bf16.msra.mxu0 0
  %911 = vmatpush.bf16.msra.mxu0 %v399
  %912 = vmatpush.bf16.msra.mxu0 %v398
  %913 = vmatmul.bf16.gmra.mxu0 %v474
  %v914 = vpop.f32.mrf.mxu0
  %v915 = vadd.f32 0.0, %v914
  %v916 = vpop.f32.mrf.mxu0
  %917 = vdwg.mxu0
  %v918 = vadd.f32 %v141, %v915
  %v919 = vxor.u32 %v918, 2147483648
  %v920 = vmul.f32 %v919, 1.442695
  %v921 = vpow.pop %v920
  %v922 = vadd.f32 %v921, 1.0
  %v923 = vrcp.pop %v922
  %v924 = vmul.f32 %v922, %v923
  %v925 = vsub.f32 1.0, %v924
  %v926 = vmul.f32 %v923, %v925
  %v927 = vadd.f32 %v923, %v926
  %vm928 = vweird.f32 %v922
  %vm929 = vweird.f32 %v923
  %vm930 = vmor %vm928, %vm929
  %v931 = vsel %vm930, %v923, %v927
  %v932 = vand.u32 2147483647, %v922
  %vm933 = vcmp.eq.f32.partialorder %v932, 8.507059e+37
  %v934 = vand.u32 %v922, 2147483648
  %v935 = vor.u32 1.1754944e-38, %v934
  %v936 = vsel %vm933, %v935, %v931
  %v937 = vmul.f32 1.0, %v936
  %v938 = vtanh.pop %v918
  %v939 = vmul.f32 %v937, %v450
  %941 = vrot.lane.b32.xlu0 %v938, 32
  %v942 = vpop.permute.xlu0 %941
  %v944 = vmul.f32 %v937, %v942
  %946 = vrot.lane.b32.xlu0 %v944, 32
  %v947 = vpop.permute.xlu0 %946
  %v949 = vadd.f32 %v939, %v947
  %v950 = vtanh.pop %v949
  %952 = vrot.lane.b32.xlu0 %v950, 32
  %v953 = vpop.permute.xlu0 %952
  %v955 = vmul.f32 %v937, %v953
  %v956 = vpack.c.bf16 %v955, %v955
  %958 = vrot.lane.b32.xlu0 %v956, 64
  %v959 = vpop.permute.xlu0 %958
  %v961 = vsel %vm402, %v959, 0
  %963 = vmatpush.bf16.msra.mxu0 0
  %964 = vmatpush.bf16.msra.mxu0 0
  %965 = vmatpush.bf16.msra.mxu0 0
  %966 = vmatpush.bf16.msra.mxu0 0
  %967 = vmatpush.bf16.msra.mxu0 0
  %968 = vmatpush.bf16.msra.mxu0 0
  %969 = vmatpush.bf16.msra.mxu0 %v470
  %970 = vmatpush.bf16.msra.mxu0 %v469
  %971 = vmatmul.bf16.gmra.mxu0 %v961
  %v972 = vpop.f32.mrf.mxu0
  %v973 = vadd.f32 0.0, %v972
  %v974 = vpop.f32.mrf.mxu0
  %975 = vdwg.mxu0
  %v976 = vadd.f32 %v973, %v199
  %v977 = vxor.u32 %v976, 2147483648
  %v978 = vmul.f32 %v977, 1.442695
  %v979 = vpow.pop %v978
  %v980 = vadd.f32 %v979, 1.0
  %v981 = vrcp.pop %v980
  %v982 = vmul.f32 %v980, %v981
  %v983 = vsub.f32 1.0, %v982
  %v984 = vmul.f32 %v981, %v983
  %v985 = vadd.f32 %v981, %v984
  %vm986 = vweird.f32 %v980
  %vm987 = vweird.f32 %v981
  %vm988 = vmor %vm986, %vm987
  %v989 = vsel %vm988, %v981, %v985
  %v990 = vand.u32 2147483647, %v980
  %vm991 = vcmp.eq.f32.partialorder %v990, 8.507059e+37
  %v992 = vand.u32 %v980, 2147483648
  %v993 = vor.u32 1.1754944e-38, %v992
  %v994 = vsel %vm991, %v993, %v989
  %v995 = vmul.f32 1.0, %v994
  %997 = vrot.lane.b32.xlu0 %v973, 96
  %v998 = vpop.permute.xlu0 %997
  %v1000 = vmul.f32 %v995, %v998
  %v1001 = vadd.f32 %v1000, %v515
  %1003 = vrot.lane.b32.xlu0 %v1000, 112
  %v1004 = vpop.permute.xlu0 %1003
  %v1006 = vadd.f32 %v1001, %v1004
  %v1007 = vmul.f32 %v1006, %v1006
  %v1008 = vsel %vm174, %v1007, 0.0
  %1009 = vadd.xlane.f32.xlu0 %v1008
  %v1010 = vpop.xlane.xlu0 %1009
  %v1011 = vrsqrt.pop %v1010
  %v1012 = vmul.f32 %v1011, %v1010
  %v1013 = vmul.f32 %v1012, %v1011
  %v1014 = vmul.f32 0.5, %v1013
  %v1015 = vsub.f32 1.5, %v1014
  %v1016 = vmul.f32 %v1011, %v1015
  %vm1017 = vweird.f32 %v1010
  %vm1018 = vweird.f32 %v1011
  %vm1019 = vmor %vm1017, %vm1018
  %v1020 = vsel %vm1019, %v1011, %v1016
  %v1021 = vmul.f32 %v271, %v1020
  %v1022 = vmin.f32 %v1021, 1.0
  %v1023 = vmul.f32 %v1022, %v1006
  %v1024 = vadd.f32 %v61, %v1023
  %v1025 = vpack.c.bf16 %v1024, %v1024
  %v1027 = vsel %vm174, %v1025, 0
  %1029 = vmatpush.bf16.msra.mxu0 0
  %1030 = vmatpush.bf16.msra.mxu0 0
  %1031 = vmatpush.bf16.msra.mxu0 0
  %1032 = vmatpush.bf16.msra.mxu0 0
  %1033 = vmatpush.bf16.msra.mxu0 0
  %1034 = vmatpush.bf16.msra.mxu0 0
  %1035 = vmatpush.bf16.msra.mxu0 0
  %1036 = vmatpush.bf16.msra.mxu0 %v563
  %1037 = vmatmul.bf16.gmra.mxu0 %v1027
  %v1038 = vpop.f32.mrf.mxu0
  %v1039 = vadd.f32 %v543, %v1038
  %v1040 = vpop.f32.mrf.mxu0
  %1041 = vdwg.mxu0
  %1042 = vmatpush.bf16.msra.mxu0 0
  %1043 = vmatpush.bf16.msra.mxu0 0
  %1044 = vmatpush.bf16.msra.mxu0 0
  %1045 = vmatpush.bf16.msra.mxu0 0
  %1046 = vmatpush.bf16.msra.mxu0 0
  %1047 = vmatpush.bf16.msra.mxu0 0
  %1048 = vmatpush.bf16.msra.mxu0 0
  %1049 = vmatpush.bf16.msra.mxu0 %v564
  %1050 = vmatmul.bf16.gmra.mxu0 %v1027
  %v1051 = vpop.f32.mrf.mxu0
  %v1052 = vadd.f32 %v544, %v1051
  %v1053 = vpop.f32.mrf.mxu0
  %1054 = vdwg.mxu0
  %1055 = vmatpush.bf16.msra.mxu0 0
  %1056 = vmatpush.bf16.msra.mxu0 0
  %1057 = vmatpush.bf16.msra.mxu0 0
  %1058 = vmatpush.bf16.msra.mxu0 0
  %1059 = vmatpush.bf16.msra.mxu0 0
  %1060 = vmatpush.bf16.msra.mxu0 0
  %1061 = vmatpush.bf16.msra.mxu0 0
  %1062 = vmatpush.bf16.msra.mxu0 %v565
  %1063 = vmatmul.bf16.gmra.mxu0 %v1027
  %v1064 = vpop.f32.mrf.mxu0
  %v1065 = vadd.f32 %v545, %v1064
  %v1066 = vpop.f32.mrf.mxu0
  %1067 = vdwg.mxu0
  %1068 = vmatpush.bf16.msra.mxu0 0
  %1069 = vmatpush.bf16.msra.mxu0 0
  %1070 = vmatpush.bf16.msra.mxu0 0
  %1071 = vmatpush.bf16.msra.mxu0 0
  %1072 = vmatpush.bf16.msra.mxu0 0
  %1073 = vmatpush.bf16.msra.mxu0 0
  %1074 = vmatpush.bf16.msra.mxu0 0
  %1075 = vmatpush.bf16.msra.mxu0 %v566
  %1076 = vmatmul.bf16.gmra.mxu0 %v1027
  %v1077 = vpop.f32.mrf.mxu0
  %v1078 = vadd.f32 %v546, %v1077
  %v1079 = vpop.f32.mrf.mxu0
  %1080 = vdwg.mxu0
  %v1081 = vpack.c.bf16 %v904, %v904
  %1082 = vmatpush.bf16.msra.mxu0 %v750
  %1083 = vmatpush.bf16.msra.mxu0 %v746
  %1084 = vmatpush.bf16.msra.mxu0 %v742
  %1085 = vmatpush.bf16.msra.mxu0 %v738
  %1086 = vmatpush.bf16.msra.mxu0 %v734
  %1087 = vmatpush.bf16.msra.mxu0 %v730
  %1088 = vmatpush.bf16.msra.mxu0 %v726
  %1089 = vmatpush.bf16.msra.mxu0 %v722
  %1090 = vmatmul.bf16.gmra.mxu0 %v1081
  %v1091 = vpop.f32.mrf.mxu0
  %v1092 = vadd.f32 0.0, %v1091
  %v1093 = vpop.f32.mrf.mxu0
  %1094 = vdwg.mxu0
  %1095 = vmatpush.bf16.msra.mxu0 %v751
  %1096 = vmatpush.bf16.msra.mxu0 %v747
  %1097 = vmatpush.bf16.msra.mxu0 %v743
  %1098 = vmatpush.bf16.msra.mxu0 %v739
  %1099 = vmatpush.bf16.msra.mxu0 %v735
  %1100 = vmatpush.bf16.msra.mxu0 %v731
  %1101 = vmatpush.bf16.msra.mxu0 %v727
  %1102 = vmatpush.bf16.msra.mxu0 %v723
  %1103 = vmatmul.bf16.gmra.mxu0 %v1081
  %v1104 = vpop.f32.mrf.mxu0
  %v1105 = vadd.f32 0.0, %v1104
  %v1106 = vpop.f32.mrf.mxu0
  %1107 = vdwg.mxu0
  %1108 = vmatpush.bf16.msra.mxu0 %v752
  %1109 = vmatpush.bf16.msra.mxu0 %v748
  %1110 = vmatpush.bf16.msra.mxu0 %v744
  %1111 = vmatpush.bf16.msra.mxu0 %v740
  %1112 = vmatpush.bf16.msra.mxu0 %v736
  %1113 = vmatpush.bf16.msra.mxu0 %v732
  %1114 = vmatpush.bf16.msra.mxu0 %v728
  %1115 = vmatpush.bf16.msra.mxu0 %v724
  %1116 = vmatmul.bf16.gmra.mxu0 %v1081
  %v1117 = vpop.f32.mrf.mxu0
  %v1118 = vadd.f32 0.0, %v1117
  %v1119 = vpop.f32.mrf.mxu0
  %1120 = vdwg.mxu0
  %1121 = vmatpush.bf16.msra.mxu0 %v753
  %1122 = vmatpush.bf16.msra.mxu0 %v749
  %1123 = vmatpush.bf16.msra.mxu0 %v745
  %1124 = vmatpush.bf16.msra.mxu0 %v741
  %1125 = vmatpush.bf16.msra.mxu0 %v737
  %1126 = vmatpush.bf16.msra.mxu0 %v733
  %1127 = vmatpush.bf16.msra.mxu0 %v729
  %1128 = vmatpush.bf16.msra.mxu0 %v725
  %1129 = vmatmul.bf16.gmra.mxu0 %v1081
  %v1130 = vpop.f32.mrf.mxu0
  %v1131 = vadd.f32 0.0, %v1130
  %v1132 = vpop.f32.mrf.mxu0
  %1133 = vdwg.mxu0
  %v1134 = vadd.f32 %v1039, %v1092
  %v1135 = vadd.f32 %v1052, %v1105
  %v1136 = vadd.f32 %v1065, %v1118
  %v1137 = vadd.f32 %v1078, %v1131
  %v1138 = vxor.u32 %v1134, 2147483648
  %v1139 = vxor.u32 %v1135, 2147483648
  %v1140 = vxor.u32 %v1136, 2147483648
  %v1141 = vmul.f32 %v1138, 1.442695
  %v1142 = vpow.pop %v1141
  %v1143 = vmul.f32 %v1139, 1.442695
  %v1144 = vpow.pop %v1143
  %v1145 = vmul.f32 %v1140, 1.442695
  %v1146 = vpow.pop %v1145
  %v1147 = vadd.f32 %v1142, 1.0
  %v1148 = vadd.f32 %v1144, 1.0
  %v1149 = vadd.f32 %v1146, 1.0
  %v1150 = vrcp.pop %v1147
  %v1151 = vmul.f32 %v1147, %v1150
  %v1152 = vsub.f32 1.0, %v1151
  %v1153 = vmul.f32 %v1150, %v1152
  %v1154 = vadd.f32 %v1150, %v1153
  %vm1155 = vweird.f32 %v1147
  %vm1156 = vweird.f32 %v1150
  %vm1157 = vmor %vm1155, %vm1156
  %v1158 = vsel %vm1157, %v1150, %v1154
  %v1159 = vand.u32 2147483647, %v1147
  %vm1160 = vcmp.eq.f32.partialorder %v1159, 8.507059e+37
  %v1161 = vand.u32 %v1147, 2147483648
  %v1162 = vor.u32 1.1754944e-38, %v1161
  %v1163 = vsel %vm1160, %v1162, %v1158
  %v1164 = vmul.f32 1.0, %v1163
  %v1165 = vrcp.pop %v1148
  %v1166 = vmul.f32 %v1148, %v1165
  %v1167 = vsub.f32 1.0, %v1166
  %v1168 = vmul.f32 %v1165, %v1167
  %v1169 = vadd.f32 %v1165, %v1168
  %vm1170 = vweird.f32 %v1148
  %vm1171 = vweird.f32 %v1165
  %vm1172 = vmor %vm1170, %vm1171
  %v1173 = vsel %vm1172, %v1165, %v1169
  %v1174 = vand.u32 2147483647, %v1148
  %vm1175 = vcmp.eq.f32.partialorder %v1174, 8.507059e+37
  %v1176 = vand.u32 %v1148, 2147483648
  %v1177 = vor.u32 1.1754944e-38, %v1176
  %v1178 = vsel %vm1175, %v1177, %v1173
  %v1179 = vmul.f32 1.0, %v1178
  %v1180 = vrcp.pop %v1149
  %v1181 = vmul.f32 %v1149, %v1180
  %v1182 = vsub.f32 1.0, %v1181
  %v1183 = vmul.f32 %v1180, %v1182
  %v1184 = vadd.f32 %v1180, %v1183
  %vm1185 = vweird.f32 %v1149
  %vm1186 = vweird.f32 %v1180
  %vm1187 = vmor %vm1185, %vm1186
  %v1188 = vsel %vm1187, %v1180, %v1184
  %v1189 = vand.u32 2147483647, %v1149
  %vm1190 = vcmp.eq.f32.partialorder %v1189, 8.507059e+37
  %v1191 = vand.u32 %v1149, 2147483648
  %v1192 = vor.u32 1.1754944e-38, %v1191
  %v1193 = vsel %vm1190, %v1192, %v1188
  %v1194 = vmul.f32 1.0, %v1193
  %v1195 = vtanh.pop %v1137
  %v1196 = vmul.f32 %v1179, %v902
  %v1197 = vmul.f32 %v1164, %v1195
  %v1198 = vadd.f32 %v1196, %v1197
  %v1199 = vtanh.pop %v1198
  %v1200 = vmul.f32 %v1194, %v1199
  %1201 = vmatpush.bf16.msra.mxu0 0
  %1202 = vmatpush.bf16.msra.mxu0 0
  %1203 = vmatpush.bf16.msra.mxu0 0
  %1204 = vmatpush.bf16.msra.mxu0 0
  %1205 = vmatpush.bf16.msra.mxu0 0
  %1206 = vmatpush.bf16.msra.mxu0 0
  %1207 = vmatpush.bf16.msra.mxu0 %v399
  %1208 = vmatpush.bf16.msra.mxu0 %v398
  %1209 = vmatmul.bf16.gmra.mxu0 %v961
  %v1210 = vpop.f32.mrf.mxu0
  %v1211 = vadd.f32 0.0, %v1210
  %v1212 = vpop.f32.mrf.mxu0
  %1213 = vdwg.mxu0
  %v1214 = vadd.f32 %v144, %v1211
  %v1215 = vxor.u32 %v1214, 2147483648
  %v1216 = vmul.f32 %v1215, 1.442695
  %v1217 = vpow.pop %v1216
  %v1218 = vadd.f32 %v1217, 1.0
  %v1219 = vrcp.pop %v1218
  %v1220 = vmul.f32 %v1218, %v1219
  %v1221 = vsub.f32 1.0, %v1220
  %v1222 = vmul.f32 %v1219, %v1221
  %v1223 = vadd.f32 %v1219, %v1222
  %vm1224 = vweird.f32 %v1218
  %vm1225 = vweird.f32 %v1219
  %vm1226 = vmor %vm1224, %vm1225
  %v1227 = vsel %vm1226, %v1219, %v1223
  %v1228 = vand.u32 2147483647, %v1218
  %vm1229 = vcmp.eq.f32.partialorder %v1228, 8.507059e+37
  %v1230 = vand.u32 %v1218, 2147483648
  %v1231 = vor.u32 1.1754944e-38, %v1230
  %v1232 = vsel %vm1229, %v1231, %v1227
  %v1233 = vmul.f32 1.0, %v1232
  %v1234 = vtanh.pop %v1214
  %v1235 = vmul.f32 %v1233, %v949
  %1237 = vrot.lane.b32.xlu0 %v1234, 32
  %v1238 = vpop.permute.xlu0 %1237
  %v1240 = vmul.f32 %v1233, %v1238
  %1242 = vrot.lane.b32.xlu0 %v1240, 32
  %v1243 = vpop.permute.xlu0 %1242
  %v1245 = vadd.f32 %v1235, %v1243
  %v1246 = vtanh.pop %v1245
  %1248 = vrot.lane.b32.xlu0 %v1246, 32
  %v1249 = vpop.permute.xlu0 %1248
  %v1251 = vmul.f32 %v1233, %v1249
  %v1252 = vpack.c.bf16 %v1251, %v1251
  %1254 = vrot.lane.b32.xlu0 %v1252, 64
  %v1255 = vpop.permute.xlu0 %1254
  %v1257 = vsel %vm402, %v1255, 0
  %1259 = vmatpush.bf16.msra.mxu0 0
  %1260 = vmatpush.bf16.msra.mxu0 0
  %1261 = vmatpush.bf16.msra.mxu0 0
  %1262 = vmatpush.bf16.msra.mxu0 0
  %1263 = vmatpush.bf16.msra.mxu0 0
  %1264 = vmatpush.bf16.msra.mxu0 0
  %1265 = vmatpush.bf16.msra.mxu0 %v470
  %1266 = vmatpush.bf16.msra.mxu0 %v469
  %1267 = vmatmul.bf16.gmra.mxu0 %v1257
  %v1268 = vpop.f32.mrf.mxu0
  %v1269 = vadd.f32 0.0, %v1268
  %v1270 = vpop.f32.mrf.mxu0
  %1271 = vdwg.mxu0
  %v1272 = vadd.f32 %v1269, %v202
  %v1273 = vxor.u32 %v1272, 2147483648
  %v1274 = vmul.f32 %v1273, 1.442695
  %v1275 = vpow.pop %v1274
  %v1276 = vadd.f32 %v1275, 1.0
  %v1277 = vrcp.pop %v1276
  %v1278 = vmul.f32 %v1276, %v1277
  %v1279 = vsub.f32 1.0, %v1278
  %v1280 = vmul.f32 %v1277, %v1279
  %v1281 = vadd.f32 %v1277, %v1280
  %vm1282 = vweird.f32 %v1276
  %vm1283 = vweird.f32 %v1277
  %vm1284 = vmor %vm1282, %vm1283
  %v1285 = vsel %vm1284, %v1277, %v1281
  %v1286 = vand.u32 2147483647, %v1276
  %vm1287 = vcmp.eq.f32.partialorder %v1286, 8.507059e+37
  %v1288 = vand.u32 %v1276, 2147483648
  %v1289 = vor.u32 1.1754944e-38, %v1288
  %v1290 = vsel %vm1287, %v1289, %v1285
  %v1291 = vmul.f32 1.0, %v1290
  %1293 = vrot.lane.b32.xlu0 %v1269, 96
  %v1294 = vpop.permute.xlu0 %1293
  %v1296 = vmul.f32 %v1291, %v1294
  %v1297 = vadd.f32 %v1296, %v515
  %1299 = vrot.lane.b32.xlu0 %v1296, 112
  %v1300 = vpop.permute.xlu0 %1299
  %v1302 = vadd.f32 %v1297, %v1300
  %v1303 = vmul.f32 %v1302, %v1302
  %v1304 = vsel %vm174, %v1303, 0.0
  %1305 = vadd.xlane.f32.xlu0 %v1304
  %v1306 = vpop.xlane.xlu0 %1305
  %v1307 = vrsqrt.pop %v1306
  %v1308 = vmul.f32 %v1307, %v1306
  %v1309 = vmul.f32 %v1308, %v1307
  %v1310 = vmul.f32 0.5, %v1309
  %v1311 = vsub.f32 1.5, %v1310
  %v1312 = vmul.f32 %v1307, %v1311
  %vm1313 = vweird.f32 %v1306
  %vm1314 = vweird.f32 %v1307
  %vm1315 = vmor %vm1313, %vm1314
  %v1316 = vsel %vm1315, %v1307, %v1312
  %v1317 = vmul.f32 %v283, %v1316
  %v1318 = vmin.f32 %v1317, 1.0
  %v1319 = vmul.f32 %v1318, %v1302
  %v1320 = vadd.f32 %v62, %v1319
  %v1321 = vpack.c.bf16 %v1320, %v1320
  %v1323 = vsel %vm174, %v1321, 0
  %1325 = vmatpush.bf16.msra.mxu0 0
  %1326 = vmatpush.bf16.msra.mxu0 0
  %1327 = vmatpush.bf16.msra.mxu0 0
  %1328 = vmatpush.bf16.msra.mxu0 0
  %1329 = vmatpush.bf16.msra.mxu0 0
  %1330 = vmatpush.bf16.msra.mxu0 0
  %1331 = vmatpush.bf16.msra.mxu0 0
  %1332 = vmatpush.bf16.msra.mxu0 %v563
  %1333 = vmatmul.bf16.gmra.mxu0 %v1323
  %v1334 = vpop.f32.mrf.mxu0
  %v1335 = vadd.f32 %v543, %v1334
  %v1336 = vpop.f32.mrf.mxu0
  %1337 = vdwg.mxu0
  %1338 = vmatpush.bf16.msra.mxu0 0
  %1339 = vmatpush.bf16.msra.mxu0 0
  %1340 = vmatpush.bf16.msra.mxu0 0
  %1341 = vmatpush.bf16.msra.mxu0 0
  %1342 = vmatpush.bf16.msra.mxu0 0
  %1343 = vmatpush.bf16.msra.mxu0 0
  %1344 = vmatpush.bf16.msra.mxu0 0
  %1345 = vmatpush.bf16.msra.mxu0 %v564
  %1346 = vmatmul.bf16.gmra.mxu0 %v1323
  %v1347 = vpop.f32.mrf.mxu0
  %v1348 = vadd.f32 %v544, %v1347
  %v1349 = vpop.f32.mrf.mxu0
  %1350 = vdwg.mxu0
  %1351 = vmatpush.bf16.msra.mxu0 0
  %1352 = vmatpush.bf16.msra.mxu0 0
  %1353 = vmatpush.bf16.msra.mxu0 0
  %1354 = vmatpush.bf16.msra.mxu0 0
  %1355 = vmatpush.bf16.msra.mxu0 0
  %1356 = vmatpush.bf16.msra.mxu0 0
  %1357 = vmatpush.bf16.msra.mxu0 0
  %1358 = vmatpush.bf16.msra.mxu0 %v565
  %1359 = vmatmul.bf16.gmra.mxu0 %v1323
  %v1360 = vpop.f32.mrf.mxu0
  %v1361 = vadd.f32 %v545, %v1360
  %v1362 = vpop.f32.mrf.mxu0
  %1363 = vdwg.mxu0
  %1364 = vmatpush.bf16.msra.mxu0 0
  %1365 = vmatpush.bf16.msra.mxu0 0
  %1366 = vmatpush.bf16.msra.mxu0 0
  %1367 = vmatpush.bf16.msra.mxu0 0
  %1368 = vmatpush.bf16.msra.mxu0 0
  %1369 = vmatpush.bf16.msra.mxu0 0
  %1370 = vmatpush.bf16.msra.mxu0 0
  %1371 = vmatpush.bf16.msra.mxu0 %v566
  %1372 = vmatmul.bf16.gmra.mxu0 %v1323
  %v1373 = vpop.f32.mrf.mxu0
  %v1374 = vadd.f32 %v546, %v1373
  %v1375 = vpop.f32.mrf.mxu0
  %1376 = vdwg.mxu0
  %v1377 = vpack.c.bf16 %v1200, %v1200
  %1378 = vmatpush.bf16.msra.mxu0 %v750
  %1379 = vmatpush.bf16.msra.mxu0 %v746
  %1380 = vmatpush.bf16.msra.mxu0 %v742
  %1381 = vmatpush.bf16.msra.mxu0 %v738
  %1382 = vmatpush.bf16.msra.mxu0 %v734
  %1383 = vmatpush.bf16.msra.mxu0 %v730
  %1384 = vmatpush.bf16.msra.mxu0 %v726
  %1385 = vmatpush.bf16.msra.mxu0 %v722
  %1386 = vmatmul.bf16.gmra.mxu0 %v1377
  %v1387 = vpop.f32.mrf.mxu0
  %v1388 = vadd.f32 0.0, %v1387
  %v1389 = vpop.f32.mrf.mxu0
  %1390 = vdwg.mxu0
  %1391 = vmatpush.bf16.msra.mxu0 %v751
  %1392 = vmatpush.bf16.msra.mxu0 %v747
  %1393 = vmatpush.bf16.msra.mxu0 %v743
  %1394 = vmatpush.bf16.msra.mxu0 %v739
  %1395 = vmatpush.bf16.msra.mxu0 %v735
  %1396 = vmatpush.bf16.msra.mxu0 %v731
  %1397 = vmatpush.bf16.msra.mxu0 %v727
  %1398 = vmatpush.bf16.msra.mxu0 %v723
  %1399 = vmatmul.bf16.gmra.mxu0 %v1377
  %v1400 = vpop.f32.mrf.mxu0
  %v1401 = vadd.f32 0.0, %v1400
  %v1402 = vpop.f32.mrf.mxu0
  %1403 = vdwg.mxu0
  %1404 = vmatpush.bf16.msra.mxu0 %v752
  %1405 = vmatpush.bf16.msra.mxu0 %v748
  %1406 = vmatpush.bf16.msra.mxu0 %v744
  %1407 = vmatpush.bf16.msra.mxu0 %v740
  %1408 = vmatpush.bf16.msra.mxu0 %v736
  %1409 = vmatpush.bf16.msra.mxu0 %v732
  %1410 = vmatpush.bf16.msra.mxu0 %v728
  %1411 = vmatpush.bf16.msra.mxu0 %v724
  %1412 = vmatmul.bf16.gmra.mxu0 %v1377
  %v1413 = vpop.f32.mrf.mxu0
  %v1414 = vadd.f32 0.0, %v1413
  %v1415 = vpop.f32.mrf.mxu0
  %1416 = vdwg.mxu0
  %1417 = vmatpush.bf16.msra.mxu0 %v753
  %1418 = vmatpush.bf16.msra.mxu0 %v749
  %1419 = vmatpush.bf16.msra.mxu0 %v745
  %1420 = vmatpush.bf16.msra.mxu0 %v741
  %1421 = vmatpush.bf16.msra.mxu0 %v737
  %1422 = vmatpush.bf16.msra.mxu0 %v733
  %1423 = vmatpush.bf16.msra.mxu0 %v729
  %1424 = vmatpush.bf16.msra.mxu0 %v725
  %1425 = vmatmul.bf16.gmra.mxu0 %v1377
  %v1426 = vpop.f32.mrf.mxu0
  %v1427 = vadd.f32 0.0, %v1426
  %v1428 = vpop.f32.mrf.mxu0
  %1429 = vdwg.mxu0
  %v1430 = vadd.f32 %v1335, %v1388
  %v1431 = vadd.f32 %v1348, %v1401
  %v1432 = vadd.f32 %v1361, %v1414
  %v1433 = vadd.f32 %v1374, %v1427
  %v1434 = vxor.u32 %v1430, 2147483648
  %v1435 = vxor.u32 %v1431, 2147483648
  %v1436 = vxor.u32 %v1432, 2147483648
  %v1437 = vmul.f32 %v1434, 1.442695
  %v1438 = vpow.pop %v1437
  %v1439 = vmul.f32 %v1435, 1.442695
  %v1440 = vpow.pop %v1439
  %v1441 = vmul.f32 %v1436, 1.442695
  %v1442 = vpow.pop %v1441
  %v1443 = vadd.f32 %v1438, 1.0
  %v1444 = vadd.f32 %v1440, 1.0
  %v1445 = vadd.f32 %v1442, 1.0
  %v1446 = vrcp.pop %v1443
  %v1447 = vmul.f32 %v1443, %v1446
  %v1448 = vsub.f32 1.0, %v1447
  %v1449 = vmul.f32 %v1446, %v1448
  %v1450 = vadd.f32 %v1446, %v1449
  %vm1451 = vweird.f32 %v1443
  %vm1452 = vweird.f32 %v1446
  %vm1453 = vmor %vm1451, %vm1452
  %v1454 = vsel %vm1453, %v1446, %v1450
  %v1455 = vand.u32 2147483647, %v1443
  %vm1456 = vcmp.eq.f32.partialorder %v1455, 8.507059e+37
  %v1457 = vand.u32 %v1443, 2147483648
  %v1458 = vor.u32 1.1754944e-38, %v1457
  %v1459 = vsel %vm1456, %v1458, %v1454
  %v1460 = vmul.f32 1.0, %v1459
  %v1461 = vrcp.pop %v1444
  %v1462 = vmul.f32 %v1444, %v1461
  %v1463 = vsub.f32 1.0, %v1462
  %v1464 = vmul.f32 %v1461, %v1463
  %v1465 = vadd.f32 %v1461, %v1464
  %vm1466 = vweird.f32 %v1444
  %vm1467 = vweird.f32 %v1461
  %vm1468 = vmor %vm1466, %vm1467
  %v1469 = vsel %vm1468, %v1461, %v1465
  %v1470 = vand.u32 2147483647, %v1444
  %vm1471 = vcmp.eq.f32.partialorder %v1470, 8.507059e+37
  %v1472 = vand.u32 %v1444, 2147483648
  %v1473 = vor.u32 1.1754944e-38, %v1472
  %v1474 = vsel %vm1471, %v1473, %v1469
  %v1475 = vmul.f32 1.0, %v1474
  %v1476 = vrcp.pop %v1445
  %v1477 = vmul.f32 %v1445, %v1476
  %v1478 = vsub.f32 1.0, %v1477
  %v1479 = vmul.f32 %v1476, %v1478
  %v1480 = vadd.f32 %v1476, %v1479
  %vm1481 = vweird.f32 %v1445
  %vm1482 = vweird.f32 %v1476
  %vm1483 = vmor %vm1481, %vm1482
  %v1484 = vsel %vm1483, %v1476, %v1480
  %v1485 = vand.u32 2147483647, %v1445
  %vm1486 = vcmp.eq.f32.partialorder %v1485, 8.507059e+37
  %v1487 = vand.u32 %v1445, 2147483648
  %v1488 = vor.u32 1.1754944e-38, %v1487
  %v1489 = vsel %vm1486, %v1488, %v1484
  %v1490 = vmul.f32 1.0, %v1489
  %v1491 = vtanh.pop %v1433
  %v1492 = vmul.f32 %v1475, %v1198
  %v1493 = vmul.f32 %v1460, %v1491
  %v1494 = vadd.f32 %v1492, %v1493
  %v1495 = vtanh.pop %v1494
  %v1496 = vmul.f32 %v1490, %v1495
  %1497 = vmatpush.bf16.msra.mxu0 0
  %1498 = vmatpush.bf16.msra.mxu0 0
  %1499 = vmatpush.bf16.msra.mxu0 0
  %1500 = vmatpush.bf16.msra.mxu0 0
  %1501 = vmatpush.bf16.msra.mxu0 0
  %1502 = vmatpush.bf16.msra.mxu0 0
  %1503 = vmatpush.bf16.msra.mxu0 %v399
  %1504 = vmatpush.bf16.msra.mxu0 %v398
  %1505 = vmatmul.bf16.gmra.mxu0 %v1257
  %v1506 = vpop.f32.mrf.mxu0
  %v1507 = vadd.f32 0.0, %v1506
  %v1508 = vpop.f32.mrf.mxu0
  %1509 = vdwg.mxu0
  %v1510 = vadd.f32 %v146, %v1507
  %v1511 = vxor.u32 %v1510, 2147483648
  %v1512 = vmul.f32 %v1511, 1.442695
  %v1513 = vpow.pop %v1512
  %v1514 = vadd.f32 %v1513, 1.0
  %v1515 = vrcp.pop %v1514
  %v1516 = vmul.f32 %v1514, %v1515
  %v1517 = vsub.f32 1.0, %v1516
  %v1518 = vmul.f32 %v1515, %v1517
  %v1519 = vadd.f32 %v1515, %v1518
  %vm1520 = vweird.f32 %v1514
  %vm1521 = vweird.f32 %v1515
  %vm1522 = vmor %vm1520, %vm1521
  %v1523 = vsel %vm1522, %v1515, %v1519
  %v1524 = vand.u32 2147483647, %v1514
  %vm1525 = vcmp.eq.f32.partialorder %v1524, 8.507059e+37
  %v1526 = vand.u32 %v1514, 2147483648
  %v1527 = vor.u32 1.1754944e-38, %v1526
  %v1528 = vsel %vm1525, %v1527, %v1523
  %v1529 = vmul.f32 1.0, %v1528
  %v1530 = vtanh.pop %v1510
  %v1531 = vmul.f32 %v1529, %v1245
  %1533 = vrot.lane.b32.xlu0 %v1530, 32
  %v1534 = vpop.permute.xlu0 %1533
  %v1536 = vmul.f32 %v1529, %v1534
  %1538 = vrot.lane.b32.xlu0 %v1536, 32
  %v1539 = vpop.permute.xlu0 %1538
  %v1541 = vadd.f32 %v1531, %v1539
  %v1542 = vtanh.pop %v1541
  %1544 = vrot.lane.b32.xlu0 %v1542, 32
  %v1545 = vpop.permute.xlu0 %1544
  %v1547 = vmul.f32 %v1529, %v1545
  %v1548 = vpack.c.bf16 %v1547, %v1547
  %1550 = vrot.lane.b32.xlu0 %v1548, 64
  %v1551 = vpop.permute.xlu0 %1550
  %v1553 = vsel %vm402, %v1551, 0
  %1555 = vmatpush.bf16.msra.mxu0 0
  %1556 = vmatpush.bf16.msra.mxu0 0
  %1557 = vmatpush.bf16.msra.mxu0 0
  %1558 = vmatpush.bf16.msra.mxu0 0
  %1559 = vmatpush.bf16.msra.mxu0 0
  %1560 = vmatpush.bf16.msra.mxu0 0
  %1561 = vmatpush.bf16.msra.mxu0 %v470
  %1562 = vmatpush.bf16.msra.mxu0 %v469
  %1563 = vmatmul.bf16.gmra.mxu0 %v1553
  %v1564 = vpop.f32.mrf.mxu0
  %v1565 = vadd.f32 0.0, %v1564
  %v1566 = vpop.f32.mrf.mxu0
  %1567 = vdwg.mxu0
  %v1568 = vadd.f32 %v1565, %v204
  %v1569 = vxor.u32 %v1568, 2147483648
  %v1570 = vmul.f32 %v1569, 1.442695
  %v1571 = vpow.pop %v1570
  %v1572 = vadd.f32 %v1571, 1.0
  %v1573 = vrcp.pop %v1572
  %v1574 = vmul.f32 %v1572, %v1573
  %v1575 = vsub.f32 1.0, %v1574
  %v1576 = vmul.f32 %v1573, %v1575
  %v1577 = vadd.f32 %v1573, %v1576
  %vm1578 = vweird.f32 %v1572
  %vm1579 = vweird.f32 %v1573
  %vm1580 = vmor %vm1578, %vm1579
  %v1581 = vsel %vm1580, %v1573, %v1577
  %v1582 = vand.u32 2147483647, %v1572
  %vm1583 = vcmp.eq.f32.partialorder %v1582, 8.507059e+37
  %v1584 = vand.u32 %v1572, 2147483648
  %v1585 = vor.u32 1.1754944e-38, %v1584
  %v1586 = vsel %vm1583, %v1585, %v1581
  %v1587 = vmul.f32 1.0, %v1586
  %1589 = vrot.lane.b32.xlu0 %v1565, 96
  %v1590 = vpop.permute.xlu0 %1589
  %v1592 = vmul.f32 %v1587, %v1590
  %v1593 = vadd.f32 %v1592, %v515
  %1595 = vrot.lane.b32.xlu0 %v1592, 112
  %v1596 = vpop.permute.xlu0 %1595
  %v1598 = vadd.f32 %v1593, %v1596
  %v1599 = vmul.f32 %v1598, %v1598
  %v1600 = vsel %vm174, %v1599, 0.0
  %1601 = vadd.xlane.f32.xlu0 %v1600
  %v1602 = vpop.xlane.xlu0 %1601
  %v1603 = vrsqrt.pop %v1602
  %v1604 = vmul.f32 %v1603, %v1602
  %v1605 = vmul.f32 %v1604, %v1603
  %v1606 = vmul.f32 0.5, %v1605
  %v1607 = vsub.f32 1.5, %v1606
  %v1608 = vmul.f32 %v1603, %v1607
  %vm1609 = vweird.f32 %v1602
  %vm1610 = vweird.f32 %v1603
  %vm1611 = vmor %vm1609, %vm1610
  %v1612 = vsel %vm1611, %v1603, %v1608
  %v1613 = vmul.f32 %v295, %v1612
  %v1614 = vmin.f32 %v1613, 1.0
  %v1615 = vmul.f32 %v1614, %v1598
  %v1616 = vadd.f32 %v63, %v1615
  %v1617 = vpack.c.bf16 %v1616, %v1616
  %v1619 = vsel %vm174, %v1617, 0
  %1621 = vmatpush.bf16.msra.mxu0 0
  %1622 = vmatpush.bf16.msra.mxu0 0
  %1623 = vmatpush.bf16.msra.mxu0 0
  %1624 = vmatpush.bf16.msra.mxu0 0
  %1625 = vmatpush.bf16.msra.mxu0 0
  %1626 = vmatpush.bf16.msra.mxu0 0
  %1627 = vmatpush.bf16.msra.mxu0 0
  %1628 = vmatpush.bf16.msra.mxu0 %v563
  %1629 = vmatmul.bf16.gmra.mxu0 %v1619
  %v1630 = vpop.f32.mrf.mxu0
  %v1631 = vadd.f32 %v543, %v1630
  %v1632 = vpop.f32.mrf.mxu0
  %1633 = vdwg.mxu0
  %1634 = vmatpush.bf16.msra.mxu0 0
  %1635 = vmatpush.bf16.msra.mxu0 0
  %1636 = vmatpush.bf16.msra.mxu0 0
  %1637 = vmatpush.bf16.msra.mxu0 0
  %1638 = vmatpush.bf16.msra.mxu0 0
  %1639 = vmatpush.bf16.msra.mxu0 0
  %1640 = vmatpush.bf16.msra.mxu0 0
  %1641 = vmatpush.bf16.msra.mxu0 %v564
  %1642 = vmatmul.bf16.gmra.mxu0 %v1619
  %v1643 = vpop.f32.mrf.mxu0
  %v1644 = vadd.f32 %v544, %v1643
  %v1645 = vpop.f32.mrf.mxu0
  %1646 = vdwg.mxu0
  %1647 = vmatpush.bf16.msra.mxu0 0
  %1648 = vmatpush.bf16.msra.mxu0 0
  %1649 = vmatpush.bf16.msra.mxu0 0
  %1650 = vmatpush.bf16.msra.mxu0 0
  %1651 = vmatpush.bf16.msra.mxu0 0
  %1652 = vmatpush.bf16.msra.mxu0 0
  %1653 = vmatpush.bf16.msra.mxu0 0
  %1654 = vmatpush.bf16.msra.mxu0 %v565
  %1655 = vmatmul.bf16.gmra.mxu0 %v1619
  %v1656 = vpop.f32.mrf.mxu0
  %v1657 = vadd.f32 %v545, %v1656
  %v1658 = vpop.f32.mrf.mxu0
  %1659 = vdwg.mxu0
  %1660 = vmatpush.bf16.msra.mxu0 0
  %1661 = vmatpush.bf16.msra.mxu0 0
  %1662 = vmatpush.bf16.msra.mxu0 0
  %1663 = vmatpush.bf16.msra.mxu0 0
  %1664 = vmatpush.bf16.msra.mxu0 0
  %1665 = vmatpush.bf16.msra.mxu0 0
  %1666 = vmatpush.bf16.msra.mxu0 0
  %1667 = vmatpush.bf16.msra.mxu0 %v566
  %1668 = vmatmul.bf16.gmra.mxu0 %v1619
  %v1669 = vpop.f32.mrf.mxu0
  %v1670 = vadd.f32 %v546, %v1669
  %v1671 = vpop.f32.mrf.mxu0
  %1672 = vdwg.mxu0
  %v1673 = vpack.c.bf16 %v1496, %v1496
  %1674 = vmatpush.bf16.msra.mxu0 %v750
  %1675 = vmatpush.bf16.msra.mxu0 %v746
  %1676 = vmatpush.bf16.msra.mxu0 %v742
  %1677 = vmatpush.bf16.msra.mxu0 %v738
  %1678 = vmatpush.bf16.msra.mxu0 %v734
  %1679 = vmatpush.bf16.msra.mxu0 %v730
  %1680 = vmatpush.bf16.msra.mxu0 %v726
  %1681 = vmatpush.bf16.msra.mxu0 %v722
  %1682 = vmatmul.bf16.gmra.mxu0 %v1673
  %v1683 = vpop.f32.mrf.mxu0
  %v1684 = vadd.f32 0.0, %v1683
  %v1685 = vpop.f32.mrf.mxu0
  %1686 = vdwg.mxu0
  %1687 = vmatpush.bf16.msra.mxu0 %v751
  %1688 = vmatpush.bf16.msra.mxu0 %v747
  %1689 = vmatpush.bf16.msra.mxu0 %v743
  %1690 = vmatpush.bf16.msra.mxu0 %v739
  %1691 = vmatpush.bf16.msra.mxu0 %v735
  %1692 = vmatpush.bf16.msra.mxu0 %v731
  %1693 = vmatpush.bf16.msra.mxu0 %v727
  %1694 = vmatpush.bf16.msra.mxu0 %v723
  %1695 = vmatmul.bf16.gmra.mxu0 %v1673
  %v1696 = vpop.f32.mrf.mxu0
  %v1697 = vadd.f32 0.0, %v1696
  %v1698 = vpop.f32.mrf.mxu0
  %1699 = vdwg.mxu0
  %1700 = vmatpush.bf16.msra.mxu0 %v752
  %1701 = vmatpush.bf16.msra.mxu0 %v748
  %1702 = vmatpush.bf16.msra.mxu0 %v744
  %1703 = vmatpush.bf16.msra.mxu0 %v740
  %1704 = vmatpush.bf16.msra.mxu0 %v736
  %1705 = vmatpush.bf16.msra.mxu0 %v732
  %1706 = vmatpush.bf16.msra.mxu0 %v728
  %1707 = vmatpush.bf16.msra.mxu0 %v724
  %1708 = vmatmul.bf16.gmra.mxu0 %v1673
  %v1709 = vpop.f32.mrf.mxu0
  %v1710 = vadd.f32 0.0, %v1709
  %v1711 = vpop.f32.mrf.mxu0
  %1712 = vdwg.mxu0
  %1713 = vmatpush.bf16.msra.mxu0 %v753
  %1714 = vmatpush.bf16.msra.mxu0 %v749
  %1715 = vmatpush.bf16.msra.mxu0 %v745
  %1716 = vmatpush.bf16.msra.mxu0 %v741
  %1717 = vmatpush.bf16.msra.mxu0 %v737
  %1718 = vmatpush.bf16.msra.mxu0 %v733
  %1719 = vmatpush.bf16.msra.mxu0 %v729
  %1720 = vmatpush.bf16.msra.mxu0 %v725
  %1721 = vmatmul.bf16.gmra.mxu0 %v1673
  %v1722 = vpop.f32.mrf.mxu0
  %v1723 = vadd.f32 0.0, %v1722
  %v1724 = vpop.f32.mrf.mxu0
  %1725 = vdwg.mxu0
  %v1726 = vadd.f32 %v1631, %v1684
  %v1727 = vadd.f32 %v1644, %v1697
  %v1728 = vadd.f32 %v1657, %v1710
  %v1729 = vadd.f32 %v1670, %v1723
  %v1730 = vxor.u32 %v1726, 2147483648
  %v1731 = vxor.u32 %v1727, 2147483648
  %v1732 = vxor.u32 %v1728, 2147483648
  %v1733 = vmul.f32 %v1730, 1.442695
  %v1734 = vpow.pop %v1733
  %v1735 = vmul.f32 %v1731, 1.442695
  %v1736 = vpow.pop %v1735
  %v1737 = vmul.f32 %v1732, 1.442695
  %v1738 = vpow.pop %v1737
  %v1739 = vadd.f32 %v1734, 1.0
  %v1740 = vadd.f32 %v1736, 1.0
  %v1741 = vadd.f32 %v1738, 1.0
  %v1742 = vrcp.pop %v1739
  %v1743 = vmul.f32 %v1739, %v1742
  %v1744 = vsub.f32 1.0, %v1743
  %v1745 = vmul.f32 %v1742, %v1744
  %v1746 = vadd.f32 %v1742, %v1745
  %vm1747 = vweird.f32 %v1739
  %vm1748 = vweird.f32 %v1742
  %vm1749 = vmor %vm1747, %vm1748
  %v1750 = vsel %vm1749, %v1742, %v1746
  %v1751 = vand.u32 2147483647, %v1739
  %vm1752 = vcmp.eq.f32.partialorder %v1751, 8.507059e+37
  %v1753 = vand.u32 %v1739, 2147483648
  %v1754 = vor.u32 1.1754944e-38, %v1753
  %v1755 = vsel %vm1752, %v1754, %v1750
  %v1756 = vmul.f32 1.0, %v1755
  %v1757 = vrcp.pop %v1740
  %v1758 = vmul.f32 %v1740, %v1757
  %v1759 = vsub.f32 1.0, %v1758
  %v1760 = vmul.f32 %v1757, %v1759
  %v1761 = vadd.f32 %v1757, %v1760
  %vm1762 = vweird.f32 %v1740
  %vm1763 = vweird.f32 %v1757
  %vm1764 = vmor %vm1762, %vm1763
  %v1765 = vsel %vm1764, %v1757, %v1761
  %v1766 = vand.u32 2147483647, %v1740
  %vm1767 = vcmp.eq.f32.partialorder %v1766, 8.507059e+37
  %v1768 = vand.u32 %v1740, 2147483648
  %v1769 = vor.u32 1.1754944e-38, %v1768
  %v1770 = vsel %vm1767, %v1769, %v1765
  %v1771 = vmul.f32 1.0, %v1770
  %v1772 = vrcp.pop %v1741
  %v1773 = vmul.f32 %v1741, %v1772
  %v1774 = vsub.f32 1.0, %v1773
  %v1775 = vmul.f32 %v1772, %v1774
  %v1776 = vadd.f32 %v1772, %v1775
  %vm1777 = vweird.f32 %v1741
  %vm1778 = vweird.f32 %v1772
  %vm1779 = vmor %vm1777, %vm1778
  %v1780 = vsel %vm1779, %v1772, %v1776
  %v1781 = vand.u32 2147483647, %v1741
  %vm1782 = vcmp.eq.f32.partialorder %v1781, 8.507059e+37
  %v1783 = vand.u32 %v1741, 2147483648
  %v1784 = vor.u32 1.1754944e-38, %v1783
  %v1785 = vsel %vm1782, %v1784, %v1780
  %v1786 = vmul.f32 1.0, %v1785
  %v1787 = vtanh.pop %v1729
  %v1788 = vmul.f32 %v1771, %v1494
  %v1789 = vmul.f32 %v1756, %v1787
  %v1790 = vadd.f32 %v1788, %v1789
  %v1791 = vtanh.pop %v1790
  %v1792 = vmul.f32 %v1786, %v1791
  %1793 = vmatpush.bf16.msra.mxu0 0
  %1794 = vmatpush.bf16.msra.mxu0 0
  %1795 = vmatpush.bf16.msra.mxu0 0
  %1796 = vmatpush.bf16.msra.mxu0 0
  %1797 = vmatpush.bf16.msra.mxu0 0
  %1798 = vmatpush.bf16.msra.mxu0 0
  %1799 = vmatpush.bf16.msra.mxu0 %v399
  %1800 = vmatpush.bf16.msra.mxu0 %v398
  %1801 = vmatmul.bf16.gmra.mxu0 %v1553
  %v1802 = vpop.f32.mrf.mxu0
  %v1803 = vadd.f32 0.0, %v1802
  %v1804 = vpop.f32.mrf.mxu0
  %1805 = vdwg.mxu0
  %v1806 = vadd.f32 %v149, %v1803
  %v1807 = vxor.u32 %v1806, 2147483648
  %v1808 = vmul.f32 %v1807, 1.442695
  %v1809 = vpow.pop %v1808
  %v1810 = vadd.f32 %v1809, 1.0
  %v1811 = vrcp.pop %v1810
  %v1812 = vmul.f32 %v1810, %v1811
  %v1813 = vsub.f32 1.0, %v1812
  %v1814 = vmul.f32 %v1811, %v1813
  %v1815 = vadd.f32 %v1811, %v1814
  %vm1816 = vweird.f32 %v1810
  %vm1817 = vweird.f32 %v1811
  %vm1818 = vmor %vm1816, %vm1817
  %v1819 = vsel %vm1818, %v1811, %v1815
  %v1820 = vand.u32 2147483647, %v1810
  %vm1821 = vcmp.eq.f32.partialorder %v1820, 8.507059e+37
  %v1822 = vand.u32 %v1810, 2147483648
  %v1823 = vor.u32 1.1754944e-38, %v1822
  %v1824 = vsel %vm1821, %v1823, %v1819
  %v1825 = vmul.f32 1.0, %v1824
  %v1826 = vtanh.pop %v1806
  %v1827 = vmul.f32 %v1825, %v1541
  %1829 = vrot.lane.b32.xlu0 %v1826, 32
  %v1830 = vpop.permute.xlu0 %1829
  %v1832 = vmul.f32 %v1825, %v1830
  %1834 = vrot.lane.b32.xlu0 %v1832, 32
  %v1835 = vpop.permute.xlu0 %1834
  %v1837 = vadd.f32 %v1827, %v1835
  %v1838 = vtanh.pop %v1837
  %1840 = vrot.lane.b32.xlu0 %v1838, 32
  %v1841 = vpop.permute.xlu0 %1840
  %v1843 = vmul.f32 %v1825, %v1841
  %v1844 = vpack.c.bf16 %v1843, %v1843
  %1846 = vrot.lane.b32.xlu0 %v1844, 64
  %v1847 = vpop.permute.xlu0 %1846
  %v1849 = vsel %vm402, %v1847, 0
  %1851 = vmatpush.bf16.msra.mxu0 0
  %1852 = vmatpush.bf16.msra.mxu0 0
  %1853 = vmatpush.bf16.msra.mxu0 0
  %1854 = vmatpush.bf16.msra.mxu0 0
  %1855 = vmatpush.bf16.msra.mxu0 0
  %1856 = vmatpush.bf16.msra.mxu0 0
  %1857 = vmatpush.bf16.msra.mxu0 %v470
  %1858 = vmatpush.bf16.msra.mxu0 %v469
  %1859 = vmatmul.bf16.gmra.mxu0 %v1849
  %v1860 = vpop.f32.mrf.mxu0
  %v1861 = vadd.f32 0.0, %v1860
  %v1862 = vpop.f32.mrf.mxu0
  %1863 = vdwg.mxu0
  %v1864 = vadd.f32 %v1861, %v207
  %v1865 = vxor.u32 %v1864, 2147483648
  %v1866 = vmul.f32 %v1865, 1.442695
  %v1867 = vpow.pop %v1866
  %v1868 = vadd.f32 %v1867, 1.0
  %v1869 = vrcp.pop %v1868
  %v1870 = vmul.f32 %v1868, %v1869
  %v1871 = vsub.f32 1.0, %v1870
  %v1872 = vmul.f32 %v1869, %v1871
  %v1873 = vadd.f32 %v1869, %v1872
  %vm1874 = vweird.f32 %v1868
  %vm1875 = vweird.f32 %v1869
  %vm1876 = vmor %vm1874, %vm1875
  %v1877 = vsel %vm1876, %v1869, %v1873
  %v1878 = vand.u32 2147483647, %v1868
  %vm1879 = vcmp.eq.f32.partialorder %v1878, 8.507059e+37
  %v1880 = vand.u32 %v1868, 2147483648
  %v1881 = vor.u32 1.1754944e-38, %v1880
  %v1882 = vsel %vm1879, %v1881, %v1877
  %v1883 = vmul.f32 1.0, %v1882
  %1885 = vrot.lane.b32.xlu0 %v1861, 96
  %v1886 = vpop.permute.xlu0 %1885
  %v1888 = vmul.f32 %v1883, %v1886
  %v1889 = vadd.f32 %v1888, %v515
  %1891 = vrot.lane.b32.xlu0 %v1888, 112
  %v1892 = vpop.permute.xlu0 %1891
  %v1894 = vadd.f32 %v1889, %v1892
  %v1895 = vmul.f32 %v1894, %v1894
  %v1896 = vsel %vm174, %v1895, 0.0
  %1897 = vadd.xlane.f32.xlu0 %v1896
  %v1898 = vpop.xlane.xlu0 %1897
  %v1899 = vrsqrt.pop %v1898
  %v1900 = vmul.f32 %v1899, %v1898
  %v1901 = vmul.f32 %v1900, %v1899
  %v1902 = vmul.f32 0.5, %v1901
  %v1903 = vsub.f32 1.5, %v1902
  %v1904 = vmul.f32 %v1899, %v1903
  %vm1905 = vweird.f32 %v1898
  %vm1906 = vweird.f32 %v1899
  %vm1907 = vmor %vm1905, %vm1906
  %v1908 = vsel %vm1907, %v1899, %v1904
  %v1909 = vmul.f32 %v307, %v1908
  %v1910 = vmin.f32 %v1909, 1.0
  %v1911 = vmul.f32 %v1910, %v1894
  %v1912 = vadd.f32 %v64, %v1911
  %v1913 = vpack.c.bf16 %v1912, %v1912
  %v1915 = vsel %vm174, %v1913, 0
  %1917 = vmatpush.bf16.msra.mxu0 0
  %1918 = vmatpush.bf16.msra.mxu0 0
  %1919 = vmatpush.bf16.msra.mxu0 0
  %1920 = vmatpush.bf16.msra.mxu0 0
  %1921 = vmatpush.bf16.msra.mxu0 0
  %1922 = vmatpush.bf16.msra.mxu0 0
  %1923 = vmatpush.bf16.msra.mxu0 0
  %1924 = vmatpush.bf16.msra.mxu0 %v563
  %1925 = vmatmul.bf16.gmra.mxu0 %v1915
  %v1926 = vpop.f32.mrf.mxu0
  %v1927 = vadd.f32 %v543, %v1926
  %v1928 = vpop.f32.mrf.mxu0
  %1929 = vdwg.mxu0
  %1930 = vmatpush.bf16.msra.mxu0 0
  %1931 = vmatpush.bf16.msra.mxu0 0
  %1932 = vmatpush.bf16.msra.mxu0 0
  %1933 = vmatpush.bf16.msra.mxu0 0
  %1934 = vmatpush.bf16.msra.mxu0 0
  %1935 = vmatpush.bf16.msra.mxu0 0
  %1936 = vmatpush.bf16.msra.mxu0 0
  %1937 = vmatpush.bf16.msra.mxu0 %v564
  %1938 = vmatmul.bf16.gmra.mxu0 %v1915
  %v1939 = vpop.f32.mrf.mxu0
  %v1940 = vadd.f32 %v544, %v1939
  %v1941 = vpop.f32.mrf.mxu0
  %1942 = vdwg.mxu0
  %1943 = vmatpush.bf16.msra.mxu0 0
  %1944 = vmatpush.bf16.msra.mxu0 0
  %1945 = vmatpush.bf16.msra.mxu0 0
  %1946 = vmatpush.bf16.msra.mxu0 0
  %1947 = vmatpush.bf16.msra.mxu0 0
  %1948 = vmatpush.bf16.msra.mxu0 0
  %1949 = vmatpush.bf16.msra.mxu0 0
  %1950 = vmatpush.bf16.msra.mxu0 %v565
  %1951 = vmatmul.bf16.gmra.mxu0 %v1915
  %v1952 = vpop.f32.mrf.mxu0
  %v1953 = vadd.f32 %v545, %v1952
  %v1954 = vpop.f32.mrf.mxu0
  %1955 = vdwg.mxu0
  %1956 = vmatpush.bf16.msra.mxu0 0
  %1957 = vmatpush.bf16.msra.mxu0 0
  %1958 = vmatpush.bf16.msra.mxu0 0
  %1959 = vmatpush.bf16.msra.mxu0 0
  %1960 = vmatpush.bf16.msra.mxu0 0
  %1961 = vmatpush.bf16.msra.mxu0 0
  %1962 = vmatpush.bf16.msra.mxu0 0
  %1963 = vmatpush.bf16.msra.mxu0 %v566
  %1964 = vmatmul.bf16.gmra.mxu0 %v1915
  %v1965 = vpop.f32.mrf.mxu0
  %v1966 = vadd.f32 %v546, %v1965
  %v1967 = vpop.f32.mrf.mxu0
  %1968 = vdwg.mxu0
  %v1969 = vpack.c.bf16 %v1792, %v1792
  %1970 = vmatpush.bf16.msra.mxu0 %v750
  %1971 = vmatpush.bf16.msra.mxu0 %v746
  %1972 = vmatpush.bf16.msra.mxu0 %v742
  %1973 = vmatpush.bf16.msra.mxu0 %v738
  %1974 = vmatpush.bf16.msra.mxu0 %v734
  %1975 = vmatpush.bf16.msra.mxu0 %v730
  %1976 = vmatpush.bf16.msra.mxu0 %v726
  %1977 = vmatpush.bf16.msra.mxu0 %v722
  %1978 = vmatmul.bf16.gmra.mxu0 %v1969
  %v1979 = vpop.f32.mrf.mxu0
  %v1980 = vadd.f32 0.0, %v1979
  %v1981 = vpop.f32.mrf.mxu0
  %1982 = vdwg.mxu0
  %1983 = vmatpush.bf16.msra.mxu0 %v751
  %1984 = vmatpush.bf16.msra.mxu0 %v747
  %1985 = vmatpush.bf16.msra.mxu0 %v743
  %1986 = vmatpush.bf16.msra.mxu0 %v739
  %1987 = vmatpush.bf16.msra.mxu0 %v735
  %1988 = vmatpush.bf16.msra.mxu0 %v731
  %1989 = vmatpush.bf16.msra.mxu0 %v727
  %1990 = vmatpush.bf16.msra.mxu0 %v723
  %1991 = vmatmul.bf16.gmra.mxu0 %v1969
  %v1992 = vpop.f32.mrf.mxu0
  %v1993 = vadd.f32 0.0, %v1992
  %v1994 = vpop.f32.mrf.mxu0
  %1995 = vdwg.mxu0
  %1996 = vmatpush.bf16.msra.mxu0 %v752
  %1997 = vmatpush.bf16.msra.mxu0 %v748
  %1998 = vmatpush.bf16.msra.mxu0 %v744
  %1999 = vmatpush.bf16.msra.mxu0 %v740
  %2000 = vmatpush.bf16.msra.mxu0 %v736
  %2001 = vmatpush.bf16.msra.mxu0 %v732
  %2002 = vmatpush.bf16.msra.mxu0 %v728
  %2003 = vmatpush.bf16.msra.mxu0 %v724
  %2004 = vmatmul.bf16.gmra.mxu0 %v1969
  %v2005 = vpop.f32.mrf.mxu0
  %v2006 = vadd.f32 0.0, %v2005
  %v2007 = vpop.f32.mrf.mxu0
  %2008 = vdwg.mxu0
  %2009 = vmatpush.bf16.msra.mxu0 %v753
  %2010 = vmatpush.bf16.msra.mxu0 %v749
  %2011 = vmatpush.bf16.msra.mxu0 %v745
  %2012 = vmatpush.bf16.msra.mxu0 %v741
  %2013 = vmatpush.bf16.msra.mxu0 %v737
  %2014 = vmatpush.bf16.msra.mxu0 %v733
  %2015 = vmatpush.bf16.msra.mxu0 %v729
  %2016 = vmatpush.bf16.msra.mxu0 %v725
  %2017 = vmatmul.bf16.gmra.mxu0 %v1969
  %v2018 = vpop.f32.mrf.mxu0
  %v2019 = vadd.f32 0.0, %v2018
  %v2020 = vpop.f32.mrf.mxu0
  %2021 = vdwg.mxu0
  %v2022 = vadd.f32 %v1927, %v1980
  %v2023 = vadd.f32 %v1940, %v1993
  %v2024 = vadd.f32 %v1953, %v2006
  %v2025 = vadd.f32 %v1966, %v2019
  %v2026 = vxor.u32 %v2022, 2147483648
  %v2027 = vxor.u32 %v2023, 2147483648
  %v2028 = vxor.u32 %v2024, 2147483648
  %v2029 = vmul.f32 %v2026, 1.442695
  %v2030 = vpow.pop %v2029
  %v2031 = vmul.f32 %v2027, 1.442695
  %v2032 = vpow.pop %v2031
  %v2033 = vmul.f32 %v2028, 1.442695
  %v2034 = vpow.pop %v2033
  %v2035 = vadd.f32 %v2030, 1.0
  %v2036 = vadd.f32 %v2032, 1.0
  %v2037 = vadd.f32 %v2034, 1.0
  %v2038 = vrcp.pop %v2035
  %v2039 = vmul.f32 %v2035, %v2038
  %v2040 = vsub.f32 1.0, %v2039
  %v2041 = vmul.f32 %v2038, %v2040
  %v2042 = vadd.f32 %v2038, %v2041
  %vm2043 = vweird.f32 %v2035
  %vm2044 = vweird.f32 %v2038
  %vm2045 = vmor %vm2043, %vm2044
  %v2046 = vsel %vm2045, %v2038, %v2042
  %v2047 = vand.u32 2147483647, %v2035
  %vm2048 = vcmp.eq.f32.partialorder %v2047, 8.507059e+37
  %v2049 = vand.u32 %v2035, 2147483648
  %v2050 = vor.u32 1.1754944e-38, %v2049
  %v2051 = vsel %vm2048, %v2050, %v2046
  %v2052 = vmul.f32 1.0, %v2051
  %v2053 = vrcp.pop %v2036
  %v2054 = vmul.f32 %v2036, %v2053
  %v2055 = vsub.f32 1.0, %v2054
  %v2056 = vmul.f32 %v2053, %v2055
  %v2057 = vadd.f32 %v2053, %v2056
  %vm2058 = vweird.f32 %v2036
  %vm2059 = vweird.f32 %v2053
  %vm2060 = vmor %vm2058, %vm2059
  %v2061 = vsel %vm2060, %v2053, %v2057
  %v2062 = vand.u32 2147483647, %v2036
  %vm2063 = vcmp.eq.f32.partialorder %v2062, 8.507059e+37
  %v2064 = vand.u32 %v2036, 2147483648
  %v2065 = vor.u32 1.1754944e-38, %v2064
  %v2066 = vsel %vm2063, %v2065, %v2061
  %v2067 = vmul.f32 1.0, %v2066
  %v2068 = vrcp.pop %v2037
  %v2069 = vmul.f32 %v2037, %v2068
  %v2070 = vsub.f32 1.0, %v2069
  %v2071 = vmul.f32 %v2068, %v2070
  %v2072 = vadd.f32 %v2068, %v2071
  %vm2073 = vweird.f32 %v2037
  %vm2074 = vweird.f32 %v2068
  %vm2075 = vmor %vm2073, %vm2074
  %v2076 = vsel %vm2075, %v2068, %v2072
  %v2077 = vand.u32 2147483647, %v2037
  %vm2078 = vcmp.eq.f32.partialorder %v2077, 8.507059e+37
  %v2079 = vand.u32 %v2037, 2147483648
  %v2080 = vor.u32 1.1754944e-38, %v2079
  %v2081 = vsel %vm2078, %v2080, %v2076
  %v2082 = vmul.f32 1.0, %v2081
  %v2083 = vtanh.pop %v2025
  %v2084 = vmul.f32 %v2067, %v1790
  %v2085 = vmul.f32 %v2052, %v2083
  %v2086 = vadd.f32 %v2084, %v2085
  %v2087 = vtanh.pop %v2086
  %v2088 = vmul.f32 %v2082, %v2087
  %2089 = vmatpush.bf16.msra.mxu0 0
  %2090 = vmatpush.bf16.msra.mxu0 0
  %2091 = vmatpush.bf16.msra.mxu0 0
  %2092 = vmatpush.bf16.msra.mxu0 0
  %2093 = vmatpush.bf16.msra.mxu0 0
  %2094 = vmatpush.bf16.msra.mxu0 0
  %2095 = vmatpush.bf16.msra.mxu0 %v399
  %2096 = vmatpush.bf16.msra.mxu0 %v398
  %2097 = vmatmul.bf16.gmra.mxu0 %v1849
  %v2098 = vpop.f32.mrf.mxu0
  %v2099 = vadd.f32 0.0, %v2098
  %v2100 = vpop.f32.mrf.mxu0
  %2101 = vdwg.mxu0
  %v2102 = vadd.f32 %v151, %v2099
  %v2103 = vxor.u32 %v2102, 2147483648
  %v2104 = vmul.f32 %v2103, 1.442695
  %v2105 = vpow.pop %v2104
  %v2106 = vadd.f32 %v2105, 1.0
  %v2107 = vrcp.pop %v2106
  %v2108 = vmul.f32 %v2106, %v2107
  %v2109 = vsub.f32 1.0, %v2108
  %v2110 = vmul.f32 %v2107, %v2109
  %v2111 = vadd.f32 %v2107, %v2110
  %vm2112 = vweird.f32 %v2106
  %vm2113 = vweird.f32 %v2107
  %vm2114 = vmor %vm2112, %vm2113
  %v2115 = vsel %vm2114, %v2107, %v2111
  %v2116 = vand.u32 2147483647, %v2106
  %vm2117 = vcmp.eq.f32.partialorder %v2116, 8.507059e+37
  %v2118 = vand.u32 %v2106, 2147483648
  %v2119 = vor.u32 1.1754944e-38, %v2118
  %v2120 = vsel %vm2117, %v2119, %v2115
  %v2121 = vmul.f32 1.0, %v2120
  %v2122 = vtanh.pop %v2102
  %v2123 = vmul.f32 %v2121, %v1837
  %2125 = vrot.lane.b32.xlu0 %v2122, 32
  %v2126 = vpop.permute.xlu0 %2125
  %v2128 = vmul.f32 %v2121, %v2126
  %2130 = vrot.lane.b32.xlu0 %v2128, 32
  %v2131 = vpop.permute.xlu0 %2130
  %v2133 = vadd.f32 %v2123, %v2131
  %v2134 = vtanh.pop %v2133
  %2136 = vrot.lane.b32.xlu0 %v2134, 32
  %v2137 = vpop.permute.xlu0 %2136
  %v2139 = vmul.f32 %v2121, %v2137
  %v2140 = vpack.c.bf16 %v2139, %v2139
  %2142 = vrot.lane.b32.xlu0 %v2140, 64
  %v2143 = vpop.permute.xlu0 %2142
  %v2145 = vsel %vm402, %v2143, 0
  %2147 = vmatpush.bf16.msra.mxu0 0
  %2148 = vmatpush.bf16.msra.mxu0 0
  %2149 = vmatpush.bf16.msra.mxu0 0
  %2150 = vmatpush.bf16.msra.mxu0 0
  %2151 = vmatpush.bf16.msra.mxu0 0
  %2152 = vmatpush.bf16.msra.mxu0 0
  %2153 = vmatpush.bf16.msra.mxu0 %v470
  %2154 = vmatpush.bf16.msra.mxu0 %v469
  %2155 = vmatmul.bf16.gmra.mxu0 %v2145
  %v2156 = vpop.f32.mrf.mxu0
  %v2157 = vadd.f32 0.0, %v2156
  %v2158 = vpop.f32.mrf.mxu0
  %2159 = vdwg.mxu0
  %v2160 = vadd.f32 %v2157, %v209
  %v2161 = vxor.u32 %v2160, 2147483648
  %v2162 = vmul.f32 %v2161, 1.442695
  %v2163 = vpow.pop %v2162
  %v2164 = vadd.f32 %v2163, 1.0
  %v2165 = vrcp.pop %v2164
  %v2166 = vmul.f32 %v2164, %v2165
  %v2167 = vsub.f32 1.0, %v2166
  %v2168 = vmul.f32 %v2165, %v2167
  %v2169 = vadd.f32 %v2165, %v2168
  %vm2170 = vweird.f32 %v2164
  %vm2171 = vweird.f32 %v2165
  %vm2172 = vmor %vm2170, %vm2171
  %v2173 = vsel %vm2172, %v2165, %v2169
  %v2174 = vand.u32 2147483647, %v2164
  %vm2175 = vcmp.eq.f32.partialorder %v2174, 8.507059e+37
  %v2176 = vand.u32 %v2164, 2147483648
  %v2177 = vor.u32 1.1754944e-38, %v2176
  %v2178 = vsel %vm2175, %v2177, %v2173
  %v2179 = vmul.f32 1.0, %v2178
  %2181 = vrot.lane.b32.xlu0 %v2157, 96
  %v2182 = vpop.permute.xlu0 %2181
  %v2184 = vmul.f32 %v2179, %v2182
  %v2185 = vadd.f32 %v2184, %v515
  %2187 = vrot.lane.b32.xlu0 %v2184, 112
  %v2188 = vpop.permute.xlu0 %2187
  %v2190 = vadd.f32 %v2185, %v2188
  %v2191 = vmul.f32 %v2190, %v2190
  %v2192 = vsel %vm174, %v2191, 0.0
  %2193 = vadd.xlane.f32.xlu0 %v2192
  %v2194 = vpop.xlane.xlu0 %2193
  %v2195 = vrsqrt.pop %v2194
  %v2196 = vmul.f32 %v2195, %v2194
  %v2197 = vmul.f32 %v2196, %v2195
  %v2198 = vmul.f32 0.5, %v2197
  %v2199 = vsub.f32 1.5, %v2198
  %v2200 = vmul.f32 %v2195, %v2199
  %vm2201 = vweird.f32 %v2194
  %vm2202 = vweird.f32 %v2195
  %vm2203 = vmor %vm2201, %vm2202
  %v2204 = vsel %vm2203, %v2195, %v2200
  %v2205 = vmul.f32 %v319, %v2204
  %v2206 = vmin.f32 %v2205, 1.0
  %v2207 = vmul.f32 %v2206, %v2190
  %v2208 = vadd.f32 %v65, %v2207
  %v2209 = vpack.c.bf16 %v2208, %v2208
  %v2211 = vsel %vm174, %v2209, 0
  %2213 = vmatpush.bf16.msra.mxu0 0
  %2214 = vmatpush.bf16.msra.mxu0 0
  %2215 = vmatpush.bf16.msra.mxu0 0
  %2216 = vmatpush.bf16.msra.mxu0 0
  %2217 = vmatpush.bf16.msra.mxu0 0
  %2218 = vmatpush.bf16.msra.mxu0 0
  %2219 = vmatpush.bf16.msra.mxu0 0
  %2220 = vmatpush.bf16.msra.mxu0 %v563
  %2221 = vmatmul.bf16.gmra.mxu0 %v2211
  %v2222 = vpop.f32.mrf.mxu0
  %v2223 = vadd.f32 %v543, %v2222
  %v2224 = vpop.f32.mrf.mxu0
  %2225 = vdwg.mxu0
  %2226 = vmatpush.bf16.msra.mxu0 0
  %2227 = vmatpush.bf16.msra.mxu0 0
  %2228 = vmatpush.bf16.msra.mxu0 0
  %2229 = vmatpush.bf16.msra.mxu0 0
  %2230 = vmatpush.bf16.msra.mxu0 0
  %2231 = vmatpush.bf16.msra.mxu0 0
  %2232 = vmatpush.bf16.msra.mxu0 0
  %2233 = vmatpush.bf16.msra.mxu0 %v564
  %2234 = vmatmul.bf16.gmra.mxu0 %v2211
  %v2235 = vpop.f32.mrf.mxu0
  %v2236 = vadd.f32 %v544, %v2235
  %v2237 = vpop.f32.mrf.mxu0
  %2238 = vdwg.mxu0
  %2239 = vmatpush.bf16.msra.mxu0 0
  %2240 = vmatpush.bf16.msra.mxu0 0
  %2241 = vmatpush.bf16.msra.mxu0 0
  %2242 = vmatpush.bf16.msra.mxu0 0
  %2243 = vmatpush.bf16.msra.mxu0 0
  %2244 = vmatpush.bf16.msra.mxu0 0
  %2245 = vmatpush.bf16.msra.mxu0 0
  %2246 = vmatpush.bf16.msra.mxu0 %v565
  %2247 = vmatmul.bf16.gmra.mxu0 %v2211
  %v2248 = vpop.f32.mrf.mxu0
  %v2249 = vadd.f32 %v545, %v2248
  %v2250 = vpop.f32.mrf.mxu0
  %2251 = vdwg.mxu0
  %2252 = vmatpush.bf16.msra.mxu0 0
  %2253 = vmatpush.bf16.msra.mxu0 0
  %2254 = vmatpush.bf16.msra.mxu0 0
  %2255 = vmatpush.bf16.msra.mxu0 0
  %2256 = vmatpush.bf16.msra.mxu0 0
  %2257 = vmatpush.bf16.msra.mxu0 0
  %2258 = vmatpush.bf16.msra.mxu0 0
  %2259 = vmatpush.bf16.msra.mxu0 %v566
  %2260 = vmatmul.bf16.gmra.mxu0 %v2211
  %v2261 = vpop.f32.mrf.mxu0
  %v2262 = vadd.f32 %v546, %v2261
  %v2263 = vpop.f32.mrf.mxu0
  %2264 = vdwg.mxu0
  %v2265 = vpack.c.bf16 %v2088, %v2088
  %2266 = vmatpush.bf16.msra.mxu0 %v750
  %2267 = vmatpush.bf16.msra.mxu0 %v746
  %2268 = vmatpush.bf16.msra.mxu0 %v742
  %2269 = vmatpush.bf16.msra.mxu0 %v738
  %2270 = vmatpush.bf16.msra.mxu0 %v734
  %2271 = vmatpush.bf16.msra.mxu0 %v730
  %2272 = vmatpush.bf16.msra.mxu0 %v726
  %2273 = vmatpush.bf16.msra.mxu0 %v722
  %2274 = vmatmul.bf16.gmra.mxu0 %v2265
  %v2275 = vpop.f32.mrf.mxu0
  %v2276 = vadd.f32 0.0, %v2275
  %v2277 = vpop.f32.mrf.mxu0
  %2278 = vdwg.mxu0
  %2279 = vmatpush.bf16.msra.mxu0 %v751
  %2280 = vmatpush.bf16.msra.mxu0 %v747
  %2281 = vmatpush.bf16.msra.mxu0 %v743
  %2282 = vmatpush.bf16.msra.mxu0 %v739
  %2283 = vmatpush.bf16.msra.mxu0 %v735
  %2284 = vmatpush.bf16.msra.mxu0 %v731
  %2285 = vmatpush.bf16.msra.mxu0 %v727
  %2286 = vmatpush.bf16.msra.mxu0 %v723
  %2287 = vmatmul.bf16.gmra.mxu0 %v2265
  %v2288 = vpop.f32.mrf.mxu0
  %v2289 = vadd.f32 0.0, %v2288
  %v2290 = vpop.f32.mrf.mxu0
  %2291 = vdwg.mxu0
  %2292 = vmatpush.bf16.msra.mxu0 %v752
  %2293 = vmatpush.bf16.msra.mxu0 %v748
  %2294 = vmatpush.bf16.msra.mxu0 %v744
  %2295 = vmatpush.bf16.msra.mxu0 %v740
  %2296 = vmatpush.bf16.msra.mxu0 %v736
  %2297 = vmatpush.bf16.msra.mxu0 %v732
  %2298 = vmatpush.bf16.msra.mxu0 %v728
  %2299 = vmatpush.bf16.msra.mxu0 %v724
  %2300 = vmatmul.bf16.gmra.mxu0 %v2265
  %v2301 = vpop.f32.mrf.mxu0
  %v2302 = vadd.f32 0.0, %v2301
  %v2303 = vpop.f32.mrf.mxu0
  %2304 = vdwg.mxu0
  %2305 = vmatpush.bf16.msra.mxu0 %v753
  %2306 = vmatpush.bf16.msra.mxu0 %v749
  %2307 = vmatpush.bf16.msra.mxu0 %v745
  %2308 = vmatpush.bf16.msra.mxu0 %v741
  %2309 = vmatpush.bf16.msra.mxu0 %v737
  %2310 = vmatpush.bf16.msra.mxu0 %v733
  %2311 = vmatpush.bf16.msra.mxu0 %v729
  %2312 = vmatpush.bf16.msra.mxu0 %v725
  %2313 = vmatmul.bf16.gmra.mxu0 %v2265
  %v2314 = vpop.f32.mrf.mxu0
  %v2315 = vadd.f32 0.0, %v2314
  %v2316 = vpop.f32.mrf.mxu0
  %2317 = vdwg.mxu0
  %v2318 = vadd.f32 %v2223, %v2276
  %v2319 = vadd.f32 %v2236, %v2289
  %v2320 = vadd.f32 %v2249, %v2302
  %v2321 = vadd.f32 %v2262, %v2315
  %v2322 = vxor.u32 %v2318, 2147483648
  %v2323 = vxor.u32 %v2319, 2147483648
  %v2324 = vxor.u32 %v2320, 2147483648
  %v2325 = vmul.f32 %v2322, 1.442695
  %v2326 = vpow.pop %v2325
  %v2327 = vmul.f32 %v2323, 1.442695
  %v2328 = vpow.pop %v2327
  %v2329 = vmul.f32 %v2324, 1.442695
  %v2330 = vpow.pop %v2329
  %v2331 = vadd.f32 %v2326, 1.0
  %v2332 = vadd.f32 %v2328, 1.0
  %v2333 = vadd.f32 %v2330, 1.0
  %v2334 = vrcp.pop %v2331
  %v2335 = vmul.f32 %v2331, %v2334
  %v2336 = vsub.f32 1.0, %v2335
  %v2337 = vmul.f32 %v2334, %v2336
  %v2338 = vadd.f32 %v2334, %v2337
  %vm2339 = vweird.f32 %v2331
  %vm2340 = vweird.f32 %v2334
  %vm2341 = vmor %vm2339, %vm2340
  %v2342 = vsel %vm2341, %v2334, %v2338
  %v2343 = vand.u32 2147483647, %v2331
  %vm2344 = vcmp.eq.f32.partialorder %v2343, 8.507059e+37
  %v2345 = vand.u32 %v2331, 2147483648
  %v2346 = vor.u32 1.1754944e-38, %v2345
  %v2347 = vsel %vm2344, %v2346, %v2342
  %v2348 = vmul.f32 1.0, %v2347
  %v2349 = vrcp.pop %v2332
  %v2350 = vmul.f32 %v2332, %v2349
  %v2351 = vsub.f32 1.0, %v2350
  %v2352 = vmul.f32 %v2349, %v2351
  %v2353 = vadd.f32 %v2349, %v2352
  %vm2354 = vweird.f32 %v2332
  %vm2355 = vweird.f32 %v2349
  %vm2356 = vmor %vm2354, %vm2355
  %v2357 = vsel %vm2356, %v2349, %v2353
  %v2358 = vand.u32 2147483647, %v2332
  %vm2359 = vcmp.eq.f32.partialorder %v2358, 8.507059e+37
  %v2360 = vand.u32 %v2332, 2147483648
  %v2361 = vor.u32 1.1754944e-38, %v2360
  %v2362 = vsel %vm2359, %v2361, %v2357
  %v2363 = vmul.f32 1.0, %v2362
  %v2364 = vrcp.pop %v2333
  %v2365 = vmul.f32 %v2333, %v2364
  %v2366 = vsub.f32 1.0, %v2365
  %v2367 = vmul.f32 %v2364, %v2366
  %v2368 = vadd.f32 %v2364, %v2367
  %vm2369 = vweird.f32 %v2333
  %vm2370 = vweird.f32 %v2364
  %vm2371 = vmor %vm2369, %vm2370
  %v2372 = vsel %vm2371, %v2364, %v2368
  %v2373 = vand.u32 2147483647, %v2333
  %vm2374 = vcmp.eq.f32.partialorder %v2373, 8.507059e+37
  %v2375 = vand.u32 %v2333, 2147483648
  %v2376 = vor.u32 1.1754944e-38, %v2375
  %v2377 = vsel %vm2374, %v2376, %v2372
  %v2378 = vmul.f32 1.0, %v2377
  %v2379 = vtanh.pop %v2321
  %v2380 = vmul.f32 %v2363, %v2086
  %v2381 = vmul.f32 %v2348, %v2379
  %v2382 = vadd.f32 %v2380, %v2381
  %v2383 = vtanh.pop %v2382
  %v2384 = vmul.f32 %v2378, %v2383
  %2385 = vmatpush.bf16.msra.mxu0 0
  %2386 = vmatpush.bf16.msra.mxu0 0
  %2387 = vmatpush.bf16.msra.mxu0 0
  %2388 = vmatpush.bf16.msra.mxu0 0
  %2389 = vmatpush.bf16.msra.mxu0 0
  %2390 = vmatpush.bf16.msra.mxu0 0
  %2391 = vmatpush.bf16.msra.mxu0 %v399
  %2392 = vmatpush.bf16.msra.mxu0 %v398
  %2393 = vmatmul.bf16.gmra.mxu0 %v2145
  %v2394 = vpop.f32.mrf.mxu0
  %v2395 = vadd.f32 0.0, %v2394
  %v2396 = vpop.f32.mrf.mxu0
  %2397 = vdwg.mxu0
  %v2398 = vadd.f32 %v154, %v2395
  %v2399 = vxor.u32 %v2398, 2147483648
  %v2400 = vmul.f32 %v2399, 1.442695
  %v2401 = vpow.pop %v2400
  %v2402 = vadd.f32 %v2401, 1.0
  %v2403 = vrcp.pop %v2402
  %v2404 = vmul.f32 %v2402, %v2403
  %v2405 = vsub.f32 1.0, %v2404
  %v2406 = vmul.f32 %v2403, %v2405
  %v2407 = vadd.f32 %v2403, %v2406
  %vm2408 = vweird.f32 %v2402
  %vm2409 = vweird.f32 %v2403
  %vm2410 = vmor %vm2408, %vm2409
  %v2411 = vsel %vm2410, %v2403, %v2407
  %v2412 = vand.u32 2147483647, %v2402
  %vm2413 = vcmp.eq.f32.partialorder %v2412, 8.507059e+37
  %v2414 = vand.u32 %v2402, 2147483648
  %v2415 = vor.u32 1.1754944e-38, %v2414
  %v2416 = vsel %vm2413, %v2415, %v2411
  %v2417 = vmul.f32 1.0, %v2416
  %v2418 = vtanh.pop %v2398
  %v2419 = vmul.f32 %v2417, %v2133
  %2421 = vrot.lane.b32.xlu0 %v2418, 32
  %v2422 = vpop.permute.xlu0 %2421
  %v2424 = vmul.f32 %v2417, %v2422
  %2426 = vrot.lane.b32.xlu0 %v2424, 32
  %v2427 = vpop.permute.xlu0 %2426
  %v2429 = vadd.f32 %v2419, %v2427
  %v2430 = vtanh.pop %v2429
  %2432 = vrot.lane.b32.xlu0 %v2430, 32
  %v2433 = vpop.permute.xlu0 %2432
  %v2435 = vmul.f32 %v2417, %v2433
  %v2436 = vpack.c.bf16 %v2435, %v2435
  %2438 = vrot.lane.b32.xlu0 %v2436, 64
  %v2439 = vpop.permute.xlu0 %2438
  %v2441 = vsel %vm402, %v2439, 0
  %2443 = vmatpush.bf16.msra.mxu0 0
  %2444 = vmatpush.bf16.msra.mxu0 0
  %2445 = vmatpush.bf16.msra.mxu0 0
  %2446 = vmatpush.bf16.msra.mxu0 0
  %2447 = vmatpush.bf16.msra.mxu0 0
  %2448 = vmatpush.bf16.msra.mxu0 0
  %2449 = vmatpush.bf16.msra.mxu0 %v470
  %2450 = vmatpush.bf16.msra.mxu0 %v469
  %2451 = vmatmul.bf16.gmra.mxu0 %v2441
  %v2452 = vpop.f32.mrf.mxu0
  %v2453 = vadd.f32 0.0, %v2452
  %v2454 = vpop.f32.mrf.mxu0
  %2455 = vdwg.mxu0
  %v2456 = vadd.f32 %v2453, %v212
  %v2457 = vxor.u32 %v2456, 2147483648
  %v2458 = vmul.f32 %v2457, 1.442695
  %v2459 = vpow.pop %v2458
  %v2460 = vadd.f32 %v2459, 1.0
  %v2461 = vrcp.pop %v2460
  %v2462 = vmul.f32 %v2460, %v2461
  %v2463 = vsub.f32 1.0, %v2462
  %v2464 = vmul.f32 %v2461, %v2463
  %v2465 = vadd.f32 %v2461, %v2464
  %vm2466 = vweird.f32 %v2460
  %vm2467 = vweird.f32 %v2461
  %vm2468 = vmor %vm2466, %vm2467
  %v2469 = vsel %vm2468, %v2461, %v2465
  %v2470 = vand.u32 2147483647, %v2460
  %vm2471 = vcmp.eq.f32.partialorder %v2470, 8.507059e+37
  %v2472 = vand.u32 %v2460, 2147483648
  %v2473 = vor.u32 1.1754944e-38, %v2472
  %v2474 = vsel %vm2471, %v2473, %v2469
  %v2475 = vmul.f32 1.0, %v2474
  %2477 = vrot.lane.b32.xlu0 %v2453, 96
  %v2478 = vpop.permute.xlu0 %2477
  %v2480 = vmul.f32 %v2475, %v2478
  %v2481 = vadd.f32 %v2480, %v515
  %2483 = vrot.lane.b32.xlu0 %v2480, 112
  %v2484 = vpop.permute.xlu0 %2483
  %v2486 = vadd.f32 %v2481, %v2484
  %v2487 = vmul.f32 %v2486, %v2486
  %v2488 = vsel %vm174, %v2487, 0.0
  %2489 = vadd.xlane.f32.xlu0 %v2488
  %v2490 = vpop.xlane.xlu0 %2489
  %v2491 = vrsqrt.pop %v2490
  %v2492 = vmul.f32 %v2491, %v2490
  %v2493 = vmul.f32 %v2492, %v2491
  %v2494 = vmul.f32 0.5, %v2493
  %v2495 = vsub.f32 1.5, %v2494
  %v2496 = vmul.f32 %v2491, %v2495
  %vm2497 = vweird.f32 %v2490
  %vm2498 = vweird.f32 %v2491
  %vm2499 = vmor %vm2497, %vm2498
  %v2500 = vsel %vm2499, %v2491, %v2496
  %v2501 = vmul.f32 %v331, %v2500
  %v2502 = vmin.f32 %v2501, 1.0
  %v2503 = vmul.f32 %v2502, %v2486
  %v2504 = vadd.f32 %v66, %v2503
  %v2505 = vpack.c.bf16 %v2504, %v2504
  %v2507 = vsel %vm174, %v2505, 0
  %2509 = vmatpush.bf16.msra.mxu0 0
  %2510 = vmatpush.bf16.msra.mxu0 0
  %2511 = vmatpush.bf16.msra.mxu0 0
  %2512 = vmatpush.bf16.msra.mxu0 0
  %2513 = vmatpush.bf16.msra.mxu0 0
  %2514 = vmatpush.bf16.msra.mxu0 0
  %2515 = vmatpush.bf16.msra.mxu0 0
  %2516 = vmatpush.bf16.msra.mxu0 %v563
  %2517 = vmatmul.bf16.gmra.mxu0 %v2507
  %v2518 = vpop.f32.mrf.mxu0
  %v2519 = vadd.f32 %v543, %v2518
  %v2520 = vpop.f32.mrf.mxu0
  %2521 = vdwg.mxu0
  %2522 = vmatpush.bf16.msra.mxu0 0
  %2523 = vmatpush.bf16.msra.mxu0 0
  %2524 = vmatpush.bf16.msra.mxu0 0
  %2525 = vmatpush.bf16.msra.mxu0 0
  %2526 = vmatpush.bf16.msra.mxu0 0
  %2527 = vmatpush.bf16.msra.mxu0 0
  %2528 = vmatpush.bf16.msra.mxu0 0
  %2529 = vmatpush.bf16.msra.mxu0 %v564
  %2530 = vmatmul.bf16.gmra.mxu0 %v2507
  %v2531 = vpop.f32.mrf.mxu0
  %v2532 = vadd.f32 %v544, %v2531
  %v2533 = vpop.f32.mrf.mxu0
  %2534 = vdwg.mxu0
  %2535 = vmatpush.bf16.msra.mxu0 0
  %2536 = vmatpush.bf16.msra.mxu0 0
  %2537 = vmatpush.bf16.msra.mxu0 0
  %2538 = vmatpush.bf16.msra.mxu0 0
  %2539 = vmatpush.bf16.msra.mxu0 0
  %2540 = vmatpush.bf16.msra.mxu0 0
  %2541 = vmatpush.bf16.msra.mxu0 0
  %2542 = vmatpush.bf16.msra.mxu0 %v565
  %2543 = vmatmul.bf16.gmra.mxu0 %v2507
  %v2544 = vpop.f32.mrf.mxu0
  %v2545 = vadd.f32 %v545, %v2544
  %v2546 = vpop.f32.mrf.mxu0
  %2547 = vdwg.mxu0
  %2548 = vmatpush.bf16.msra.mxu0 0
  %2549 = vmatpush.bf16.msra.mxu0 0
  %2550 = vmatpush.bf16.msra.mxu0 0
  %2551 = vmatpush.bf16.msra.mxu0 0
  %2552 = vmatpush.bf16.msra.mxu0 0
  %2553 = vmatpush.bf16.msra.mxu0 0
  %2554 = vmatpush.bf16.msra.mxu0 0
  %2555 = vmatpush.bf16.msra.mxu0 %v566
  %2556 = vmatmul.bf16.gmra.mxu0 %v2507
  %v2557 = vpop.f32.mrf.mxu0
  %v2558 = vadd.f32 %v546, %v2557
  %v2559 = vpop.f32.mrf.mxu0
  %2560 = vdwg.mxu0
  %v2561 = vpack.c.bf16 %v2384, %v2384
  %2562 = vmatpush.bf16.msra.mxu0 %v750
  %2563 = vmatpush.bf16.msra.mxu0 %v746
  %2564 = vmatpush.bf16.msra.mxu0 %v742
  %2565 = vmatpush.bf16.msra.mxu0 %v738
  %2566 = vmatpush.bf16.msra.mxu0 %v734
  %2567 = vmatpush.bf16.msra.mxu0 %v730
  %2568 = vmatpush.bf16.msra.mxu0 %v726
  %2569 = vmatpush.bf16.msra.mxu0 %v722
  %2570 = vmatmul.bf16.gmra.mxu0 %v2561
  %v2571 = vpop.f32.mrf.mxu0
  %v2572 = vadd.f32 0.0, %v2571
  %v2573 = vpop.f32.mrf.mxu0
  %2574 = vdwg.mxu0
  %2575 = vmatpush.bf16.msra.mxu0 %v751
  %2576 = vmatpush.bf16.msra.mxu0 %v747
  %2577 = vmatpush.bf16.msra.mxu0 %v743
  %2578 = vmatpush.bf16.msra.mxu0 %v739
  %2579 = vmatpush.bf16.msra.mxu0 %v735
  %2580 = vmatpush.bf16.msra.mxu0 %v731
  %2581 = vmatpush.bf16.msra.mxu0 %v727
  %2582 = vmatpush.bf16.msra.mxu0 %v723
  %2583 = vmatmul.bf16.gmra.mxu0 %v2561
  %v2584 = vpop.f32.mrf.mxu0
  %v2585 = vadd.f32 0.0, %v2584
  %v2586 = vpop.f32.mrf.mxu0
  %2587 = vdwg.mxu0
  %2588 = vmatpush.bf16.msra.mxu0 %v752
  %2589 = vmatpush.bf16.msra.mxu0 %v748
  %2590 = vmatpush.bf16.msra.mxu0 %v744
  %2591 = vmatpush.bf16.msra.mxu0 %v740
  %2592 = vmatpush.bf16.msra.mxu0 %v736
  %2593 = vmatpush.bf16.msra.mxu0 %v732
  %2594 = vmatpush.bf16.msra.mxu0 %v728
  %2595 = vmatpush.bf16.msra.mxu0 %v724
  %2596 = vmatmul.bf16.gmra.mxu0 %v2561
  %v2597 = vpop.f32.mrf.mxu0
  %v2598 = vadd.f32 0.0, %v2597
  %v2599 = vpop.f32.mrf.mxu0
  %2600 = vdwg.mxu0
  %2601 = vmatpush.bf16.msra.mxu0 %v753
  %2602 = vmatpush.bf16.msra.mxu0 %v749
  %2603 = vmatpush.bf16.msra.mxu0 %v745
  %2604 = vmatpush.bf16.msra.mxu0 %v741
  %2605 = vmatpush.bf16.msra.mxu0 %v737
  %2606 = vmatpush.bf16.msra.mxu0 %v733
  %2607 = vmatpush.bf16.msra.mxu0 %v729
  %2608 = vmatpush.bf16.msra.mxu0 %v725
  %2609 = vmatmul.bf16.gmra.mxu0 %v2561
  %v2610 = vpop.f32.mrf.mxu0
  %v2611 = vadd.f32 0.0, %v2610
  %v2612 = vpop.f32.mrf.mxu0
  %2613 = vdwg.mxu0
  %v2614 = vadd.f32 %v2519, %v2572
  %v2615 = vadd.f32 %v2532, %v2585
  %v2616 = vadd.f32 %v2545, %v2598
  %v2617 = vadd.f32 %v2558, %v2611
  %v2618 = vxor.u32 %v2614, 2147483648
  %v2619 = vxor.u32 %v2615, 2147483648
  %v2620 = vxor.u32 %v2616, 2147483648
  %v2621 = vmul.f32 %v2618, 1.442695
  %v2622 = vpow.pop %v2621
  %v2623 = vmul.f32 %v2619, 1.442695
  %v2624 = vpow.pop %v2623
  %v2625 = vmul.f32 %v2620, 1.442695
  %v2626 = vpow.pop %v2625
  %v2627 = vadd.f32 %v2622, 1.0
  %v2628 = vadd.f32 %v2624, 1.0
  %v2629 = vadd.f32 %v2626, 1.0
  %v2630 = vrcp.pop %v2627
  %v2631 = vmul.f32 %v2627, %v2630
  %v2632 = vsub.f32 1.0, %v2631
  %v2633 = vmul.f32 %v2630, %v2632
  %v2634 = vadd.f32 %v2630, %v2633
  %vm2635 = vweird.f32 %v2627
  %vm2636 = vweird.f32 %v2630
  %vm2637 = vmor %vm2635, %vm2636
  %v2638 = vsel %vm2637, %v2630, %v2634
  %v2639 = vand.u32 2147483647, %v2627
  %vm2640 = vcmp.eq.f32.partialorder %v2639, 8.507059e+37
  %v2641 = vand.u32 %v2627, 2147483648
  %v2642 = vor.u32 1.1754944e-38, %v2641
  %v2643 = vsel %vm2640, %v2642, %v2638
  %v2644 = vmul.f32 1.0, %v2643
  %v2645 = vrcp.pop %v2628
  %v2646 = vmul.f32 %v2628, %v2645
  %v2647 = vsub.f32 1.0, %v2646
  %v2648 = vmul.f32 %v2645, %v2647
  %v2649 = vadd.f32 %v2645, %v2648
  %vm2650 = vweird.f32 %v2628
  %vm2651 = vweird.f32 %v2645
  %vm2652 = vmor %vm2650, %vm2651
  %v2653 = vsel %vm2652, %v2645, %v2649
  %v2654 = vand.u32 2147483647, %v2628
  %vm2655 = vcmp.eq.f32.partialorder %v2654, 8.507059e+37
  %v2656 = vand.u32 %v2628, 2147483648
  %v2657 = vor.u32 1.1754944e-38, %v2656
  %v2658 = vsel %vm2655, %v2657, %v2653
  %v2659 = vmul.f32 1.0, %v2658
  %v2660 = vrcp.pop %v2629
  %v2661 = vmul.f32 %v2629, %v2660
  %v2662 = vsub.f32 1.0, %v2661
  %v2663 = vmul.f32 %v2660, %v2662
  %v2664 = vadd.f32 %v2660, %v2663
  %vm2665 = vweird.f32 %v2629
  %vm2666 = vweird.f32 %v2660
  %vm2667 = vmor %vm2665, %vm2666
  %v2668 = vsel %vm2667, %v2660, %v2664
  %v2669 = vand.u32 2147483647, %v2629
  %vm2670 = vcmp.eq.f32.partialorder %v2669, 8.507059e+37
  %v2671 = vand.u32 %v2629, 2147483648
  %v2672 = vor.u32 1.1754944e-38, %v2671
  %v2673 = vsel %vm2670, %v2672, %v2668
  %v2674 = vmul.f32 1.0, %v2673
  %v2675 = vtanh.pop %v2617
  %v2676 = vmul.f32 %v2659, %v2382
  %v2677 = vmul.f32 %v2644, %v2675
  %v2678 = vadd.f32 %v2676, %v2677
  %v2679 = vtanh.pop %v2678
  %v2680 = vmul.f32 %v2674, %v2679
  %2681 = vmatpush.bf16.msra.mxu0 0
  %2682 = vmatpush.bf16.msra.mxu0 0
  %2683 = vmatpush.bf16.msra.mxu0 0
  %2684 = vmatpush.bf16.msra.mxu0 0
  %2685 = vmatpush.bf16.msra.mxu0 0
  %2686 = vmatpush.bf16.msra.mxu0 0
  %2687 = vmatpush.bf16.msra.mxu0 %v399
  %2688 = vmatpush.bf16.msra.mxu0 %v398
  %2689 = vmatmul.bf16.gmra.mxu0 %v2441
  %v2690 = vpop.f32.mrf.mxu0
  %v2691 = vadd.f32 0.0, %v2690
  %v2692 = vpop.f32.mrf.mxu0
  %2693 = vdwg.mxu0
  %v2694 = vadd.f32 %v156, %v2691
  %v2695 = vxor.u32 %v2694, 2147483648
  %v2696 = vmul.f32 %v2695, 1.442695
  %v2697 = vpow.pop %v2696
  %v2698 = vadd.f32 %v2697, 1.0
  %v2699 = vrcp.pop %v2698
  %v2700 = vmul.f32 %v2698, %v2699
  %v2701 = vsub.f32 1.0, %v2700
  %v2702 = vmul.f32 %v2699, %v2701
  %v2703 = vadd.f32 %v2699, %v2702
  %vm2704 = vweird.f32 %v2698
  %vm2705 = vweird.f32 %v2699
  %vm2706 = vmor %vm2704, %vm2705
  %v2707 = vsel %vm2706, %v2699, %v2703
  %v2708 = vand.u32 2147483647, %v2698
  %vm2709 = vcmp.eq.f32.partialorder %v2708, 8.507059e+37
  %v2710 = vand.u32 %v2698, 2147483648
  %v2711 = vor.u32 1.1754944e-38, %v2710
  %v2712 = vsel %vm2709, %v2711, %v2707
  %v2713 = vmul.f32 1.0, %v2712
  %v2714 = vtanh.pop %v2694
  %v2715 = vmul.f32 %v2713, %v2429
  %2717 = vrot.lane.b32.xlu0 %v2714, 32
  %v2718 = vpop.permute.xlu0 %2717
  %v2720 = vmul.f32 %v2713, %v2718
  %2722 = vrot.lane.b32.xlu0 %v2720, 32
  %v2723 = vpop.permute.xlu0 %2722
  %v2725 = vadd.f32 %v2715, %v2723
  %v2726 = vtanh.pop %v2725
  %2728 = vrot.lane.b32.xlu0 %v2726, 32
  %v2729 = vpop.permute.xlu0 %2728
  %v2731 = vmul.f32 %v2713, %v2729
  %v2732 = vpack.c.bf16 %v2731, %v2731
  %2734 = vrot.lane.b32.xlu0 %v2732, 64
  %v2735 = vpop.permute.xlu0 %2734
  %v2737 = vsel %vm402, %v2735, 0
  %2739 = vmatpush.bf16.msra.mxu0 0
  %2740 = vmatpush.bf16.msra.mxu0 0
  %2741 = vmatpush.bf16.msra.mxu0 0
  %2742 = vmatpush.bf16.msra.mxu0 0
  %2743 = vmatpush.bf16.msra.mxu0 0
  %2744 = vmatpush.bf16.msra.mxu0 0
  %2745 = vmatpush.bf16.msra.mxu0 %v470
  %2746 = vmatpush.bf16.msra.mxu0 %v469
  %2747 = vmatmul.bf16.gmra.mxu0 %v2737
  %v2748 = vpop.f32.mrf.mxu0
  %v2749 = vadd.f32 0.0, %v2748
  %v2750 = vpop.f32.mrf.mxu0
  %2751 = vdwg.mxu0
  %v2752 = vadd.f32 %v2749, %v214
  %v2753 = vxor.u32 %v2752, 2147483648
  %v2754 = vmul.f32 %v2753, 1.442695
  %v2755 = vpow.pop %v2754
  %v2756 = vadd.f32 %v2755, 1.0
  %v2757 = vrcp.pop %v2756
  %v2758 = vmul.f32 %v2756, %v2757
  %v2759 = vsub.f32 1.0, %v2758
  %v2760 = vmul.f32 %v2757, %v2759
  %v2761 = vadd.f32 %v2757, %v2760
  %vm2762 = vweird.f32 %v2756
  %vm2763 = vweird.f32 %v2757
  %vm2764 = vmor %vm2762, %vm2763
  %v2765 = vsel %vm2764, %v2757, %v2761
  %v2766 = vand.u32 2147483647, %v2756
  %vm2767 = vcmp.eq.f32.partialorder %v2766, 8.507059e+37
  %v2768 = vand.u32 %v2756, 2147483648
  %v2769 = vor.u32 1.1754944e-38, %v2768
  %v2770 = vsel %vm2767, %v2769, %v2765
  %v2771 = vmul.f32 1.0, %v2770
  %2773 = vrot.lane.b32.xlu0 %v2749, 96
  %v2774 = vpop.permute.xlu0 %2773
  %v2776 = vmul.f32 %v2771, %v2774
  %v2777 = vadd.f32 %v2776, %v515
  %2779 = vrot.lane.b32.xlu0 %v2776, 112
  %v2780 = vpop.permute.xlu0 %2779
  %v2782 = vadd.f32 %v2777, %v2780
  %v2783 = vmul.f32 %v2782, %v2782
  %v2784 = vsel %vm174, %v2783, 0.0
  %2785 = vadd.xlane.f32.xlu0 %v2784
  %v2786 = vpop.xlane.xlu0 %2785
  %v2787 = vrsqrt.pop %v2786
  %v2788 = vmul.f32 %v2787, %v2786
  %v2789 = vmul.f32 %v2788, %v2787
  %v2790 = vmul.f32 0.5, %v2789
  %v2791 = vsub.f32 1.5, %v2790
  %v2792 = vmul.f32 %v2787, %v2791
  %vm2793 = vweird.f32 %v2786
  %vm2794 = vweird.f32 %v2787
  %vm2795 = vmor %vm2793, %vm2794
  %v2796 = vsel %vm2795, %v2787, %v2792
  %v2797 = vmul.f32 %v343, %v2796
  %v2798 = vmin.f32 %v2797, 1.0
  %v2799 = vmul.f32 %v2798, %v2782
  %v2800 = vadd.f32 %v67, %v2799
  %v2801 = vpack.c.bf16 %v2800, %v2800
  %v2803 = vsel %vm174, %v2801, 0
  %2805 = vmatpush.bf16.msra.mxu0 0
  %2806 = vmatpush.bf16.msra.mxu0 0
  %2807 = vmatpush.bf16.msra.mxu0 0
  %2808 = vmatpush.bf16.msra.mxu0 0
  %2809 = vmatpush.bf16.msra.mxu0 0
  %2810 = vmatpush.bf16.msra.mxu0 0
  %2811 = vmatpush.bf16.msra.mxu0 0
  %2812 = vmatpush.bf16.msra.mxu0 %v563
  %2813 = vmatmul.bf16.gmra.mxu0 %v2803
  %v2814 = vpop.f32.mrf.mxu0
  %v2815 = vadd.f32 %v543, %v2814
  %v2816 = vpop.f32.mrf.mxu0
  %2817 = vdwg.mxu0
  %2818 = vmatpush.bf16.msra.mxu0 0
  %2819 = vmatpush.bf16.msra.mxu0 0
  %2820 = vmatpush.bf16.msra.mxu0 0
  %2821 = vmatpush.bf16.msra.mxu0 0
  %2822 = vmatpush.bf16.msra.mxu0 0
  %2823 = vmatpush.bf16.msra.mxu0 0
  %2824 = vmatpush.bf16.msra.mxu0 0
  %2825 = vmatpush.bf16.msra.mxu0 %v564
  %2826 = vmatmul.bf16.gmra.mxu0 %v2803
  %v2827 = vpop.f32.mrf.mxu0
  %v2828 = vadd.f32 %v544, %v2827
  %v2829 = vpop.f32.mrf.mxu0
  %2830 = vdwg.mxu0
  %2831 = vmatpush.bf16.msra.mxu0 0
  %2832 = vmatpush.bf16.msra.mxu0 0
  %2833 = vmatpush.bf16.msra.mxu0 0
  %2834 = vmatpush.bf16.msra.mxu0 0
  %2835 = vmatpush.bf16.msra.mxu0 0
  %2836 = vmatpush.bf16.msra.mxu0 0
  %2837 = vmatpush.bf16.msra.mxu0 0
  %2838 = vmatpush.bf16.msra.mxu0 %v565
  %2839 = vmatmul.bf16.gmra.mxu0 %v2803
  %v2840 = vpop.f32.mrf.mxu0
  %v2841 = vadd.f32 %v545, %v2840
  %v2842 = vpop.f32.mrf.mxu0
  %2843 = vdwg.mxu0
  %2844 = vmatpush.bf16.msra.mxu0 0
  %2845 = vmatpush.bf16.msra.mxu0 0
  %2846 = vmatpush.bf16.msra.mxu0 0
  %2847 = vmatpush.bf16.msra.mxu0 0
  %2848 = vmatpush.bf16.msra.mxu0 0
  %2849 = vmatpush.bf16.msra.mxu0 0
  %2850 = vmatpush.bf16.msra.mxu0 0
  %2851 = vmatpush.bf16.msra.mxu0 %v566
  %2852 = vmatmul.bf16.gmra.mxu0 %v2803
  %v2853 = vpop.f32.mrf.mxu0
  %v2854 = vadd.f32 %v546, %v2853
  %v2855 = vpop.f32.mrf.mxu0
  %2856 = vdwg.mxu0
  %v2857 = vpack.c.bf16 %v2680, %v2680
  %2858 = vmatpush.bf16.msra.mxu0 %v750
  %2859 = vmatpush.bf16.msra.mxu0 %v746
  %2860 = vmatpush.bf16.msra.mxu0 %v742
  %2861 = vmatpush.bf16.msra.mxu0 %v738
  %2862 = vmatpush.bf16.msra.mxu0 %v734
  %2863 = vmatpush.bf16.msra.mxu0 %v730
  %2864 = vmatpush.bf16.msra.mxu0 %v726
  %2865 = vmatpush.bf16.msra.mxu0 %v722
  %2866 = vmatmul.bf16.gmra.mxu0 %v2857
  %v2867 = vpop.f32.mrf.mxu0
  %v2868 = vadd.f32 0.0, %v2867
  %v2869 = vpop.f32.mrf.mxu0
  %2870 = vdwg.mxu0
  %2871 = vmatpush.bf16.msra.mxu0 %v751
  %2872 = vmatpush.bf16.msra.mxu0 %v747
  %2873 = vmatpush.bf16.msra.mxu0 %v743
  %2874 = vmatpush.bf16.msra.mxu0 %v739
  %2875 = vmatpush.bf16.msra.mxu0 %v735
  %2876 = vmatpush.bf16.msra.mxu0 %v731
  %2877 = vmatpush.bf16.msra.mxu0 %v727
  %2878 = vmatpush.bf16.msra.mxu0 %v723
  %2879 = vmatmul.bf16.gmra.mxu0 %v2857
  %v2880 = vpop.f32.mrf.mxu0
  %v2881 = vadd.f32 0.0, %v2880
  %v2882 = vpop.f32.mrf.mxu0
  %2883 = vdwg.mxu0
  %2884 = vmatpush.bf16.msra.mxu0 %v752
  %2885 = vmatpush.bf16.msra.mxu0 %v748
  %2886 = vmatpush.bf16.msra.mxu0 %v744
  %2887 = vmatpush.bf16.msra.mxu0 %v740
  %2888 = vmatpush.bf16.msra.mxu0 %v736
  %2889 = vmatpush.bf16.msra.mxu0 %v732
  %2890 = vmatpush.bf16.msra.mxu0 %v728
  %2891 = vmatpush.bf16.msra.mxu0 %v724
  %2892 = vmatmul.bf16.gmra.mxu0 %v2857
  %v2893 = vpop.f32.mrf.mxu0
  %v2894 = vadd.f32 0.0, %v2893
  %v2895 = vpop.f32.mrf.mxu0
  %2896 = vdwg.mxu0
  %2897 = vmatpush.bf16.msra.mxu0 %v753
  %2898 = vmatpush.bf16.msra.mxu0 %v749
  %2899 = vmatpush.bf16.msra.mxu0 %v745
  %2900 = vmatpush.bf16.msra.mxu0 %v741
  %2901 = vmatpush.bf16.msra.mxu0 %v737
  %2902 = vmatpush.bf16.msra.mxu0 %v733
  %2903 = vmatpush.bf16.msra.mxu0 %v729
  %2904 = vmatpush.bf16.msra.mxu0 %v725
  %2905 = vmatmul.bf16.gmra.mxu0 %v2857
  %v2906 = vpop.f32.mrf.mxu0
  %v2907 = vadd.f32 0.0, %v2906
  %v2908 = vpop.f32.mrf.mxu0
  %2909 = vdwg.mxu0
  %v2910 = vadd.f32 %v2815, %v2868
  %v2911 = vadd.f32 %v2828, %v2881
  %v2912 = vadd.f32 %v2841, %v2894
  %v2913 = vadd.f32 %v2854, %v2907
  %v2914 = vxor.u32 %v2910, 2147483648
  %v2915 = vxor.u32 %v2911, 2147483648
  %v2916 = vxor.u32 %v2912, 2147483648
  %v2917 = vmul.f32 %v2914, 1.442695
  %v2918 = vpow.pop %v2917
  %v2919 = vmul.f32 %v2915, 1.442695
  %v2920 = vpow.pop %v2919
  %v2921 = vmul.f32 %v2916, 1.442695
  %v2922 = vpow.pop %v2921
  %v2923 = vadd.f32 %v2918, 1.0
  %v2924 = vadd.f32 %v2920, 1.0
  %v2925 = vadd.f32 %v2922, 1.0
  %v2926 = vrcp.pop %v2923
  %v2927 = vmul.f32 %v2923, %v2926
  %v2928 = vsub.f32 1.0, %v2927
  %v2929 = vmul.f32 %v2926, %v2928
  %v2930 = vadd.f32 %v2926, %v2929
  %vm2931 = vweird.f32 %v2923
  %vm2932 = vweird.f32 %v2926
  %vm2933 = vmor %vm2931, %vm2932
  %v2934 = vsel %vm2933, %v2926, %v2930
  %v2935 = vand.u32 2147483647, %v2923
  %vm2936 = vcmp.eq.f32.partialorder %v2935, 8.507059e+37
  %v2937 = vand.u32 %v2923, 2147483648
  %v2938 = vor.u32 1.1754944e-38, %v2937
  %v2939 = vsel %vm2936, %v2938, %v2934
  %v2940 = vmul.f32 1.0, %v2939
  %v2941 = vrcp.pop %v2924
  %v2942 = vmul.f32 %v2924, %v2941
  %v2943 = vsub.f32 1.0, %v2942
  %v2944 = vmul.f32 %v2941, %v2943
  %v2945 = vadd.f32 %v2941, %v2944
  %vm2946 = vweird.f32 %v2924
  %vm2947 = vweird.f32 %v2941
  %vm2948 = vmor %vm2946, %vm2947
  %v2949 = vsel %vm2948, %v2941, %v2945
  %v2950 = vand.u32 2147483647, %v2924
  %vm2951 = vcmp.eq.f32.partialorder %v2950, 8.507059e+37
  %v2952 = vand.u32 %v2924, 2147483648
  %v2953 = vor.u32 1.1754944e-38, %v2952
  %v2954 = vsel %vm2951, %v2953, %v2949
  %v2955 = vmul.f32 1.0, %v2954
  %v2956 = vrcp.pop %v2925
  %v2957 = vmul.f32 %v2925, %v2956
  %v2958 = vsub.f32 1.0, %v2957
  %v2959 = vmul.f32 %v2956, %v2958
  %v2960 = vadd.f32 %v2956, %v2959
  %vm2961 = vweird.f32 %v2925
  %vm2962 = vweird.f32 %v2956
  %vm2963 = vmor %vm2961, %vm2962
  %v2964 = vsel %vm2963, %v2956, %v2960
  %v2965 = vand.u32 2147483647, %v2925
  %vm2966 = vcmp.eq.f32.partialorder %v2965, 8.507059e+37
  %v2967 = vand.u32 %v2925, 2147483648
  %v2968 = vor.u32 1.1754944e-38, %v2967
  %v2969 = vsel %vm2966, %v2968, %v2964
  %v2970 = vmul.f32 1.0, %v2969
  %v2971 = vtanh.pop %v2913
  %v2972 = vmul.f32 %v2955, %v2678
  %v2973 = vmul.f32 %v2940, %v2971
  %v2974 = vadd.f32 %v2972, %v2973
  %v2975 = vtanh.pop %v2974
  %v2976 = vmul.f32 %v2970, %v2975
  %v2977 = vld [vmem:[%s12] sm:$0xff]
  %v2978 = vld [vmem:[%s12 + $0x8] sm:$0xff]
  %v2979 = vld [vmem:[%s12 + $0x10] sm:$0xff]
  %v2980 = vld [vmem:[%s12 + $0x18] sm:$0xff]
  %v2981 = vld [vmem:[%s12 + $0x20] sm:$0xff]
  %v2982 = vld [vmem:[%s12 + $0x28] sm:$0xff]
  %v2983 = vld [vmem:[%s12 + $0x30] sm:$0xff]
  %v2984 = vld [vmem:[%s12 + $0x38] sm:$0xff]
  %v2985 = vld [vmem:[%s12 + $0x40] sm:$0xff]
  %v2986 = vld [vmem:[%s12 + $0x48] sm:$0xff]
  %v2987 = vld [vmem:[%s12 + $0x50] sm:$0xff]
  %v2988 = vld [vmem:[%s12 + $0x58] sm:$0xff]
  %v2989 = vld [vmem:[%s12 + $0x60] sm:$0xff]
  %v2990 = vld [vmem:[%s12 + $0x68] sm:$0xff]
  %v2991 = vld [vmem:[%s12 + $0x70] sm:$0xff]
  %v2992 = vld [vmem:[%s12 + $0x78] sm:$0xff]
  %v2993 = vld [vmem:[%s13] sm:$0x1]
  %v2995 = vperm.slane %v2993, 0
  %2997 = vmatpush.msra.mxu0 %v2992
  %2998 = vmatpush.msra.mxu0 %v2991
  %2999 = vmatpush.msra.mxu0 %v2990
  %3000 = vmatpush.msra.mxu0 %v2989
  %3001 = vmatpush.msra.mxu0 %v2988
  %3002 = vmatpush.msra.mxu0 %v2987
  %3003 = vmatpush.msra.mxu0 %v2986
  %3004 = vmatpush.msra.mxu0 %v2985
  %3005 = vmatpush.msra.mxu0 %v2984
  %3006 = vmatpush.msra.mxu0 %v2983
  %3007 = vmatpush.msra.mxu0 %v2982
  %3008 = vmatpush.msra.mxu0 %v2981
  %3009 = vmatpush.msra.mxu0 %v2980
  %3010 = vmatpush.msra.mxu0 %v2979
  %3011 = vmatpush.msra.mxu0 %v2978
  %3012 = vmatpush.msra.mxu0 %v2977
  %3013 = vmatmul.f32.gmra.mxu0 %v2976
  %v3014 = vpop.f32.mrf.mxu0
  %v3015 = vadd.f32 %v2995, %v3014
  %3016 = vdwg.mxu0
  %v3017 = vmax.f32 %v3015, 0.0
  %v3018 = vld [vmem:[%s14] sm:$0xff]
  %v3019 = vld [vmem:[%s14 + $0x8] sm:$0xff]
  %v3020 = vld [vmem:[%s14 + $0x10] sm:$0xff]
  %v3021 = vld [vmem:[%s14 + $0x18] sm:$0xff]
  %v3022 = vld [vmem:[%s15] sm:$0x1]
  %v3024 = vperm.slane %v3022, 0
  %v3027 = vsel %vm402, %v3017, 0
  %3029 = vmatpush.msra.mxu0 0.0
  %3030 = vmatpush.msra.mxu0 0.0
  %3031 = vmatpush.msra.mxu0 0.0
  %3032 = vmatpush.msra.mxu0 0.0
  %3033 = vmatpush.msra.mxu0 0.0
  %3034 = vmatpush.msra.mxu0 0.0
  %3035 = vmatpush.msra.mxu0 0.0
  %3036 = vmatpush.msra.mxu0 0.0
  %3037 = vmatpush.msra.mxu0 0.0
  %3038 = vmatpush.msra.mxu0 0.0
  %3039 = vmatpush.msra.mxu0 0.0
  %3040 = vmatpush.msra.mxu0 0.0
  %3041 = vmatpush.msra.mxu0 %v3021
  %3042 = vmatpush.msra.mxu0 %v3020
  %3043 = vmatpush.msra.mxu0 %v3019
  %3044 = vmatpush.msra.mxu0 %v3018
  %3045 = vmatmul.f32.gmra.mxu0 %v3027
  %v3046 = vpop.f32.mrf.mxu0
  %v3047 = vadd.f32 %v3024, %v3046
  %3048 = vdwg.mxu0
  %v3049 = vmax.f32 %v3047, 0.0
  %v3050 = vld [vmem:[%s16] sm:$0xff]
  %v3051 = vld [vmem:[%s16 + $0x8] sm:$0xff]
  %v3052 = vld [vmem:[%s16 + $0x10] sm:$0xff]
  %v3053 = vld [vmem:[%s16 + $0x18] sm:$0xff]
  %v3054 = vld [vmem:[%s17] sm:$0x1]
  %v3056 = vperm.slane %v3054, 0
  %v3059 = vsel %vm402, %v3049, 0
  %3061 = vmatpush.msra.mxu0 0.0
  %3062 = vmatpush.msra.mxu0 0.0
  %3063 = vmatpush.msra.mxu0 0.0
  %3064 = vmatpush.msra.mxu0 0.0
  %3065 = vmatpush.msra.mxu0 0.0
  %3066 = vmatpush.msra.mxu0 0.0
  %3067 = vmatpush.msra.mxu0 0.0
  %3068 = vmatpush.msra.mxu0 0.0
  %3069 = vmatpush.msra.mxu0 0.0
  %3070 = vmatpush.msra.mxu0 0.0
  %3071 = vmatpush.msra.mxu0 0.0
  %3072 = vmatpush.msra.mxu0 0.0
  %3073 = vmatpush.msra.mxu0 %v3053
  %3074 = vmatpush.msra.mxu0 %v3052
  %3075 = vmatpush.msra.mxu0 %v3051
  %3076 = vmatpush.msra.mxu0 %v3050
  %3077 = vmatmul.f32.gmra.mxu0 %v3059
  %v3078 = vpop.f32.mrf.mxu0
  %v3079 = vadd.f32 %v3056, %v3078
  %3080 = vdwg.mxu0
  %vm3081 = vcmask 31744
  %3082 = vst.msk [vmem:[%s18] sm:$0xff] %vm3081, %v3079
  // Predicated region
  $region74: #{raven_forward.1} parent=0 // pred_check
    _
  $region75: #{raven_forward.1} parent=0 // pred_check_branch
    %3084 = sbr.rel (0) target = $region77
  $region76: #{raven_forward.1} parent=0 // pred_region
    _
  $region77: #{raven_forward.1} parent=0 // pred_fallthru
    _
  // Predicated region
  $region78: #{raven_forward.1} parent=0 // pred_check
    _
  $region79: #{raven_forward.1} parent=0 // pred_check_branch
    %3086 = sbr.rel (0) target = $region81
  $region80: #{raven_forward.1} parent=0 // pred_region
    _
  $region81: #{raven_forward.1} parent=0 // pred_fallthru
    _

</llo_original>
